<compile_context>
chip_gen: v7x
topology: tpu7x:2x2x1
jax: 0.10.0
libtpu: 0.0.40
codegen_flags: <defaults>
</compile_context>

<pallas_src>
import functools

import jax
import jax.numpy as jnp
from jax import lax
from jax.experimental import pallas as pl
from jax.experimental.pallas import tpu as pltpu

BN_EPS = 1e-5
LANE = 128


# --------------------------------------------------------------------------
# VMEM modelling / tile selection
# --------------------------------------------------------------------------
def _round_up(x, m):
    return (x + m - 1) // m * m


def _sublane(itemsize):
    return max(8, 32 // itemsize)        # f32 -> 8, bf16 -> 16


def _vmem_bytes(shape, itemsize):
    """Approximate VMEM footprint: lane dim padded to 128, sublane dim padded
    to the dtype's packing granule, leading dims taken as-is."""
    if len(shape) == 0:
        return itemsize
    if len(shape) == 1:
        return _round_up(shape[0], LANE) * itemsize
    major = 1
    for d in shape[:-2]:
        major *= d
    return (major * _round_up(shape[-2], _sublane(itemsize))
            * _round_up(shape[-1], LANE) * itemsize)


def _vmem_limits():
    """Generation-aware budgets (v5e/v6e: 128 MiB physical, v7x: 64 MiB/core)."""
    phys = 64 * 1024 * 1024                       # conservative fallback
    try:
        phys = int(pltpu.get_tpu_info().vmem_capacity_bytes)
    except Exception:
        pass
    vmem_limit = max(32 << 20, min(int(phys * 0.82), 110 << 20))
    tile_budget = max(12 << 20, min(int(phys * 0.45), 60 << 20))
    return vmem_limit, tile_budget


def _patch_tile_bytes(th, w, k, coutp):
    rows = th * w
    b = 2 * _vmem_bytes((1, th, w, k), 2)           # im2col'ed input (x2 buffers)
    b += 2 * _vmem_bytes((k, coutp), 2)             # resident weights (x2 buffers)
    b += 2 * _vmem_bytes((1, th, w, coutp), 2)      # bf16 conv output
    b += 2 * _vmem_bytes((1, 1, 2, coutp), 4)       # per-tile stats
    b += _vmem_bytes((rows, k), 2)                  # reshaped patch temp
    b += _vmem_bytes((rows, coutp), 4)              # f32 accumulator
    return b


def _fused_tile_bytes(th, w, cp, coutp):
    rows = th * w
    b = 2 * _vmem_bytes((1, 1, th, w, cp), 2)       # core rows (x2 buffers)
    b += 2 * 2 * _vmem_bytes((1, 1, 1, w, cp), 2)   # top + bottom halo rows
    b += 2 * 2 * _vmem_bytes((1, cp), 4)            # scale + shift
    b += 2 * _vmem_bytes((9 * cp, coutp), 2)        # resident weights (x2 buffers)
    b += 2 * _vmem_bytes((1, th, w, coutp), 2)      # bf16 conv output
    b += 2 * _vmem_bytes((1, 1, 2, coutp), 4)       # per-tile stats
    b += _vmem_bytes((th + 2, w + 2, cp), 2)        # scratch padded/activated tile
    b += _vmem_bytes((th, w, cp), 4)                # f32 prologue temp
    b += 2 * _vmem_bytes((rows, 9 * cp), 2)         # tap slices + patch concat
    b += _vmem_bytes((rows, coutp), 4)              # f32 accumulator
    return b


def _bn_tile_bytes(th, w, coutp):
    b = 2 * _vmem_bytes((1, th, w, coutp), 2)       # bf16 raw input
    b += 2 * _vmem_bytes((1, th, w, coutp), 4)      # f32 output
    b += 4 * _vmem_bytes((1, coutp), 4)             # scale + shift
    b += _vmem_bytes((th, w, coutp), 4)             # f32 temp
    return b


def _choose_tile_h(H, bytes_fn, budget, max_th):
    """Largest divisor of H whose working set fits the budget.
    (Non-divisor TH via pl.cdiv + a masked last tile is a possible extension.)"""
    best = 1
    for th in range(1, H + 1):
        if H % th:
            continue
        if th > max_th:
            break
        if bytes_fn(th) <= budget:
            best = th
    return best


def _effective_max_th(H, N, max_tile_h):
    m = H if max_tile_h is None else min(int(max_tile_h), H)
    if N == 1 and H >= 2:
        # Keep at least 2 grid steps so both v7x TensorCores get work.
        m = min(m, max(H // 2, 1))
    return max(m, 1)


# --------------------------------------------------------------------------
# Kernels
# --------------------------------------------------------------------------
def _patch_conv_stats_kernel(patch_ref, w_ref, out_ref, stats_ref):
    """First conv for small Cin: input is already im2col'ed (9*Cin lanes).
    One bf16 MXU matmul per tile + per-tile per-channel sum / sum-of-squares."""
    _, th, wdt, k = patch_ref.shape
    coutp = out_ref.shape[-1]
    rows = th * wdt

    patch = patch_ref[0].reshape(rows, k)                       # bf16
    acc = jnp.dot(patch, w_ref[...], preferred_element_type=jnp.float32)

    # Conv2d bias omitted on purpose: training-mode BatchNorm mean-centers each
    # channel, so a per-channel bias cancels exactly.
    out_ref[...] = acc.reshape(1, th, wdt, coutp).astype(out_ref.dtype)

    s1 = jnp.sum(acc, axis=0, keepdims=True)
    s2 = jnp.sum(acc * acc, axis=0, keepdims=True)
    stats_ref[...] = jnp.concatenate([s1, s2], axis=0).reshape(1, 1, 2, coutp)


def _fused_conv_stats_kernel(core_ref, top_ref, bot_ref, scale_ref, shift_ref,
                             w_ref, out_ref, stats_ref, xp_ref, *,
                             apply_prologue):
    """(BN+ReLU of the previous layer) + 3x3 'same' conv + BN partials.

    core_ref : [1, 1, TH, W, Cp] bf16 raw (pre-BN) rows of this tile
    top_ref  : [1, 1, 1,  W, Cp] bf16 row above the tile (clamped at the border)
    bot_ref  : [1, 1, 1,  W, Cp] bf16 row below the tile (clamped at the border)
    scale/shift : [1, Cp] f32 folded BN of the *previous* layer
    w_ref    : [9*Cp, Coutp] bf16 weights, taps folded into the contraction
    out_ref  : [1, TH, W, Coutp] bf16 raw conv output
    stats_ref: [1, 1, 2, Coutp]  f32 [sum, sum_of_squares]
    xp_ref   : [TH+2, W+2, Cp]   bf16 scratch: zero-bordered activated tile
    """
    _, _, th, wdt, cp = core_ref.shape
    coutp = out_ref.shape[-1]
    rows = th * wdt

    if apply_prologue:
        scale = scale_ref[...]                                   # [1, Cp] f32
        shift = shift_ref[...]

        def act(v):
            y = v.astype(jnp.float32) * scale + shift
            return jnp.maximum(y, 0.0).astype(jnp.bfloat16)
    else:
        def act(v):
            return v.astype(jnp.bfloat16)

    h_idx = pl.program_id(1)
    first = h_idx == 0
    last = h_idx == pl.num_programs(1) - 1

    core = act(core_ref[0, 0])                                   # [TH, W, Cp]
    zrow = jnp.zeros((1, wdt, cp), jnp.bfloat16)
    top = jnp.where(first, zrow, act(top_ref[0, 0]))             # image border -> 0
    bot = jnp.where(last, zrow, act(bot_ref[0, 0]))

    # Zero-bordered, activated input tile built in VMEM (post-activation zero
    # padding == the PyTorch conv's padding=1 on the post-ReLU activation).
    xp_ref[...] = jnp.zeros((th + 2, wdt + 2, cp), jnp.bfloat16)
    xp_ref[0:1, 1:wdt + 1, :] = top
    xp_ref[th + 1:th + 2, 1:wdt + 1, :] = bot
    xp_ref[1:th + 1, 1:wdt + 1, :] = core

    # im2col with the 9 taps folded into the contraction dim -> one MXU matmul.
    taps = []
    for dy in range(3):
        for dx in range(3):
            taps.append(xp_ref[dy:dy + th, dx:dx + wdt, :].reshape(rows, cp))
    patch = jnp.concatenate(taps, axis=-1)                       # [rows, 9*Cp]

    acc = jnp.dot(patch, w_ref[...], preferred_element_type=jnp.float32)

    out_ref[...] = acc.reshape(1, th, wdt, coutp).astype(out_ref.dtype)

    s1 = jnp.sum(acc, axis=0, keepdims=True)
    s2 = jnp.sum(acc * acc, axis=0, keepdims=True)
    stats_ref[...] = jnp.concatenate([s1, s2], axis=0).reshape(1, 1, 2, coutp)


def _bn_relu_kernel(y_ref, scale_ref, shift_ref, out_ref):
    """Final epilogue: folded BatchNorm (y*scale + shift) + ReLU, f32 math."""
    y = y_ref[...].astype(jnp.float32)
    out_ref[...] = jnp.maximum(y * scale_ref[...] + shift_ref[...], 0.0
                               ).astype(out_ref.dtype)


# --------------------------------------------------------------------------
# pallas_call wrappers
# --------------------------------------------------------------------------
def _conv1_patch_call(x_nhwc, w, coutp, *, tile_budget, vmem_limit, max_tile_h):
    """First conv for tiny Cin: XLA-side im2col (cheap: 9*Cin channels on a small
    tensor), single matmul per tile inside the kernel."""
    N, H, W, cin = x_nhwc.shape
    cout = w.shape[-1]
    k = 9 * cin

    xp = jnp.pad(x_nhwc, ((0, 0), (1, 1), (1, 1), (0, 0)))       # tiny tensor
    patches = jnp.concatenate(
        [xp[:, dy:dy + H, dx:dx + W, :] for dy in range(3) for dx in range(3)],
        axis=-1).astype(jnp.bfloat16)                            # [N, H, W, 9*Cin]

    w_k = jnp.pad(w, ((0, 0), (0, 0), (0, 0), (0, coutp - cout)))
    w_k = w_k.reshape(k, coutp).astype(jnp.bfloat16)

    max_th = _effective_max_th(H, N, max_tile_h)
    th = _choose_tile_h(H, lambda t: _patch_tile_bytes(t, W, k, coutp),
                        tile_budget, max_th)
    nh = H // th

    cparams = pltpu.CompilerParams(
        dimension_semantics=("parallel", "parallel"),
        vmem_limit_bytes=vmem_limit)

    return pl.pallas_call(
        _patch_conv_stats_kernel,
        grid=(N, nh),
        in_specs=[
            pl.BlockSpec((1, th, W, k), lambda n, h: (n, h, 0, 0)),
            pl.BlockSpec((k, coutp), lambda n, h: (0, 0)),
        ],
        out_specs=(
            pl.BlockSpec((1, th, W, coutp), lambda n, h: (n, h, 0, 0)),
            pl.BlockSpec((1, 1, 2, coutp), lambda n, h: (n, h, 0, 0)),
        ),
        out_shape=(
            jax.ShapeDtypeStruct((N, H, W, coutp), jnp.bfloat16),
            jax.ShapeDtypeStruct((N, nh, 2, coutp), jnp.float32),
        ),
        compiler_params=cparams,
    )(patches, w_k)


def _conv_fused_call(x_raw, scale, shift, w, coutp, *, apply_prologue,
                     tile_budget, vmem_limit, max_tile_h):
    """Fused (previous layer's BN+ReLU) + 3x3 'same' conv + BN partials."""
    N, H, W, cp = x_raw.shape
    cout = w.shape[-1]

    w_k = jnp.pad(w, ((0, 0), (0, 0), (0, cp - w.shape[2]), (0, coutp - cout)))
    w_k = w_k.reshape(9 * cp, coutp).astype(jnp.bfloat16)

    max_th = _effective_max_th(H, N, max_tile_h)
    th = _choose_tile_h(H, lambda t: _fused_tile_bytes(t, W, cp, coutp),
                        tile_budget, max_th)
    nh = H // th

    # Free, layout-preserving view H -> (nH, TH): the 1-row halos of a tile are
    # then ordinary Blocked blocks (last row of tile h-1 / first row of h+1),
    # clamped at the image border and zeroed inside the kernel.
    x5 = x_raw.reshape(N, nh, th, W, cp)

    cparams = pltpu.CompilerParams(
        dimension_semantics=("parallel", "parallel"),
        vmem_limit_bytes=vmem_limit)

    kernel = functools.partial(_fused_conv_stats_kernel,
                               apply_prologue=apply_prologue)

    return pl.pallas_call(
        kernel,
        grid=(N, nh),
        in_specs=[
            pl.BlockSpec((1, 1, th, W, cp), lambda n, h: (n, h, 0, 0, 0)),
            pl.BlockSpec((1, 1, 1, W, cp),
                         lambda n, h: (n, jnp.maximum(h - 1, 0), th - 1, 0, 0)),
            pl.BlockSpec((1, 1, 1, W, cp),
                         lambda n, h: (n, jnp.minimum(h + 1, nh - 1), 0, 0, 0)),
            pl.BlockSpec((1, cp), lambda n, h: (0, 0)),
            pl.BlockSpec((1, cp), lambda n, h: (0, 0)),
            pl.BlockSpec((9 * cp, coutp), lambda n, h: (0, 0)),
        ],
        out_specs=(
            pl.BlockSpec((1, th, W, coutp), lambda n, h: (n, h, 0, 0)),
            pl.BlockSpec((1, 1, 2, coutp), lambda n, h: (n, h, 0, 0)),
        ),
        out_shape=(
            jax.ShapeDtypeStruct((N, H, W, coutp), jnp.bfloat16),
            jax.ShapeDtypeStruct((N, nh, 2, coutp), jnp.float32),
        ),
        scratch_shapes=[pltpu.VMEM((th + 2, W + 2, cp), jnp.bfloat16)],
        compiler_params=cparams,
    )(x5, x5, x5, scale, shift, w_k)


def _bn_relu_call(x_raw, scale, shift, *, tile_budget, vmem_limit):
    """Standalone BN+ReLU for the final layer (module boundary), own tiling."""
    N, H, W, cp = x_raw.shape
    max_th = _effective_max_th(H, N, None)
    th = _choose_tile_h(H, lambda t: _bn_tile_bytes(t, W, cp), tile_budget, max_th)
    nh = H // th

    cparams = pltpu.CompilerParams(
        dimension_semantics=("parallel", "parallel"),
        vmem_limit_bytes=vmem_limit)

    return pl.pallas_call(
        _bn_relu_kernel,
        grid=(N, nh),
        in_specs=[
            pl.BlockSpec((1, th, W, cp), lambda n, h: (n, h, 0, 0)),
            pl.BlockSpec((1, cp), lambda n, h: (0, 0)),
            pl.BlockSpec((1, cp), lambda n, h: (0, 0)),
        ],
        out_specs=pl.BlockSpec((1, th, W, cp), lambda n, h: (n, h, 0, 0)),
        out_shape=jax.ShapeDtypeStruct((N, H, W, cp), jnp.float32),
        compiler_params=cparams,
    )(x_raw, scale, shift)


def _scale_shift_from_partials(part, gamma_p, beta_p, count):
    """Fold BatchNorm (training batch stats) into one per-channel scale/shift."""
    s = jnp.sum(part, axis=(0, 1))                                # [2, Coutp]
    mean = s[0] / count
    # E[x^2] - mean^2 in f32, clamped at 0 (a Welford-style combine of the
    # per-tile partials would be more robust for extremely large N*H*W).
    var = jnp.maximum(s[1] / count - mean * mean, 0.0)
    inv_std = lax.rsqrt(var + BN_EPS)
    scale = gamma_p * inv_std
    shift = beta_p - mean * scale
    return scale.reshape(1, -1), shift.reshape(1, -1)


# --------------------------------------------------------------------------
# conv_block forward
# --------------------------------------------------------------------------
@functools.partial(jax.jit, static_argnames=("max_tile_h",))
def conv_block_forward(x_nchw, params, max_tile_h=None):
    """Equivalent of conv_block.forward: [N, Cin, H, W] -> [N, Cout, H, W]."""
    w1, w2 = params["w1"], params["w2"]
    in_ch, out_ch = w1.shape[2], w1.shape[-1]
    N, _, H, W = x_nchw.shape
    coutp = _round_up(out_ch, LANE)
    count = N * H * W
    vmem_limit, tile_budget = _vmem_limits()

    g1p = jnp.pad(params["g1"], (0, coutp - out_ch), constant_values=1.0)
    b1p = jnp.pad(params["bt1"], (0, coutp - out_ch))
    g2p = jnp.pad(params["g2"], (0, coutp - out_ch), constant_values=1.0)
    b2p = jnp.pad(params["bt2"], (0, coutp - out_ch))

    x = jnp.transpose(x_nchw, (0, 2, 3, 1))                       # NCHW -> NHWC

    # ---- layer 1: conv + batch statistics (raw output stored in bf16) ----
    if 9 * in_ch <= LANE:
        raw1, part1 = _conv1_patch_call(
            x, w1, coutp, tile_budget=tile_budget, vmem_limit=vmem_limit,
            max_tile_h=max_tile_h)
    else:
        ones = jnp.ones((1, in_ch), jnp.float32)
        zeros = jnp.zeros((1, in_ch), jnp.float32)
        raw1, part1 = _conv_fused_call(
            x.astype(jnp.bfloat16), ones, zeros, w1, coutp,
            apply_prologue=False, tile_budget=tile_budget,
            vmem_limit=vmem_limit, max_tile_h=max_tile_h)
    scale1, shift1 = _scale_shift_from_partials(part1, g1p, b1p, count)

    # ---- layer 2: layer-1's BN+ReLU fused into the conv prologue ----
    raw2, part2 = _conv_fused_call(
        raw1, scale1, shift1, w2, coutp, apply_prologue=True,
        tile_budget=tile_budget, vmem_limit=vmem_limit, max_tile_h=max_tile_h)
    scale2, shift2 = _scale_shift_from_partials(part2, g2p, b2p, count)

    # ---- final epilogue: standalone BN+ReLU at the module boundary ----
    y = _bn_relu_call(raw2, scale2, shift2,
                      tile_budget=tile_budget, vmem_limit=vmem_limit)

    y = y[..., :out_ch]                                           # drop lane pad
    return jnp.transpose(y, (0, 3, 1, 2))                         # NHWC -> NCHW


# --------------------------------------------------------------------------
# Reference + params
# --------------------------------------------------------------------------
def _reference_conv_block(x_nchw, params):
    """Pure-JAX reference matching the PyTorch module in training mode."""
    def layer(x, w, b, g, bt):
        y = lax.conv_general_dilated(
            x, w, window_strides=(1, 1), padding="SAME",
            dimension_numbers=("NCHW", "HWIO", "NCHW"))
        y = y + b.reshape(1, -1, 1, 1)
        mean = jnp.mean(y, axis=(0, 2, 3), keepdims=True)
        var = jnp.mean(jnp.square(y - mean), axis=(0, 2, 3), keepdims=True)
        y = (y - mean) * lax.rsqrt(var + BN_EPS)
        y = y * g.reshape(1, -1, 1, 1) + bt.reshape(1, -1, 1, 1)
        return jnp.maximum(y, 0.0)

    h = layer(x_nchw, params["w1"], params["b1"], params["g1"], params["bt1"])
    h = layer(h, params["w2"], params["b2"], params["g2"], params["bt2"])
    return h


def init_conv_block_params(key, in_ch, out_ch):
    """Deterministic parameter init (shapes match nn.Conv2d / nn.BatchNorm2d)."""
    k1, k2, k3, k4 = jax.random.split(key, 4)

    def conv_init(k, cin, cout):
        fan_in = cin * 3 * 3
        bound = 1.0 / jnp.sqrt(fan_in)
        kw, kb = jax.random.split(k)
        w = jax.random.uniform(kw, (3, 3, cin, cout), jnp.float32, -bound, bound)
        b = jax.random.uniform(kb, (cout,), jnp.float32, -bound, bound)
        return w, b

    w1, b1 = conv_init(k1, in_ch, out_ch)
    w2, b2 = conv_init(k2, out_ch, out_ch)
    g1 = 1.0 + 0.1 * jax.random.normal(k3, (out_ch,), jnp.float32)
    g2 = 1.0 + 0.1 * jax.random.normal(k4, (out_ch,), jnp.float32)
    bt1 = jnp.zeros((out_ch,), jnp.float32)
    bt2 = jnp.zeros((out_ch,), jnp.float32)
    return {"w1": w1, "b1": b1, "g1": g1, "bt1": bt1,
            "w2": w2, "b2": b2, "g2": g2, "bt2": bt2}


if __name__ == "__main__":
    key = jax.random.PRNGKey(0)
    kx, kp = jax.random.split(key)

    N, in_ch, out_ch, H, W = 2, 4, 8, 16, 16
    x = jax.random.normal(kx, (N, in_ch, H, W), jnp.float32)
    params = init_conv_block_params(kp, in_ch, out_ch)

    # max_tile_h=4 -> grid (N=2, H-tiles=4): exercises first / middle / last
    # tiles of the halo'd, fused conv path.
    y = conv_block_forward(x, params, max_tile_h=4)
    jax.block_until_ready(y)
    assert y.shape == (N, out_ch, H, W), y.shape

    y_ref = _reference_conv_block(x, params)
    err = float(jnp.max(jnp.abs(y - y_ref)))
    assert err < 1e-1, f"max abs error vs reference: {err}"
    print("KERNEL_OK")
</pallas_src>

<mosaic_0001>
module attributes {stable_mosaic.version = 11 : i64} {
  func.func @_patch_conv_stats_kernel(%arg0: i32, %arg1: i32, %arg2: memref<1x4x16x36xbf16, #tpu.memory_space<vmem>>, %arg3: memref<36x128xbf16, #tpu.memory_space<vmem>>, %arg4: memref<1x4x16x128xbf16, #tpu.memory_space<vmem>>, %arg5: memref<1x1x2x128xf32, #tpu.memory_space<vmem>>) attributes {dimension_semantics = [#tpu.dimension_semantics<parallel>, #tpu.dimension_semantics<parallel>], iteration_bounds = array<i64: 2, 4>, scalar_prefetch = 0 : i64, scratch_operands = 0 : i64, tpu.core_type = #tpu.core_type<tc>, window_params = [{transform_indices = @transform_0, window_bounds = array<i64: 1, 4, 16, 36>}, {pipeline_mode = #tpu.pipeline_mode<synchronous>, transform_indices = @transform_1, window_bounds = array<i64: 36, 128>}, {transform_indices = @transform_2, window_bounds = array<i64: 1, 4, 16, 128>}, {transform_indices = @transform_3, window_bounds = array<i64: 1, 1, 2, 128>}]} {
    %c0 = arith.constant 0 : index
    %c0_0 = arith.constant 0 : index
    %c0_1 = arith.constant 0 : index
    %c0_2 = arith.constant 0 : index
    %0 = vector.load %arg2[%c0, %c0_0, %c0_1, %c0_2] : memref<1x4x16x36xbf16, #tpu.memory_space<vmem>>, vector<1x4x16x36xbf16>
    %1 = vector.shape_cast %0 : vector<1x4x16x36xbf16> to vector<4x16x36xbf16>
    %2 = vector.shape_cast %1 : vector<4x16x36xbf16> to vector<64x36xbf16>
    %c0_3 = arith.constant 0 : index
    %c0_4 = arith.constant 0 : index
    %3 = vector.load %arg3[%c0_3, %c0_4] : memref<36x128xbf16, #tpu.memory_space<vmem>>, vector<36x128xbf16>
    %cst = arith.constant dense<0.000000e+00> : vector<64x128xf32>
    %4 = tpu.matmul %2, %3, %cst {dimension_numbers = #tpu.dot_dimension_numbers<[1], [0], [0], [1], [0, 0, 1, 1], [], []>} : vector<64x36xbf16>, vector<36x128xbf16>, vector<64x128xf32> -> vector<64x128xf32>
    %5 = vector.shape_cast %4 : vector<64x128xf32> to vector<1x4x16x128xf32>
    %6 = arith.truncf %5 : vector<1x4x16x128xf32> to vector<1x4x16x128xbf16>
    %c0_5 = arith.constant 0 : index
    %c0_6 = arith.constant 0 : index
    %c0_7 = arith.constant 0 : index
    %c0_8 = arith.constant 0 : index
    %7 = vector.load %arg4[%c0_5, %c0_6, %c0_7, %c0_8] : memref<1x4x16x128xbf16, #tpu.memory_space<vmem>>, vector<1x4x16x128xbf16>
    tpu.vector_store %arg4[%c0_5, %c0_6, %c0_7, %c0_8], %6 {strides = array<i32>} : memref<1x4x16x128xbf16, #tpu.memory_space<vmem>>, vector<1x4x16x128xbf16>,
    %cst_9 = arith.constant dense<0.000000e+00> : vector<128xf32>
    %8 = vector.multi_reduction <add>, %4, %cst_9 [0] : vector<64x128xf32> to vector<128xf32>
    %9 = vector.shape_cast %8 : vector<128xf32> to vector<1x128xf32>
    %10 = arith.mulf %4, %4 : vector<64x128xf32>
    %cst_10 = arith.constant dense<0.000000e+00> : vector<128xf32>
    %11 = vector.multi_reduction <add>, %10, %cst_10 [0] : vector<64x128xf32> to vector<128xf32>
    %12 = vector.shape_cast %11 : vector<128xf32> to vector<1x128xf32>
    %13 = tpu.concatenate %9, %12 in 0 : vector<1x128xf32>, vector<1x128xf32> -> vector<2x128xf32>
    %14 = vector.shape_cast %13 : vector<2x128xf32> to vector<1x1x2x128xf32>
    %c0_11 = arith.constant 0 : index
    %c0_12 = arith.constant 0 : index
    %c0_13 = arith.constant 0 : index
    %c0_14 = arith.constant 0 : index
    %15 = vector.load %arg5[%c0_11, %c0_12, %c0_13, %c0_14] : memref<1x1x2x128xf32, #tpu.memory_space<vmem>>, vector<1x1x2x128xf32>
    tpu.vector_store %arg5[%c0_11, %c0_12, %c0_13, %c0_14], %14 {strides = array<i32>} : memref<1x1x2x128xf32, #tpu.memory_space<vmem>>, vector<1x1x2x128xf32>,
    return
  }
  func.func @transform_0(%arg0: i32, %arg1: i32) -> (i32, i32, i32, i32) {
    %c0_i32 = arith.constant 0 : i32
    %c0_i32_0 = arith.constant 0 : i32
    %c0_i32_1 = arith.constant 0 : i32
    return %arg0, %arg1, %c0_i32, %c0_i32_0 : i32, i32, i32, i32
  }
  func.func @transform_1(%arg0: i32, %arg1: i32) -> (i32, i32) {
    %c0_i32 = arith.constant 0 : i32
    %c0_i32_0 = arith.constant 0 : i32
    %c0_i32_1 = arith.constant 0 : i32
    return %c0_i32, %c0_i32_0 : i32, i32
  }
  func.func @transform_2(%arg0: i32, %arg1: i32) -> (i32, i32, i32, i32) {
    %c0_i32 = arith.constant 0 : i32
    %c0_i32_0 = arith.constant 0 : i32
    %c0_i32_1 = arith.constant 0 : i32
    return %arg0, %arg1, %c0_i32, %c0_i32_0 : i32, i32, i32, i32
  }
  func.func @transform_3(%arg0: i32, %arg1: i32) -> (i32, i32, i32, i32) {
    %c0_i32 = arith.constant 0 : i32
    %c0_i32_0 = arith.constant 0 : i32
    %c0_i32_1 = arith.constant 0 : i32
    return %arg0, %arg1, %c0_i32, %c0_i32_0 : i32, i32, i32, i32
  }
}

module attributes {stable_mosaic.version = 11 : i64} {
  func.func @_fused_conv_stats_kernel(%arg0: i32, %arg1: i32, %arg2: memref<1x1x4x16x128xbf16, #tpu.memory_space<vmem>>, %arg3: memref<1x1x1x16x128xbf16, #tpu.memory_space<vmem>>, %arg4: memref<1x1x1x16x128xbf16, #tpu.memory_space<vmem>>, %arg5: memref<1x128xf32, #tpu.memory_space<vmem>>, %arg6: memref<1x128xf32, #tpu.memory_space<vmem>>, %arg7: memref<1152x128xbf16, #tpu.memory_space<vmem>>, %arg8: memref<1x4x16x128xbf16, #tpu.memory_space<vmem>>, %arg9: memref<1x1x2x128xf32, #tpu.memory_space<vmem>>, %arg10: memref<6x18x128xbf16, #tpu.memory_space<vmem>>) attributes {dimension_semantics = [#tpu.dimension_semantics<parallel>, #tpu.dimension_semantics<parallel>], iteration_bounds = array<i64: 2, 4>, scalar_prefetch = 0 : i64, scratch_operands = 1 : i64, tpu.core_type = #tpu.core_type<tc>, window_params = [{transform_indices = @transform_0, window_bounds = array<i64: 1, 1, 4, 16, 128>}, {transform_indices = @transform_1, window_bounds = array<i64: 1, 1, 1, 16, 128>}, {transform_indices = @transform_2, window_bounds = array<i64: 1, 1, 1, 16, 128>}, {pipeline_mode = #tpu.pipeline_mode<synchronous>, transform_indices = @transform_3, window_bounds = array<i64: 1, 128>}, {pipeline_mode = #tpu.pipeline_mode<synchronous>, transform_indices = @transform_4, window_bounds = array<i64: 1, 128>}, {pipeline_mode = #tpu.pipeline_mode<synchronous>, transform_indices = @transform_5, window_bounds = array<i64: 1152, 128>}, {transform_indices = @transform_6, window_bounds = array<i64: 1, 4, 16, 128>}, {transform_indices = @transform_7, window_bounds = array<i64: 1, 1, 2, 128>}]} {
    %c0 = arith.constant 0 : index
    %c0_0 = arith.constant 0 : index
    %0 = vector.load %arg5[%c0, %c0_0] : memref<1x128xf32, #tpu.memory_space<vmem>>, vector<1x128xf32>
    %c0_1 = arith.constant 0 : index
    %c0_2 = arith.constant 0 : index
    %1 = vector.load %arg6[%c0_1, %c0_2] : memref<1x128xf32, #tpu.memory_space<vmem>>, vector<1x128xf32>
    %c0_i32 = arith.constant 0 : i32
    %2 = arith.cmpi eq, %arg1, %c0_i32 : i32
    %c3_i32 = arith.constant 3 : i32
    %3 = arith.cmpi eq, %arg1, %c3_i32 : i32
    %c0_3 = arith.constant 0 : index
    %c0_4 = arith.constant 0 : index
    %c0_5 = arith.constant 0 : index
    %c0_6 = arith.constant 0 : index
    %c0_7 = arith.constant 0 : index
    %4 = vector.load %arg2[%c0_3, %c0_4, %c0_5, %c0_6, %c0_7] : memref<1x1x4x16x128xbf16, #tpu.memory_space<vmem>>, vector<1x1x4x16x128xbf16>
    %5 = vector.shape_cast %4 : vector<1x1x4x16x128xbf16> to vector<4x16x128xbf16>
    %6 = arith.extf %5 : vector<4x16x128xbf16> to vector<4x16x128xf32>
    %7 = vector.shape_cast %0 : vector<1x128xf32> to vector<1x1x128xf32>
    %8 = vector.broadcast %7 : vector<1x1x128xf32> to vector<4x16x128xf32>
    %9 = arith.mulf %6, %8 : vector<4x16x128xf32>
    %10 = vector.shape_cast %1 : vector<1x128xf32> to vector<1x1x128xf32>
    %11 = vector.broadcast %10 : vector<1x1x128xf32> to vector<4x16x128xf32>
    %12 = arith.addf %9, %11 : vector<4x16x128xf32>
    %cst = arith.constant 0.000000e+00 : f32
    %13 = vector.broadcast %cst : f32 to vector<4x16x128xf32>
    %14 = arith.maximumf %12, %13 : vector<4x16x128xf32>
    %15 = arith.truncf %14 : vector<4x16x128xf32> to vector<4x16x128xbf16>
    %cst_8 = arith.constant 0.000000e+00 : bf16
    %16 = vector.broadcast %cst_8 : bf16 to vector<1x16x128xbf16>
    %c0_9 = arith.constant 0 : index
    %c0_10 = arith.constant 0 : index
    %c0_11 = arith.constant 0 : index
    %c0_12 = arith.constant 0 : index
    %c0_13 = arith.constant 0 : index
    %17 = vector.load %arg3[%c0_9, %c0_10, %c0_11, %c0_12, %c0_13] : memref<1x1x1x16x128xbf16, #tpu.memory_space<vmem>>, vector<1x1x1x16x128xbf16>
    %18 = vector.shape_cast %17 : vector<1x1x1x16x128xbf16> to vector<1x16x128xbf16>
    %19 = arith.extf %18 : vector<1x16x128xbf16> to vector<1x16x128xf32>
    %20 = vector.shape_cast %0 : vector<1x128xf32> to vector<1x1x128xf32>
    %21 = vector.broadcast %20 : vector<1x1x128xf32> to vector<1x16x128xf32>
    %22 = arith.mulf %19, %21 : vector<1x16x128xf32>
    %23 = vector.shape_cast %1 : vector<1x128xf32> to vector<1x1x128xf32>
    %24 = vector.broadcast %23 : vector<1x1x128xf32> to vector<1x16x128xf32>
    %25 = arith.addf %22, %24 : vector<1x16x128xf32>
    %cst_14 = arith.constant 0.000000e+00 : f32
    %26 = vector.broadcast %cst_14 : f32 to vector<1x16x128xf32>
    %27 = arith.maximumf %25, %26 : vector<1x16x128xf32>
    %28 = arith.truncf %27 : vector<1x16x128xf32> to vector<1x16x128xbf16>
    %29 = arith.select %2, %16, %28 : vector<1x16x128xbf16>
    %c0_15 = arith.constant 0 : index
    %c0_16 = arith.constant 0 : index
    %c0_17 = arith.constant 0 : index
    %c0_18 = arith.constant 0 : index
    %c0_19 = arith.constant 0 : index
    %30 = vector.load %arg4[%c0_15, %c0_16, %c0_17, %c0_18, %c0_19] : memref<1x1x1x16x128xbf16, #tpu.memory_space<vmem>>, vector<1x1x1x16x128xbf16>
    %31 = vector.shape_cast %30 : vector<1x1x1x16x128xbf16> to vector<1x16x128xbf16>
    %32 = arith.extf %31 : vector<1x16x128xbf16> to vector<1x16x128xf32>
    %33 = vector.shape_cast %0 : vector<1x128xf32> to vector<1x1x128xf32>
    %34 = vector.broadcast %33 : vector<1x1x128xf32> to vector<1x16x128xf32>
    %35 = arith.mulf %32, %34 : vector<1x16x128xf32>
    %36 = vector.shape_cast %1 : vector<1x128xf32> to vector<1x1x128xf32>
    %37 = vector.broadcast %36 : vector<1x1x128xf32> to vector<1x16x128xf32>
    %38 = arith.addf %35, %37 : vector<1x16x128xf32>
    %cst_20 = arith.constant 0.000000e+00 : f32
    %39 = vector.broadcast %cst_20 : f32 to vector<1x16x128xf32>
    %40 = arith.maximumf %38, %39 : vector<1x16x128xf32>
    %41 = arith.truncf %40 : vector<1x16x128xf32> to vector<1x16x128xbf16>
    %42 = arith.select %3, %16, %41 : vector<1x16x128xbf16>
    %cst_21 = arith.constant 0.000000e+00 : bf16
    %43 = vector.broadcast %cst_21 : bf16 to vector<6x18x128xbf16>
    %c0_22 = arith.constant 0 : index
    %c0_23 = arith.constant 0 : index
    %c0_24 = arith.constant 0 : index
    %44 = vector.load %arg10[%c0_22, %c0_23, %c0_24] : memref<6x18x128xbf16, #tpu.memory_space<vmem>>, vector<6x18x128xbf16>
    tpu.vector_store %arg10[%c0_22, %c0_23, %c0_24], %43 {strides = array<i32>} : memref<6x18x128xbf16, #tpu.memory_space<vmem>>, vector<6x18x128xbf16>,
    %c0_25 = arith.constant 0 : index
    %c1 = arith.constant 1 : index
    %c0_26 = arith.constant 0 : index
    %45 = vector.load %arg10[%c0_25, %c1, %c0_26] : memref<6x18x128xbf16, #tpu.memory_space<vmem>>, vector<1x16x128xbf16>
    tpu.vector_store %arg10[%c0_25, %c1, %c0_26], %29 {strides = array<i32>} : memref<6x18x128xbf16, #tpu.memory_space<vmem>>, vector<1x16x128xbf16>,
    %c5 = arith.constant 5 : index
    %c1_27 = arith.constant 1 : index
    %c0_28 = arith.constant 0 : index
    %46 = vector.load %arg10[%c5, %c1_27, %c0_28] : memref<6x18x128xbf16, #tpu.memory_space<vmem>>, vector<1x16x128xbf16>
    tpu.vector_store %arg10[%c5, %c1_27, %c0_28], %42 {strides = array<i32>} : memref<6x18x128xbf16, #tpu.memory_space<vmem>>, vector<1x16x128xbf16>,
    %c1_29 = arith.constant 1 : index
    %c1_30 = arith.constant 1 : index
    %c0_31 = arith.constant 0 : index
    %47 = vector.load %arg10[%c1_29, %c1_30, %c0_31] : memref<6x18x128xbf16, #tpu.memory_space<vmem>>, vector<4x16x128xbf16>
    tpu.vector_store %arg10[%c1_29, %c1_30, %c0_31], %15 {strides = array<i32>} : memref<6x18x128xbf16, #tpu.memory_space<vmem>>, vector<4x16x128xbf16>,
    %c0_32 = arith.constant 0 : index
    %c0_33 = arith.constant 0 : index
    %c0_34 = arith.constant 0 : index
    %48 = vector.load %arg10[%c0_32, %c0_33, %c0_34] : memref<6x18x128xbf16, #tpu.memory_space<vmem>>, vector<4x16x128xbf16>
    %49 = vector.shape_cast %48 : vector<4x16x128xbf16> to vector<64x128xbf16>
    %c0_35 = arith.constant 0 : index
    %c1_36 = arith.constant 1 : index
    %c0_37 = arith.constant 0 : index
    %50 = vector.load %arg10[%c0_35, %c1_36, %c0_37] : memref<6x18x128xbf16, #tpu.memory_space<vmem>>, vector<4x16x128xbf16>
    %51 = vector.shape_cast %50 : vector<4x16x128xbf16> to vector<64x128xbf16>
    %c0_38 = arith.constant 0 : index
    %c2 = arith.constant 2 : index
    %c0_39 = arith.constant 0 : index
    %52 = vector.load %arg10[%c0_38, %c2, %c0_39] : memref<6x18x128xbf16, #tpu.memory_space<vmem>>, vector<4x16x128xbf16>
    %53 = vector.shape_cast %52 : vector<4x16x128xbf16> to vector<64x128xbf16>
    %c1_40 = arith.constant 1 : index
    %c0_41 = arith.constant 0 : index
    %c0_42 = arith.constant 0 : index
    %54 = vector.load %arg10[%c1_40, %c0_41, %c0_42] : memref<6x18x128xbf16, #tpu.memory_space<vmem>>, vector<4x16x128xbf16>
    %55 = vector.shape_cast %54 : vector<4x16x128xbf16> to vector<64x128xbf16>
    %c1_43 = arith.constant 1 : index
    %c1_44 = arith.constant 1 : index
    %c0_45 = arith.constant 0 : index
    %56 = vector.load %arg10[%c1_43, %c1_44, %c0_45] : memref<6x18x128xbf16, #tpu.memory_space<vmem>>, vector<4x16x128xbf16>
    %57 = vector.shape_cast %56 : vector<4x16x128xbf16> to vector<64x128xbf16>
    %c1_46 = arith.constant 1 : index
    %c2_47 = arith.constant 2 : index
    %c0_48 = arith.constant 0 : index
    %58 = vector.load %arg10[%c1_46, %c2_47, %c0_48] : memref<6x18x128xbf16, #tpu.memory_space<vmem>>, vector<4x16x128xbf16>
    %59 = vector.shape_cast %58 : vector<4x16x128xbf16> to vector<64x128xbf16>
    %c2_49 = arith.constant 2 : index
    %c0_50 = arith.constant 0 : index
    %c0_51 = arith.constant 0 : index
    %60 = vector.load %arg10[%c2_49, %c0_50, %c0_51] : memref<6x18x128xbf16, #tpu.memory_space<vmem>>, vector<4x16x128xbf16>
    %61 = vector.shape_cast %60 : vector<4x16x128xbf16> to vector<64x128xbf16>
    %c2_52 = arith.constant 2 : index
    %c1_53 = arith.constant 1 : index
    %c0_54 = arith.constant 0 : index
    %62 = vector.load %arg10[%c2_52, %c1_53, %c0_54] : memref<6x18x128xbf16, #tpu.memory_space<vmem>>, vector<4x16x128xbf16>
    %63 = vector.shape_cast %62 : vector<4x16x128xbf16> to vector<64x128xbf16>
    %c2_55 = arith.constant 2 : index
    %c2_56 = arith.constant 2 : index
    %c0_57 = arith.constant 0 : index
    %64 = vector.load %arg10[%c2_55, %c2_56, %c0_57] : memref<6x18x128xbf16, #tpu.memory_space<vmem>>, vector<4x16x128xbf16>
    %65 = vector.shape_cast %64 : vector<4x16x128xbf16> to vector<64x128xbf16>
    %66 = tpu.concatenate %49, %51, %53, %55, %57, %59, %61, %63, %65 in 1 : vector<64x128xbf16>, vector<64x128xbf16>, vector<64x128xbf16>, vector<64x128xbf16>, vector<64x128xbf16>, vector<64x128xbf16>, vector<64x128xbf16>, vector<64x128xbf16>, vector<64x128xbf16> -> vector<64x1152xbf16>
    %c0_58 = arith.constant 0 : index
    %c0_59 = arith.constant 0 : index
    %67 = vector.load %arg7[%c0_58, %c0_59] : memref<1152x128xbf16, #tpu.memory_space<vmem>>, vector<1152x128xbf16>
    %cst_60 = arith.constant dense<0.000000e+00> : vector<64x128xf32>
    %68 = tpu.matmul %66, %67, %cst_60 {dimension_numbers = #tpu.dot_dimension_numbers<[1], [0], [0], [1], [0, 0, 1, 1], [], []>} : vector<64x1152xbf16>, vector<1152x128xbf16>, vector<64x128xf32> -> vector<64x128xf32>
    %69 = vector.shape_cast %68 : vector<64x128xf32> to vector<1x4x16x128xf32>
    %70 = arith.truncf %69 : vector<1x4x16x128xf32> to vector<1x4x16x128xbf16>
    %c0_61 = arith.constant 0 : index
    %c0_62 = arith.constant 0 : index
    %c0_63 = arith.constant 0 : index
    %c0_64 = arith.constant 0 : index
    %71 = vector.load %arg8[%c0_61, %c0_62, %c0_63, %c0_64] : memref<1x4x16x128xbf16, #tpu.memory_space<vmem>>, vector<1x4x16x128xbf16>
    tpu.vector_store %arg8[%c0_61, %c0_62, %c0_63, %c0_64], %70 {strides = array<i32>} : memref<1x4x16x128xbf16, #tpu.memory_space<vmem>>, vector<1x4x16x128xbf16>,
    %cst_65 = arith.constant dense<0.000000e+00> : vector<128xf32>
    %72 = vector.multi_reduction <add>, %68, %cst_65 [0] : vector<64x128xf32> to vector<128xf32>
    %73 = vector.shape_cast %72 : vector<128xf32> to vector<1x128xf32>
    %74 = arith.mulf %68, %68 : vector<64x128xf32>
    %cst_66 = arith.constant dense<0.000000e+00> : vector<128xf32>
    %75 = vector.multi_reduction <add>, %74, %cst_66 [0] : vector<64x128xf32> to vector<128xf32>
    %76 = vector.shape_cast %75 : vector<128xf32> to vector<1x128xf32>
    %77 = tpu.concatenate %73, %76 in 0 : vector<1x128xf32>, vector<1x128xf32> -> vector<2x128xf32>
    %78 = vector.shape_cast %77 : vector<2x128xf32> to vector<1x1x2x128xf32>
    %c0_67 = arith.constant 0 : index
    %c0_68 = arith.constant 0 : index
    %c0_69 = arith.constant 0 : index
    %c0_70 = arith.constant 0 : index
    %79 = vector.load %arg9[%c0_67, %c0_68, %c0_69, %c0_70] : memref<1x1x2x128xf32, #tpu.memory_space<vmem>>, vector<1x1x2x128xf32>
    tpu.vector_store %arg9[%c0_67, %c0_68, %c0_69, %c0_70], %78 {strides = array<i32>} : memref<1x1x2x128xf32, #tpu.memory_space<vmem>>, vector<1x1x2x128xf32>,
    return
  }
  func.func @transform_0(%arg0: i32, %arg1: i32) -> (i32, i32, i32, i32, i32) {
    %c0_i32 = arith.constant 0 : i32
    %c0_i32_0 = arith.constant 0 : i32
    %c0_i32_1 = arith.constant 0 : i32
    %c0_i32_2 = arith.constant 0 : i32
    return %arg0, %arg1, %c0_i32, %c0_i32_0, %c0_i32_1 : i32, i32, i32, i32, i32
  }
  func.func @transform_1(%arg0: i32, %arg1: i32) -> (i32, i32, i32, i32, i32) {
    %c1_i32 = arith.constant 1 : i32
    %0 = arith.subi %arg1, %c1_i32 : i32
    %c0_i32 = arith.constant 0 : i32
    %1 = arith.maxsi %0, %c0_i32 : i32
    %c3_i32 = arith.constant 3 : i32
    %c0_i32_0 = arith.constant 0 : i32
    %c0_i32_1 = arith.constant 0 : i32
    %c0_i32_2 = arith.constant 0 : i32
    return %arg0, %1, %c3_i32, %c0_i32_0, %c0_i32_1 : i32, i32, i32, i32, i32
  }
  func.func @transform_2(%arg0: i32, %arg1: i32) -> (i32, i32, i32, i32, i32) {
    %c1_i32 = arith.constant 1 : i32
    %0 = arith.addi %arg1, %c1_i32 : i32
    %c3_i32 = arith.constant 3 : i32
    %1 = arith.minsi %0, %c3_i32 : i32
    %c0_i32 = arith.constant 0 : i32
    %c0_i32_0 = arith.constant 0 : i32
    %c0_i32_1 = arith.constant 0 : i32
    %c0_i32_2 = arith.constant 0 : i32
    return %arg0, %1, %c0_i32, %c0_i32_0, %c0_i32_1 : i32, i32, i32, i32, i32
  }
  func.func @transform_3(%arg0: i32, %arg1: i32) -> (i32, i32) {
    %c0_i32 = arith.constant 0 : i32
    %c0_i32_0 = arith.constant 0 : i32
    %c0_i32_1 = arith.constant 0 : i32
    return %c0_i32, %c0_i32_0 : i32, i32
  }
  func.func @transform_4(%arg0: i32, %arg1: i32) -> (i32, i32) {
    %c0_i32 = arith.constant 0 : i32
    %c0_i32_0 = arith.constant 0 : i32
    %c0_i32_1 = arith.constant 0 : i32
    return %c0_i32, %c0_i32_0 : i32, i32
  }
  func.func @transform_5(%arg0: i32, %arg1: i32) -> (i32, i32) {
    %c0_i32 = arith.constant 0 : i32
    %c0_i32_0 = arith.constant 0 : i32
    %c0_i32_1 = arith.constant 0 : i32
    return %c0_i32, %c0_i32_0 : i32, i32
  }
  func.func @transform_6(%arg0: i32, %arg1: i32) -> (i32, i32, i32, i32) {
    %c0_i32 = arith.constant 0 : i32
    %c0_i32_0 = arith.constant 0 : i32
    %c0_i32_1 = arith.constant 0 : i32
    return %arg0, %arg1, %c0_i32, %c0_i32_0 : i32, i32, i32, i32
  }
  func.func @transform_7(%arg0: i32, %arg1: i32) -> (i32, i32, i32, i32) {
    %c0_i32 = arith.constant 0 : i32
    %c0_i32_0 = arith.constant 0 : i32
    %c0_i32_1 = arith.constant 0 : i32
    return %arg0, %arg1, %c0_i32, %c0_i32_0 : i32, i32, i32, i32
  }
}

module attributes {stable_mosaic.version = 11 : i64} {
  func.func @_bn_relu_kernel(%arg0: i32, %arg1: i32, %arg2: memref<1x16x16x128xbf16, #tpu.memory_space<vmem>>, %arg3: memref<1x128xf32, #tpu.memory_space<vmem>>, %arg4: memref<1x128xf32, #tpu.memory_space<vmem>>, %arg5: memref<1x16x16x128xf32, #tpu.memory_space<vmem>>) attributes {dimension_semantics = [#tpu.dimension_semantics<parallel>, #tpu.dimension_semantics<parallel>], iteration_bounds = array<i64: 2, 1>, scalar_prefetch = 0 : i64, scratch_operands = 0 : i64, tpu.core_type = #tpu.core_type<tc>, window_params = [{transform_indices = @transform_0, window_bounds = array<i64: 1, 16, 16, 128>}, {pipeline_mode = #tpu.pipeline_mode<synchronous>, transform_indices = @transform_1, window_bounds = array<i64: 1, 128>}, {pipeline_mode = #tpu.pipeline_mode<synchronous>, transform_indices = @transform_2, window_bounds = array<i64: 1, 128>}, {transform_indices = @transform_3, window_bounds = array<i64: 1, 16, 16, 128>}]} {
    %c0 = arith.constant 0 : index
    %c0_0 = arith.constant 0 : index
    %c0_1 = arith.constant 0 : index
    %c0_2 = arith.constant 0 : index
    %0 = vector.load %arg2[%c0, %c0_0, %c0_1, %c0_2] : memref<1x16x16x128xbf16, #tpu.memory_space<vmem>>, vector<1x16x16x128xbf16>
    %1 = arith.extf %0 : vector<1x16x16x128xbf16> to vector<1x16x16x128xf32>
    %c0_3 = arith.constant 0 : index
    %c0_4 = arith.constant 0 : index
    %2 = vector.load %arg3[%c0_3, %c0_4] : memref<1x128xf32, #tpu.memory_space<vmem>>, vector<1x128xf32>
    %3 = vector.shape_cast %2 : vector<1x128xf32> to vector<1x1x1x128xf32>
    %4 = vector.broadcast %3 : vector<1x1x1x128xf32> to vector<1x16x16x128xf32>
    %5 = arith.mulf %1, %4 : vector<1x16x16x128xf32>
    %c0_5 = arith.constant 0 : index
    %c0_6 = arith.constant 0 : index
    %6 = vector.load %arg4[%c0_5, %c0_6] : memref<1x128xf32, #tpu.memory_space<vmem>>, vector<1x128xf32>
    %7 = vector.shape_cast %6 : vector<1x128xf32> to vector<1x1x1x128xf32>
    %8 = vector.broadcast %7 : vector<1x1x1x128xf32> to vector<1x16x16x128xf32>
    %9 = arith.addf %5, %8 : vector<1x16x16x128xf32>
    %cst = arith.constant 0.000000e+00 : f32
    %10 = vector.broadcast %cst : f32 to vector<1x16x16x128xf32>
    %11 = arith.maximumf %9, %10 : vector<1x16x16x128xf32>
    %c0_7 = arith.constant 0 : index
    %c0_8 = arith.constant 0 : index
    %c0_9 = arith.constant 0 : index
    %c0_10 = arith.constant 0 : index
    %12 = vector.load %arg5[%c0_7, %c0_8, %c0_9, %c0_10] : memref<1x16x16x128xf32, #tpu.memory_space<vmem>>, vector<1x16x16x128xf32>
    tpu.vector_store %arg5[%c0_7, %c0_8, %c0_9, %c0_10], %11 {strides = array<i32>} : memref<1x16x16x128xf32, #tpu.memory_space<vmem>>, vector<1x16x16x128xf32>,
    return
  }
  func.func @transform_0(%arg0: i32, %arg1: i32) -> (i32, i32, i32, i32) {
    %c0_i32 = arith.constant 0 : i32
    %c0_i32_0 = arith.constant 0 : i32
    %c0_i32_1 = arith.constant 0 : i32
    return %arg0, %arg1, %c0_i32, %c0_i32_0 : i32, i32, i32, i32
  }
  func.func @transform_1(%arg0: i32, %arg1: i32) -> (i32, i32) {
    %c0_i32 = arith.constant 0 : i32
    %c0_i32_0 = arith.constant 0 : i32
    %c0_i32_1 = arith.constant 0 : i32
    return %c0_i32, %c0_i32_0 : i32, i32
  }
  func.func @transform_2(%arg0: i32, %arg1: i32) -> (i32, i32) {
    %c0_i32 = arith.constant 0 : i32
    %c0_i32_0 = arith.constant 0 : i32
    %c0_i32_1 = arith.constant 0 : i32
    return %c0_i32, %c0_i32_0 : i32, i32
  }
  func.func @transform_3(%arg0: i32, %arg1: i32) -> (i32, i32, i32, i32) {
    %c0_i32 = arith.constant 0 : i32
    %c0_i32_0 = arith.constant 0 : i32
    %c0_i32_1 = arith.constant 0 : i32
    return %arg0, %arg1, %c0_i32, %c0_i32_0 : i32, i32, i32, i32
  }
}

</mosaic_0001>

<llo_original>
// kernel: conv_block_forward.3
$region0: #{conv_block_forward.3}
  #allocation0 [shape = 'u32[]', space=smem, size = 0x4, offset = 0x4, fixed_abs, tag = 'smem constant byte address 0x4 - core index']
  #allocation1 [shape = 'u32[144,128]{1,0:T(1,128)}', space=vmem, size = 0x12000, scoped, tag = 'internal scratch']
  %s0 = inlined_call_operand.vmem [shape: bf16[2,16,16,36], index: 0, kind: input, shape index: {}]
  %s1 = inlined_call_operand.vmem [shape: bf16[36,128], index: 1, kind: input, shape index: {}]
  %s2 = inlined_call_operand.vmem [shape: bf16[2,16,16,128], index: 2, kind: output, shape index: {0}]
  %s3 = inlined_call_operand.vmem [shape: f32[2,4,2,128], index: 3, kind: output, shape index: {1}]
  %4 = xla_tuple %s2, %s3
  %s5 = sld [smem:[#allocation0]]
  $region49: #{conv_block_forward.3} parent=0
    _
  %s7 = ssub.s32 1, %s5
  %s8 = scalar_select 0, %s7, %s5
  loop: start=0, step=1, limit=10
  $region2: #{conv_block_forward.3} parent=0 // loop_pre_header
    _
  $region3: #{conv_block_forward.3} parent=0 // loop_header
    %s10 = sphi 0, %s14
    %p11 = scmp.ge.s32.totalorder %s10, 10
    %s17 = sphi 0, %s29
    %s18 = sphi 0, %s25
    %s19 = sphi 0, %s17
    %s20 = sphi 0, %s18
    %s21 = sphi 0, %s19
    %s22 = sphi 0, %s20
    %s34 = sphi 0, %s36
    %s37 = sphi 0, %s34
    %s38 = sphi 0, %s37
    %s54 = sphi 0, %s38
    %s58 = sphi 0, %s58
    %s60 = sphi 0, %s58
    %s61 = sphi 0, %s60
    %s75 = sphi 0, %s61
    %s83 = sphi 0, %s85
    %s86 = sphi 0, %s83
    %s87 = sphi 0, %s86
    %s103 = sphi 0, %s87
    %s111 = sphi 0, %s113
    %s114 = sphi 0, %s111
    %s115 = sphi 0, %s114
    %s131 = sphi 0, %s115
  $region4: #{conv_block_forward.3} parent=0 // loop_header_branch
    %13 = sbr.rel (%p11) target = $region8
  $region5: #{conv_block_forward.3} parent=0 // loop_body
    %s15 = ssub.s32 %s10, 1
    %s16 = ssub.s32 %s10, 2
    %s23 = sadd.s32 1, %s18
    %p24 = scmp.ge.s32.totalorder %s23, 4
    %s25 = scalar_select %p24, 0, %s23
    %s26 = sadd.s32 1, %s17
    %s27 = scalar_select %p24, %s26, %s17
    %p28 = scmp.ge.s32.totalorder %s27, 2
    %s29 = scalar_select %p28, 0, %s27
    %s30 = ssub.s32 %s17, %s29
    %s31 = ssub.s32 %s18, %s25
    %s32 = sor.u32 %s30, %s31
    %p33 = scmp.eq.s32.totalorder %s32, 0
    %s35 = sadd.s32 %s34, 1
    %s36 = scalar_select %p33, %s34, %s35
    %p39 = pneg %p33
    %p40 = scmp.eq.s32.totalorder %s10, 7
    %p41 = por %p39, %p40
    %p42 = scmp.ne.s32.totalorder %s34, %s37
    %p43 = scmp.eq.s32.totalorder %s10, 0
    %p44 = por %p42, %p43
    %p45 = scmp.ne.s32.totalorder %s34, %s37
    %p46 = scmp.eq.s32.totalorder %s15, 7
    %p47 = por %p45, %p46
    %p48 = scmp.ne.s32.totalorder %s37, %s38
    %p49 = scmp.eq.s32.totalorder %s15, 0
    %p50 = por %p48, %p49
    %p51 = scmp.ne.s32.totalorder %s37, %s38
    %p52 = scmp.eq.s32.totalorder %s16, 7
    %p53 = por %p51, %p52
    %p55 = scmp.ne.s32.totalorder %s38, %s54
    %p56 = scmp.eq.s32.totalorder %s16, 0
    %p57 = por %p55, %p56
    %s59 = sadd.s32 %s58, 1
    %p62 = scmp.eq.s32.totalorder %s10, 7
    %p63 = scmp.ne.s32.totalorder %s58, %s60
    %p64 = scmp.eq.s32.totalorder %s10, 0
    %p65 = por %p63, %p64
    %p66 = scmp.ne.s32.totalorder %s58, %s60
    %p67 = scmp.eq.s32.totalorder %s15, 7
    %p68 = por %p66, %p67
    %p69 = scmp.ne.s32.totalorder %s60, %s61
    %p70 = scmp.eq.s32.totalorder %s15, 0
    %p71 = por %p69, %p70
    %p72 = scmp.ne.s32.totalorder %s60, %s61
    %p73 = scmp.eq.s32.totalorder %s16, 7
    %p74 = por %p72, %p73
    %p76 = scmp.ne.s32.totalorder %s61, %s75
    %p77 = scmp.eq.s32.totalorder %s16, 0
    %p78 = por %p76, %p77
    %s79 = ssub.s32 %s17, %s29
    %s80 = ssub.s32 %s18, %s25
    %s81 = sor.u32 %s79, %s80
    %p82 = scmp.eq.s32.totalorder %s81, 0
    %s84 = sadd.s32 %s83, 1
    %s85 = scalar_select %p82, %s83, %s84
    %p88 = pneg %p82
    %p89 = scmp.eq.s32.totalorder %s10, 7
    %p90 = por %p88, %p89
    %p91 = scmp.ne.s32.totalorder %s83, %s86
    %p92 = scmp.eq.s32.totalorder %s10, 0
    %p93 = por %p91, %p92
    %p94 = scmp.ne.s32.totalorder %s83, %s86
    %p95 = scmp.eq.s32.totalorder %s15, 7
    %p96 = por %p94, %p95
    %p97 = scmp.ne.s32.totalorder %s86, %s87
    %p98 = scmp.eq.s32.totalorder %s15, 0
    %p99 = por %p97, %p98
    %p100 = scmp.ne.s32.totalorder %s86, %s87
    %p101 = scmp.eq.s32.totalorder %s16, 7
    %p102 = por %p100, %p101
    %p104 = scmp.ne.s32.totalorder %s87, %s103
    %p105 = scmp.eq.s32.totalorder %s16, 0
    %p106 = por %p104, %p105
    %s107 = ssub.s32 %s17, %s29
    %s108 = ssub.s32 %s18, %s25
    %s109 = sor.u32 %s107, %s108
    %p110 = scmp.eq.s32.totalorder %s109, 0
    %s112 = sadd.s32 %s111, 1
    %s113 = scalar_select %p110, %s111, %s112
    %p116 = pneg %p110
    %p117 = scmp.eq.s32.totalorder %s10, 7
    %p118 = por %p116, %p117
    %p119 = scmp.ne.s32.totalorder %s111, %s114
    %p120 = scmp.eq.s32.totalorder %s10, 0
    %p121 = por %p119, %p120
    %p122 = scmp.ne.s32.totalorder %s111, %s114
    %p123 = scmp.eq.s32.totalorder %s15, 7
    %p124 = por %p122, %p123
    %p125 = scmp.ne.s32.totalorder %s114, %s115
    %p126 = scmp.eq.s32.totalorder %s15, 0
    %p127 = por %p125, %p126
    %p128 = scmp.ne.s32.totalorder %s114, %s115
    %p129 = scmp.eq.s32.totalorder %s16, 7
    %p130 = por %p128, %p129
    %p132 = scmp.ne.s32.totalorder %s115, %s131
    %p133 = scmp.eq.s32.totalorder %s16, 0
    %p134 = por %p132, %p133
    %p135 = scmp.le.s32.totalorder 1, %s10
    %p136 = scmp.lt.s32.totalorder %s10, 9
    %p137 = pnand %p135, %p136
    %p138 = pneg %p137
    // Predicated region
    $region9: #{conv_block_forward.3} parent=5 // pred_check
      _
    $region10: #{conv_block_forward.3} parent=5 // pred_check_branch
      %140 = sbr.rel (%p137) target = $region12
    $region11: #{conv_block_forward.3} parent=5 // pred_region
      %s141 = ssub.s32 %s10, 1
      // Predicated region
      $region13: #{conv_block_forward.3} parent=11 // pred_check
        %p142 = pneg %p71
      $region14: #{conv_block_forward.3} parent=11 // pred_check_branch
        %144 = sbr.rel (%p142) target = $region16
      $region15: #{conv_block_forward.3} parent=11 // pred_region
        _
      $region16: #{conv_block_forward.3} parent=11 // pred_fallthru
        _
    $region12: #{conv_block_forward.3} parent=5 // pred_fallthru
      _
    %p145 = scmp.lt.s32.totalorder %s10, 8
    // Predicated region
    $region17: #{conv_block_forward.3} parent=5 // pred_check
      %p146 = pneg %p145
    $region18: #{conv_block_forward.3} parent=5 // pred_check_branch
      %148 = sbr.rel (%p146) target = $region20
    $region19: #{conv_block_forward.3} parent=5 // pred_region
      // Predicated region
      $region21: #{conv_block_forward.3} parent=19 // pred_check
        %p149 = pneg %p44
      $region22: #{conv_block_forward.3} parent=19 // pred_check_branch
        %151 = sbr.rel (%p149) target = $region24
      $region23: #{conv_block_forward.3} parent=19 // pred_region
        %s152 = smul.u32 4, %s18
        %p153 = scmp.lt.s32.totalorder %s17, 1
        %s154 = scalar_select %p153, %s17, 1
        %p155 = scmp.lt.s32.totalorder %s152, 15
        %s156 = scalar_select %p155, %s152, 15
        %s157 = smul.addr %s156, 2
        %s158 = smul.addr %s154, 32
        %s159 = sadd.s32 %s157, %s158
        %s160 = smul.addr %s159, 4
        %s161 = scalar_lea.vmem %s0, %s160
        %s162 = smul.u32 4, %s18
      $region24: #{conv_block_forward.3} parent=19 // pred_fallthru
        _
    $region20: #{conv_block_forward.3} parent=5 // pred_fallthru
      _
    %p163 = scmp.le.s32.totalorder 1, %s10
    %p164 = scmp.lt.s32.totalorder %s10, 9
    %p165 = pnand %p163, %p164
    %p166 = pneg %p165
    // Predicated region
    $region25: #{conv_block_forward.3} parent=5 // pred_check
      _
    $region26: #{conv_block_forward.3} parent=5 // pred_check_branch
      %168 = sbr.rel (%p165) target = $region28
    $region27: #{conv_block_forward.3} parent=5 // pred_region
      %s169 = ssub.s32 %s10, 1
      %s170 = smul.u32 4, %s20
      %p171 = scmp.lt.s32.totalorder %s19, 1
      %s172 = scalar_select %p171, %s19, 1
      %p173 = scmp.lt.s32.totalorder %s170, 15
      %s174 = scalar_select %p173, %s170, 15
      %s175 = smul.addr %s174, 2
      %s176 = smul.addr %s172, 32
      %s177 = sadd.s32 %s175, %s176
      %s178 = smul.addr %s177, 4
      %s179 = scalar_lea.vmem %s0, %s178
      %p180 = pneg %p50
      %p181 = pneg %p47
      %p182 = pneg %p71
      %p183 = pneg %p68
      %p184 = pneg %p99
      %p185 = pneg %p96
      %s186 = smul.u32 4, %s20
      %p187 = scmp.lt.s32.totalorder %s19, 1
      %s188 = scalar_select %p187, %s19, 1
      %p189 = scmp.lt.s32.totalorder %s186, 15
      %s190 = scalar_select %p189, %s186, 15
      %s191 = smul.addr %s190, 2
      %s192 = smul.addr %s188, 32
      %s193 = sadd.s32 %s191, %s192
      %s194 = smul.addr %s193, 4
      %s195 = scalar_lea.vmem %s2, %s194
      %p196 = pneg %p127
      %p197 = pneg %p124
      %p198 = scmp.lt.s32.totalorder %s19, 1
      %s199 = scalar_select %p198, %s19, 1
      %p200 = scmp.lt.s32.totalorder %s20, 3
      %s201 = scalar_select %p200, %s20, 3
      %s202 = smul.addr %s199, 4
      %s203 = sadd.s32 %s201, %s202
      %s204 = smul.addr %s203, 2
      %s205 = scalar_lea.vmem %s3, %s204
      %s206 = smul.u32 4, %s20
      %p207 = scmp.lt.s32.totalorder %s19, 1
      %s208 = scalar_select %p207, %s19, 1
      %p209 = scmp.lt.s32.totalorder %s206, 15
      %s210 = scalar_select %p209, %s206, 15
      %s211 = smul.addr %s210, 2
      %s212 = smul.addr %s208, 32
      %s213 = sadd.s32 %s211, %s212
      %s214 = smul.addr %s213, 4
      %s215 = scalar_lea.vmem %s0, %s214
      %s216 = smul.u32 4, %s20
      %s217 = smul.u32 4, %s20
      %p218 = scmp.lt.s32.totalorder %s19, 1
      %s219 = scalar_select %p218, %s19, 1
      %p220 = scmp.lt.s32.totalorder %s217, 15
      %s221 = scalar_select %p220, %s217, 15
      %s222 = smul.addr %s221, 2
      %s223 = smul.addr %s219, 32
      %s224 = sadd.s32 %s222, %s223
      %s225 = smul.addr %s224, 4
      %s226 = scalar_lea.vmem %s2, %s225
      %s227 = smul.u32 4, %s20
      %p228 = scmp.lt.s32.totalorder %s19, 1
      %s229 = scalar_select %p228, %s19, 1
      %p230 = scmp.lt.s32.totalorder %s20, 3
      %s231 = scalar_select %p230, %s20, 3
      %s232 = smul.addr %s229, 4
      %s233 = sadd.s32 %s231, %s232
      %s234 = smul.addr %s233, 2
      %s235 = scalar_lea.vmem %s3, %s234
      %v237 = vld [vmem:[%s215] sm:$0xf]
      %v238 = vld [vmem:[%s215 + $0x4] sm:$0xf]
      %v239 = vld [vmem:[%s215 + $0x8] sm:$0xf]
      %v240 = vld [vmem:[%s215 + $0xc] sm:$0xf]
      %v241 = vld [vmem:[%s215 + $0x10] sm:$0xf]
      %v242 = vld [vmem:[%s215 + $0x14] sm:$0xf]
      %v243 = vld [vmem:[%s215 + $0x18] sm:$0xf]
      %v244 = vld [vmem:[%s215 + $0x1c] sm:$0xf]
      %v245 = vld [vmem:[%s1] sm:$0xf]
      %v246 = vld [vmem:[%s1 + $0x4] sm:$0xf]
      %v247 = vld [vmem:[%s1 + $0x8] sm:$0xf]
      %v248 = vld [vmem:[%s1 + $0xc] sm:$0xf]
      %v249 = vld [vmem:[%s1 + $0x10] sm:$0x3]
      %v258 = vunpack.c.l.b16 %v237
      %v259 = vunpack.c.l.b16 %v238
      %v260 = vunpack.c.l.b16 %v239
      %v261 = vunpack.c.l.b16 %v240
      %v262 = vunpack.c.l.b16 %v241
      %v263 = vunpack.c.l.b16 %v242
      %v264 = vunpack.c.l.b16 %v243
      %v265 = vunpack.c.l.b16 %v244
      %v266 = vpack.c.b16 %v259, %v258
      %v267 = vpack.c.b16 %v261, %v260
      %v268 = vpack.c.b16 %v263, %v262
      %v269 = vpack.c.b16 %v265, %v264
      %v275 = vunpack.c.l.b16 %v245
      %v276 = vunpack.c.l.b16 %v246
      %v277 = vunpack.c.l.b16 %v247
      %v278 = vunpack.c.l.b16 %v248
      %v279 = vunpack.c.l.b16 %v249
      %v280 = vpack.c.b16 %v276, %v275
      %v281 = vpack.c.b16 %v278, %v277
      %v282 = vpack.c.b16 %v279, %v279
      %vm285 = vcmask 293888
      %v287 = vsel %vm285, %v266, 0
      %v290 = vsel %vm285, %v267, 0
      %v293 = vsel %vm285, %v268, 0
      %v296 = vsel %vm285, %v269, 0
      %vm298 = vcmask 1041408
      %v300 = vsel %vm298, %v282, 0
      %302 = vmatprep.subr.bf16.mxu0 0
      %303 = vmatpush1.bf16.msra.mxu0 %v280
      %304 = vmatprep.subr.bf16.mxu0 0
      %305 = vmatpush1.bf16.msra.mxu0 %v281
      %306 = vmatprep.subr.bf16.mxu0 0
      %307 = vmatpush1.bf16.msra.mxu0 %v300
      %308 = vmatprep.subr.bf16.mxu0 0
      %309 = vmatpush1.bf16.msra.mxu0 0
      %310 = vmatprep.subr.bf16.mxu0 0
      %311 = vmatpush1.bf16.msra.mxu0 0
      %312 = vmatprep.subr.bf16.mxu0 0
      %313 = vmatpush1.bf16.msra.mxu0 0
      %314 = vmatprep.subr.bf16.mxu0 0
      %315 = vmatpush1.bf16.msra.mxu0 0
      %316 = vmatprep.subr.bf16.mxu0 0
      %317 = vmatpush1.bf16.msra.mxu0 0
      %318 = vmatprep.subr.bf16.mxu0 0
      %319 = vmatpush1.bf16.msra.mxu0 0
      %320 = vmatprep.subr.bf16.mxu0 0
      %321 = vmatpush1.bf16.msra.mxu0 0
      %322 = vmatprep.subr.bf16.mxu0 0
      %323 = vmatpush1.bf16.msra.mxu0 0
      %324 = vmatprep.subr.bf16.mxu0 0
      %325 = vmatpush1.bf16.msra.mxu0 0
      %326 = vmatprep.subr.bf16.mxu0 0
      %327 = vmatpush1.bf16.msra.mxu0 0
      %328 = vmatprep.subr.bf16.mxu0 0
      %329 = vmatpush1.bf16.msra.mxu0 0
      %330 = vmatprep.subr.bf16.mxu0 0
      %331 = vmatpush1.bf16.msra.mxu0 0
      %332 = vmatprep.subr.bf16.mxu0 0
      %333 = vmatpush1.bf16.msra.mxu0 0
      %334 = vmatprep.mubr.bf16.mxu0 0
      %335 = vmatmul.mubr.bf16.gmra.mrb[0].mxu0 %v287
      %v336 = vpop.f32.mrb[0].mxu0
      %v337 = vadd.f32 0.0, %v336
      %v338 = vpop.f32.mrb[0].mxu0
      %v339 = vpop.f32.mrb[0].mxu0
      %v340 = vadd.f32 0.0, %v339
      %v341 = vpop.f32.mrb[0].mxu0
      %342 = vmatprep.mubr.bf16.mxu0 0
      %343 = vmatmul.mubr.bf16.gmra.mrb[0].mxu0 %v290
      %v344 = vpop.f32.mrb[0].mxu0
      %v345 = vadd.f32 0.0, %v344
      %v346 = vpop.f32.mrb[0].mxu0
      %v347 = vpop.f32.mrb[0].mxu0
      %v348 = vadd.f32 0.0, %v347
      %v349 = vpop.f32.mrb[0].mxu0
      %350 = vmatprep.mubr.bf16.mxu0 0
      %351 = vmatmul.mubr.bf16.gmra.mrb[0].mxu0 %v293
      %v352 = vpop.f32.mrb[0].mxu0
      %v353 = vadd.f32 0.0, %v352
      %v354 = vpop.f32.mrb[0].mxu0
      %v355 = vpop.f32.mrb[0].mxu0
      %v356 = vadd.f32 0.0, %v355
      %v357 = vpop.f32.mrb[0].mxu0
      %358 = vmatprep.mubr.bf16.mxu0 0
      %359 = vmatmul.mubr.bf16.gmra.mrb[0].mxu0 %v296
      %v360 = vpop.f32.mrb[0].mxu0
      %v361 = vadd.f32 0.0, %v360
      %v362 = vpop.f32.mrb[0].mxu0
      %v363 = vpop.f32.mrb[0].mxu0
      %v364 = vadd.f32 0.0, %v363
      %v365 = vpop.f32.mrb[0].mxu0
      %366 = vdwg.mxu0
      %v367 = vpack.c.bf16 %v340, %v337
      %v368 = vpack.c.bf16 %v348, %v345
      %v369 = vpack.c.bf16 %v356, %v353
      %v370 = vpack.c.bf16 %v364, %v361
      %v375 = vunpack.c.l.b16 %v367
      %v376 = vunpack.c.h.b16 %v367
      %v377 = vunpack.c.l.b16 %v368
      %v378 = vunpack.c.h.b16 %v368
      %v379 = vunpack.c.l.b16 %v369
      %v380 = vunpack.c.h.b16 %v369
      %v381 = vunpack.c.l.b16 %v370
      %v382 = vunpack.c.h.b16 %v370
      %v383 = vpack.c.b16 %v375, %v375
      %v384 = vpack.c.b16 %v376, %v376
      %v385 = vpack.c.b16 %v377, %v377
      %v386 = vpack.c.b16 %v378, %v378
      %v387 = vpack.c.b16 %v379, %v379
      %v388 = vpack.c.b16 %v380, %v380
      %v389 = vpack.c.b16 %v381, %v381
      %v390 = vpack.c.b16 %v382, %v382
      %399 = vst [vmem:[%s226] sm:$0xf] %v383
      %400 = vst [vmem:[%s226 + $0x4] sm:$0xf] %v384
      %401 = vst [vmem:[%s226 + $0x8] sm:$0xf] %v385
      %402 = vst [vmem:[%s226 + $0xc] sm:$0xf] %v386
      %403 = vst [vmem:[%s226 + $0x10] sm:$0xf] %v387
      %404 = vst [vmem:[%s226 + $0x14] sm:$0xf] %v388
      %405 = vst [vmem:[%s226 + $0x18] sm:$0xf] %v389
      %406 = vst [vmem:[%s226 + $0x1c] sm:$0xf] %v390
      %v407 = vadd.f32 %v337, %v340
      %v408 = vadd.f32 %v407, %v345
      %v409 = vadd.f32 %v408, %v348
      %v410 = vadd.f32 %v409, %v353
      %v411 = vadd.f32 %v410, %v356
      %v412 = vadd.f32 %v411, %v361
      %v413 = vadd.f32 %v412, %v364
      %v414 = vrot.slane %v413, 4
      %v415 = vadd.f32 %v413, %v414
      %v416 = vrot.slane %v415, 2
      %v417 = vadd.f32 %v415, %v416
      %v418 = vrot.slane %v417, 1
      %v419 = vadd.f32 %v417, %v418
      %v420 = vmul.f32 %v337, %v337
      %v421 = vmul.f32 %v340, %v340
      %v422 = vmul.f32 %v345, %v345
      %v423 = vmul.f32 %v348, %v348
      %v424 = vmul.f32 %v353, %v353
      %v425 = vmul.f32 %v356, %v356
      %v426 = vmul.f32 %v361, %v361
      %v427 = vmul.f32 %v364, %v364
      %v428 = vadd.f32 %v420, %v421
      %v429 = vadd.f32 %v428, %v422
      %v430 = vadd.f32 %v429, %v423
      %v431 = vadd.f32 %v430, %v424
      %v432 = vadd.f32 %v431, %v425
      %v433 = vadd.f32 %v432, %v426
      %v434 = vadd.f32 %v433, %v427
      %v435 = vrot.slane %v434, 4
      %v436 = vadd.f32 %v434, %v435
      %v437 = vrot.slane %v436, 2
      %v438 = vadd.f32 %v436, %v437
      %v439 = vrot.slane %v438, 1
      %v440 = vadd.f32 %v438, %v439
      %vm441 = vcmask 1040384
      %v442 = vsel %vm441, %v419, %v440
      %443 = vst [vmem:[%s235] sm:$0x3] %v442
      %s444 = smul.u32 4, %s20
      %p445 = scmp.lt.s32.totalorder %s19, 1
      %s446 = scalar_select %p445, %s19, 1
      %p447 = scmp.lt.s32.totalorder %s444, 15
      %s448 = scalar_select %p447, %s444, 15
      %s449 = smul.addr %s448, 2
      %s450 = smul.addr %s446, 32
      %s451 = sadd.s32 %s449, %s450
      %s452 = smul.addr %s451, 4
      %s453 = scalar_lea.vmem %s2, %s452
      %p454 = scmp.lt.s32.totalorder %s19, 1
      %s455 = scalar_select %p454, %s19, 1
      %p456 = scmp.lt.s32.totalorder %s20, 3
      %s457 = scalar_select %p456, %s20, 3
      %s458 = smul.addr %s455, 4
      %s459 = sadd.s32 %s457, %s458
      %s460 = smul.addr %s459, 2
      %s461 = scalar_lea.vmem %s3, %s460
      // Predicated region
      $region29: #{conv_block_forward.3} parent=27 // pred_check
        %p462 = pneg %p96
      $region30: #{conv_block_forward.3} parent=27 // pred_check_branch
        %464 = sbr.rel (%p462) target = $region32
      $region31: #{conv_block_forward.3} parent=27 // pred_region
        %s465 = smul.u32 4, %s20
      $region32: #{conv_block_forward.3} parent=27 // pred_fallthru
        _
      // Predicated region
      $region33: #{conv_block_forward.3} parent=27 // pred_check
        %p466 = pneg %p124
      $region34: #{conv_block_forward.3} parent=27 // pred_check_branch
        %468 = sbr.rel (%p466) target = $region36
      $region35: #{conv_block_forward.3} parent=27 // pred_region
        _
      $region36: #{conv_block_forward.3} parent=27 // pred_fallthru
        _
    $region28: #{conv_block_forward.3} parent=5 // pred_fallthru
      _
    %p469 = scmp.le.s32.totalorder 2, %s10
    // Predicated region
    $region37: #{conv_block_forward.3} parent=5 // pred_check
      %p470 = pneg %p469
    $region38: #{conv_block_forward.3} parent=5 // pred_check_branch
      %472 = sbr.rel (%p470) target = $region40
    $region39: #{conv_block_forward.3} parent=5 // pred_region
      %s473 = ssub.s32 %s10, 2
      // Predicated region
      $region41: #{conv_block_forward.3} parent=39 // pred_check
        %p474 = pneg %p102
      $region42: #{conv_block_forward.3} parent=39 // pred_check_branch
        %476 = sbr.rel (%p474) target = $region44
      $region43: #{conv_block_forward.3} parent=39 // pred_region
        %s477 = smul.u32 4, %s22
        %p478 = scmp.lt.s32.totalorder %s21, 1
        %s479 = scalar_select %p478, %s21, 1
        %p480 = scmp.lt.s32.totalorder %s477, 15
        %s481 = scalar_select %p480, %s477, 15
        %s482 = smul.addr %s481, 2
        %s483 = smul.addr %s479, 32
        %s484 = sadd.s32 %s482, %s483
        %s485 = smul.addr %s484, 4
        %s486 = scalar_lea.vmem %s2, %s485
      $region44: #{conv_block_forward.3} parent=39 // pred_fallthru
        _
      // Predicated region
      $region45: #{conv_block_forward.3} parent=39 // pred_check
        %p487 = pneg %p130
      $region46: #{conv_block_forward.3} parent=39 // pred_check_branch
        %489 = sbr.rel (%p487) target = $region48
      $region47: #{conv_block_forward.3} parent=39 // pred_region
        %p490 = scmp.lt.s32.totalorder %s21, 1
        %s491 = scalar_select %p490, %s21, 1
        %p492 = scmp.lt.s32.totalorder %s22, 3
        %s493 = scalar_select %p492, %s22, 3
        %s494 = smul.addr %s491, 4
        %s495 = sadd.s32 %s493, %s494
        %s496 = smul.addr %s495, 2
        %s497 = scalar_lea.vmem %s3, %s496
      $region48: #{conv_block_forward.3} parent=39 // pred_fallthru
        _
    $region40: #{conv_block_forward.3} parent=5 // pred_fallthru
      _
  $region6: #{conv_block_forward.3} parent=0 // loop_footer
    %s14 = sadd.s32 1, %s10
  $region7: #{conv_block_forward.3} parent=0 // loop_footer_branch
    %9 = sbr.rel target = $region3
  $region8: #{conv_block_forward.3} parent=0 // loop_exit
    _

// kernel: conv_block_forward.5
$region0: #{conv_block_forward.5}
  #allocation0 [shape = 'u32[]', space=smem, size = 0x4, offset = 0x4, fixed_abs, tag = 'smem constant byte address 0x4 - core index']
  #allocation1 [shape = 'u32[144,128]{1,0:T(1,128)}', space=vmem, size = 0x12000, scoped, tag = 'internal scratch']
  %s0 = inlined_call_operand.vmem [shape: bf16[2,16,16,128], index: 0, kind: input, shape index: {}]
  %s1 = inlined_call_operand.vmem [shape: f32[1,128], index: 1, kind: input, shape index: {}]
  %s2 = inlined_call_operand.vmem [shape: f32[1,128], index: 2, kind: input, shape index: {}]
  %s3 = inlined_call_operand.vmem [shape: f32[2,16,16,128], index: 3, kind: output, shape index: {}]
  %s4 = sld [smem:[#allocation0]]
  $region45: #{conv_block_forward.5} parent=0
    _
  %s6 = ssub.s32 1, %s4
  %s7 = scalar_select 0, %s6, %s4
  loop: start=0, step=1, limit=4
  $region2: #{conv_block_forward.5} parent=0 // loop_pre_header
    _
  $region3: #{conv_block_forward.5} parent=0 // loop_header
    %s9 = sphi 0, %s13
    %p10 = scmp.ge.s32.totalorder %s9, 4
    %s16 = sphi 0, %s28
    %s17 = sphi 0, %s24
    %s18 = sphi 0, %s16
    %s19 = sphi 0, %s17
    %s20 = sphi 0, %s18
    %s21 = sphi 0, %s19
    %s33 = sphi 0, %s35
    %s36 = sphi 0, %s33
    %s37 = sphi 0, %s36
    %s53 = sphi 0, %s37
    %s57 = sphi 0, %s57
    %s59 = sphi 0, %s57
    %s60 = sphi 0, %s59
    %s74 = sphi 0, %s60
    %s78 = sphi 0, %s78
    %s80 = sphi 0, %s78
    %s81 = sphi 0, %s80
    %s95 = sphi 0, %s81
    %s103 = sphi 0, %s105
    %s106 = sphi 0, %s103
    %s107 = sphi 0, %s106
    %s123 = sphi 0, %s107
  $region4: #{conv_block_forward.5} parent=0 // loop_header_branch
    %12 = sbr.rel (%p10) target = $region8
  $region5: #{conv_block_forward.5} parent=0 // loop_body
    %s14 = ssub.s32 %s9, 1
    %s15 = ssub.s32 %s9, 2
    %s22 = sadd.s32 1, %s17
    %p23 = scmp.ge.s32.totalorder %s22, 1
    %s24 = scalar_select %p23, 0, %s22
    %s25 = sadd.s32 1, %s16
    %s26 = scalar_select %p23, %s25, %s16
    %p27 = scmp.ge.s32.totalorder %s26, 2
    %s28 = scalar_select %p27, 0, %s26
    %s29 = ssub.s32 %s16, %s28
    %s30 = ssub.s32 %s17, %s24
    %s31 = sor.u32 %s29, %s30
    %p32 = scmp.eq.s32.totalorder %s31, 0
    %s34 = sadd.s32 %s33, 1
    %s35 = scalar_select %p32, %s33, %s34
    %p38 = pneg %p32
    %p39 = scmp.eq.s32.totalorder %s9, 1
    %p40 = por %p38, %p39
    %p41 = scmp.ne.s32.totalorder %s33, %s36
    %p42 = scmp.eq.s32.totalorder %s9, 0
    %p43 = por %p41, %p42
    %p44 = scmp.ne.s32.totalorder %s33, %s36
    %p45 = scmp.eq.s32.totalorder %s14, 1
    %p46 = por %p44, %p45
    %p47 = scmp.ne.s32.totalorder %s36, %s37
    %p48 = scmp.eq.s32.totalorder %s14, 0
    %p49 = por %p47, %p48
    %p50 = scmp.ne.s32.totalorder %s36, %s37
    %p51 = scmp.eq.s32.totalorder %s15, 1
    %p52 = por %p50, %p51
    %p54 = scmp.ne.s32.totalorder %s37, %s53
    %p55 = scmp.eq.s32.totalorder %s15, 0
    %p56 = por %p54, %p55
    %s58 = sadd.s32 %s57, 1
    %p61 = scmp.eq.s32.totalorder %s9, 1
    %p62 = scmp.ne.s32.totalorder %s57, %s59
    %p63 = scmp.eq.s32.totalorder %s9, 0
    %p64 = por %p62, %p63
    %p65 = scmp.ne.s32.totalorder %s57, %s59
    %p66 = scmp.eq.s32.totalorder %s14, 1
    %p67 = por %p65, %p66
    %p68 = scmp.ne.s32.totalorder %s59, %s60
    %p69 = scmp.eq.s32.totalorder %s14, 0
    %p70 = por %p68, %p69
    %p71 = scmp.ne.s32.totalorder %s59, %s60
    %p72 = scmp.eq.s32.totalorder %s15, 1
    %p73 = por %p71, %p72
    %p75 = scmp.ne.s32.totalorder %s60, %s74
    %p76 = scmp.eq.s32.totalorder %s15, 0
    %p77 = por %p75, %p76
    %s79 = sadd.s32 %s78, 1
    %p82 = scmp.eq.s32.totalorder %s9, 1
    %p83 = scmp.ne.s32.totalorder %s78, %s80
    %p84 = scmp.eq.s32.totalorder %s9, 0
    %p85 = por %p83, %p84
    %p86 = scmp.ne.s32.totalorder %s78, %s80
    %p87 = scmp.eq.s32.totalorder %s14, 1
    %p88 = por %p86, %p87
    %p89 = scmp.ne.s32.totalorder %s80, %s81
    %p90 = scmp.eq.s32.totalorder %s14, 0
    %p91 = por %p89, %p90
    %p92 = scmp.ne.s32.totalorder %s80, %s81
    %p93 = scmp.eq.s32.totalorder %s15, 1
    %p94 = por %p92, %p93
    %p96 = scmp.ne.s32.totalorder %s81, %s95
    %p97 = scmp.eq.s32.totalorder %s15, 0
    %p98 = por %p96, %p97
    %s99 = ssub.s32 %s16, %s28
    %s100 = ssub.s32 %s17, %s24
    %s101 = sor.u32 %s99, %s100
    %p102 = scmp.eq.s32.totalorder %s101, 0
    %s104 = sadd.s32 %s103, 1
    %s105 = scalar_select %p102, %s103, %s104
    %p108 = pneg %p102
    %p109 = scmp.eq.s32.totalorder %s9, 1
    %p110 = por %p108, %p109
    %p111 = scmp.ne.s32.totalorder %s103, %s106
    %p112 = scmp.eq.s32.totalorder %s9, 0
    %p113 = por %p111, %p112
    %p114 = scmp.ne.s32.totalorder %s103, %s106
    %p115 = scmp.eq.s32.totalorder %s14, 1
    %p116 = por %p114, %p115
    %p117 = scmp.ne.s32.totalorder %s106, %s107
    %p118 = scmp.eq.s32.totalorder %s14, 0
    %p119 = por %p117, %p118
    %p120 = scmp.ne.s32.totalorder %s106, %s107
    %p121 = scmp.eq.s32.totalorder %s15, 1
    %p122 = por %p120, %p121
    %p124 = scmp.ne.s32.totalorder %s107, %s123
    %p125 = scmp.eq.s32.totalorder %s15, 0
    %p126 = por %p124, %p125
    %p127 = scmp.le.s32.totalorder 1, %s9
    %p128 = scmp.lt.s32.totalorder %s9, 3
    %p129 = pnand %p127, %p128
    %p130 = pneg %p129
    // Predicated region
    $region9: #{conv_block_forward.5} parent=5 // pred_check
      _
    $region10: #{conv_block_forward.5} parent=5 // pred_check_branch
      %132 = sbr.rel (%p129) target = $region12
    $region11: #{conv_block_forward.5} parent=5 // pred_region
      %s133 = ssub.s32 %s9, 1
      // Predicated region
      $region13: #{conv_block_forward.5} parent=11 // pred_check
        %p134 = pneg %p70
      $region14: #{conv_block_forward.5} parent=11 // pred_check_branch
        %136 = sbr.rel (%p134) target = $region16
      $region15: #{conv_block_forward.5} parent=11 // pred_region
        _
      $region16: #{conv_block_forward.5} parent=11 // pred_fallthru
        _
      // Predicated region
      $region17: #{conv_block_forward.5} parent=11 // pred_check
        %p137 = pneg %p91
      $region18: #{conv_block_forward.5} parent=11 // pred_check_branch
        %139 = sbr.rel (%p137) target = $region20
      $region19: #{conv_block_forward.5} parent=11 // pred_region
        _
      $region20: #{conv_block_forward.5} parent=11 // pred_fallthru
        _
    $region12: #{conv_block_forward.5} parent=5 // pred_fallthru
      _
    %p140 = scmp.lt.s32.totalorder %s9, 2
    // Predicated region
    $region21: #{conv_block_forward.5} parent=5 // pred_check
      %p141 = pneg %p140
    $region22: #{conv_block_forward.5} parent=5 // pred_check_branch
      %143 = sbr.rel (%p141) target = $region24
    $region23: #{conv_block_forward.5} parent=5 // pred_region
      // Predicated region
      $region25: #{conv_block_forward.5} parent=23 // pred_check
        %p144 = pneg %p43
      $region26: #{conv_block_forward.5} parent=23 // pred_check_branch
        %146 = sbr.rel (%p144) target = $region28
      $region27: #{conv_block_forward.5} parent=23 // pred_region
        %s147 = smul.u32 16, %s17
        %p148 = scmp.lt.s32.totalorder %s16, 1
        %s149 = scalar_select %p148, %s16, 1
        %p150 = scmp.lt.s32.totalorder %s147, 15
        %s151 = scalar_select %p150, %s147, 15
        %s152 = smul.addr %s151, 2
        %s153 = smul.addr %s149, 32
        %s154 = sadd.s32 %s152, %s153
        %s155 = smul.addr %s154, 4
        %s156 = scalar_lea.vmem %s0, %s155
        %s157 = smul.u32 16, %s17
      $region28: #{conv_block_forward.5} parent=23 // pred_fallthru
        _
    $region24: #{conv_block_forward.5} parent=5 // pred_fallthru
      _
    %p158 = scmp.le.s32.totalorder 1, %s9
    %p159 = scmp.lt.s32.totalorder %s9, 3
    %p160 = pnand %p158, %p159
    %p161 = pneg %p160
    // Predicated region
    $region29: #{conv_block_forward.5} parent=5 // pred_check
      _
    $region30: #{conv_block_forward.5} parent=5 // pred_check_branch
      %163 = sbr.rel (%p160) target = $region32
    $region31: #{conv_block_forward.5} parent=5 // pred_region
      %s164 = ssub.s32 %s9, 1
      %s165 = smul.u32 16, %s19
      %p166 = scmp.lt.s32.totalorder %s18, 1
      %s167 = scalar_select %p166, %s18, 1
      %p168 = scmp.lt.s32.totalorder %s165, 15
      %s169 = scalar_select %p168, %s165, 15
      %s170 = smul.addr %s169, 2
      %s171 = smul.addr %s167, 32
      %s172 = sadd.s32 %s170, %s171
      %s173 = smul.addr %s172, 4
      %s174 = scalar_lea.vmem %s0, %s173
      %p175 = pneg %p49
      %p176 = pneg %p46
      %p177 = pneg %p70
      %p178 = pneg %p67
      %p179 = pneg %p91
      %p180 = pneg %p88
      %p181 = pneg %p119
      %p182 = pneg %p116
      %s183 = smul.u32 16, %s19
      %p184 = scmp.lt.s32.totalorder %s18, 1
      %s185 = scalar_select %p184, %s18, 1
      %p186 = scmp.lt.s32.totalorder %s183, 15
      %s187 = scalar_select %p186, %s183, 15
      %s188 = smul.addr %s187, 2
      %s189 = smul.addr %s185, 32
      %s190 = sadd.s32 %s188, %s189
      %s191 = smul.addr %s190, 8
      %s192 = scalar_lea.vmem %s3, %s191
      %s193 = smul.u32 16, %s19
      %p194 = scmp.lt.s32.totalorder %s18, 1
      %s195 = scalar_select %p194, %s18, 1
      %p196 = scmp.lt.s32.totalorder %s193, 15
      %s197 = scalar_select %p196, %s193, 15
      %s198 = smul.addr %s197, 2
      %s199 = smul.addr %s195, 32
      %s200 = sadd.s32 %s198, %s199
      %s201 = smul.addr %s200, 4
      %s202 = scalar_lea.vmem %s0, %s201
      %s203 = smul.u32 16, %s19
      %s204 = smul.u32 16, %s19
      %p205 = scmp.lt.s32.totalorder %s18, 1
      %s206 = scalar_select %p205, %s18, 1
      %p207 = scmp.lt.s32.totalorder %s204, 15
      %s208 = scalar_select %p207, %s204, 15
      %s209 = smul.addr %s208, 2
      %s210 = smul.addr %s206, 32
      %s211 = sadd.s32 %s209, %s210
      %s212 = smul.addr %s211, 8
      %s213 = scalar_lea.vmem %s3, %s212
      %s214 = smul.u32 16, %s19
      %v215 = vld [vmem:[%s202] sm:$0xf]
      %v216 = vld [vmem:[%s202 + $0x4] sm:$0xf]
      %v217 = vld [vmem:[%s202 + $0x8] sm:$0xf]
      %v218 = vld [vmem:[%s202 + $0xc] sm:$0xf]
      %v219 = vld [vmem:[%s202 + $0x10] sm:$0xf]
      %v220 = vld [vmem:[%s202 + $0x14] sm:$0xf]
      %v221 = vld [vmem:[%s202 + $0x18] sm:$0xf]
      %v222 = vld [vmem:[%s202 + $0x1c] sm:$0xf]
      %v223 = vld [vmem:[%s202 + $0x20] sm:$0xf]
      %v224 = vld [vmem:[%s202 + $0x24] sm:$0xf]
      %v225 = vld [vmem:[%s202 + $0x28] sm:$0xf]
      %v226 = vld [vmem:[%s202 + $0x2c] sm:$0xf]
      %v227 = vld [vmem:[%s202 + $0x30] sm:$0xf]
      %v228 = vld [vmem:[%s202 + $0x34] sm:$0xf]
      %v229 = vld [vmem:[%s202 + $0x38] sm:$0xf]
      %v230 = vld [vmem:[%s202 + $0x3c] sm:$0xf]
      %v231 = vld [vmem:[%s202 + $0x40] sm:$0xf]
      %v232 = vld [vmem:[%s202 + $0x44] sm:$0xf]
      %v233 = vld [vmem:[%s202 + $0x48] sm:$0xf]
      %v234 = vld [vmem:[%s202 + $0x4c] sm:$0xf]
      %v235 = vld [vmem:[%s202 + $0x50] sm:$0xf]
      %v236 = vld [vmem:[%s202 + $0x54] sm:$0xf]
      %v237 = vld [vmem:[%s202 + $0x58] sm:$0xf]
      %v238 = vld [vmem:[%s202 + $0x5c] sm:$0xf]
      %v239 = vld [vmem:[%s202 + $0x60] sm:$0xf]
      %v240 = vld [vmem:[%s202 + $0x64] sm:$0xf]
      %v241 = vld [vmem:[%s202 + $0x68] sm:$0xf]
      %v242 = vld [vmem:[%s202 + $0x6c] sm:$0xf]
      %v243 = vld [vmem:[%s202 + $0x70] sm:$0xf]
      %v244 = vld [vmem:[%s202 + $0x74] sm:$0xf]
      %v245 = vld [vmem:[%s202 + $0x78] sm:$0xf]
      %v246 = vld [vmem:[%s202 + $0x7c] sm:$0xf]
      %v247 = vunpack.c.l.bf16 %v215
      %v248 = vunpack.c.l.bf16 %v216
      %v249 = vunpack.c.l.bf16 %v217
      %v250 = vunpack.c.l.bf16 %v218
      %v251 = vunpack.c.l.bf16 %v219
      %v252 = vunpack.c.l.bf16 %v220
      %v253 = vunpack.c.l.bf16 %v221
      %v254 = vunpack.c.l.bf16 %v222
      %v255 = vunpack.c.l.bf16 %v223
      %v256 = vunpack.c.l.bf16 %v224
      %v257 = vunpack.c.l.bf16 %v225
      %v258 = vunpack.c.l.bf16 %v226
      %v259 = vunpack.c.l.bf16 %v227
      %v260 = vunpack.c.l.bf16 %v228
      %v261 = vunpack.c.l.bf16 %v229
      %v262 = vunpack.c.l.bf16 %v230
      %v263 = vunpack.c.l.bf16 %v231
      %v264 = vunpack.c.l.bf16 %v232
      %v265 = vunpack.c.l.bf16 %v233
      %v266 = vunpack.c.l.bf16 %v234
      %v267 = vunpack.c.l.bf16 %v235
      %v268 = vunpack.c.l.bf16 %v236
      %v269 = vunpack.c.l.bf16 %v237
      %v270 = vunpack.c.l.bf16 %v238
      %v271 = vunpack.c.l.bf16 %v239
      %v272 = vunpack.c.l.bf16 %v240
      %v273 = vunpack.c.l.bf16 %v241
      %v274 = vunpack.c.l.bf16 %v242
      %v275 = vunpack.c.l.bf16 %v243
      %v276 = vunpack.c.l.bf16 %v244
      %v277 = vunpack.c.l.bf16 %v245
      %v278 = vunpack.c.l.bf16 %v246
      %v279 = vld [vmem:[%s1] sm:$0x1]
      %v281 = vlaneseq
      %v282 = vshrl.u32 %v281, 7
      %v283 = vsub.s32 0, %v282
      %v284 = vrot.slane %v279, %v283
      %v286 = vmul.f32 %v247, %v284
      %v287 = vmul.f32 %v248, %v284
      %v288 = vmul.f32 %v249, %v284
      %v289 = vmul.f32 %v250, %v284
      %v290 = vmul.f32 %v251, %v284
      %v291 = vmul.f32 %v252, %v284
      %v292 = vmul.f32 %v253, %v284
      %v293 = vmul.f32 %v254, %v284
      %v294 = vmul.f32 %v255, %v284
      %v295 = vmul.f32 %v256, %v284
      %v296 = vmul.f32 %v257, %v284
      %v297 = vmul.f32 %v258, %v284
      %v298 = vmul.f32 %v259, %v284
      %v299 = vmul.f32 %v260, %v284
      %v300 = vmul.f32 %v261, %v284
      %v301 = vmul.f32 %v262, %v284
      %v302 = vmul.f32 %v263, %v284
      %v303 = vmul.f32 %v264, %v284
      %v304 = vmul.f32 %v265, %v284
      %v305 = vmul.f32 %v266, %v284
      %v306 = vmul.f32 %v267, %v284
      %v307 = vmul.f32 %v268, %v284
      %v308 = vmul.f32 %v269, %v284
      %v309 = vmul.f32 %v270, %v284
      %v310 = vmul.f32 %v271, %v284
      %v311 = vmul.f32 %v272, %v284
      %v312 = vmul.f32 %v273, %v284
      %v313 = vmul.f32 %v274, %v284
      %v314 = vmul.f32 %v275, %v284
      %v315 = vmul.f32 %v276, %v284
      %v316 = vmul.f32 %v277, %v284
      %v317 = vmul.f32 %v278, %v284
      %v318 = vld [vmem:[%s2] sm:$0x1]
      %v320 = vlaneseq
      %v321 = vshrl.u32 %v320, 7
      %v322 = vsub.s32 0, %v321
      %v323 = vrot.slane %v318, %v322
      %v325 = vadd.f32 %v286, %v323
      %v326 = vadd.f32 %v287, %v323
      %v327 = vadd.f32 %v288, %v323
      %v328 = vadd.f32 %v289, %v323
      %v329 = vadd.f32 %v290, %v323
      %v330 = vadd.f32 %v291, %v323
      %v331 = vadd.f32 %v292, %v323
      %v332 = vadd.f32 %v293, %v323
      %v333 = vadd.f32 %v294, %v323
      %v334 = vadd.f32 %v295, %v323
      %v335 = vadd.f32 %v296, %v323
      %v336 = vadd.f32 %v297, %v323
      %v337 = vadd.f32 %v298, %v323
      %v338 = vadd.f32 %v299, %v323
      %v339 = vadd.f32 %v300, %v323
      %v340 = vadd.f32 %v301, %v323
      %v341 = vadd.f32 %v302, %v323
      %v342 = vadd.f32 %v303, %v323
      %v343 = vadd.f32 %v304, %v323
      %v344 = vadd.f32 %v305, %v323
      %v345 = vadd.f32 %v306, %v323
      %v346 = vadd.f32 %v307, %v323
      %v347 = vadd.f32 %v308, %v323
      %v348 = vadd.f32 %v309, %v323
      %v349 = vadd.f32 %v310, %v323
      %v350 = vadd.f32 %v311, %v323
      %v351 = vadd.f32 %v312, %v323
      %v352 = vadd.f32 %v313, %v323
      %v353 = vadd.f32 %v314, %v323
      %v354 = vadd.f32 %v315, %v323
      %v355 = vadd.f32 %v316, %v323
      %v356 = vadd.f32 %v317, %v323
      %v357 = vmax.f32 %v325, 0.0
      %v358 = vmax.f32 %v326, 0.0
      %v359 = vmax.f32 %v327, 0.0
      %v360 = vmax.f32 %v328, 0.0
      %v361 = vmax.f32 %v329, 0.0
      %v362 = vmax.f32 %v330, 0.0
      %v363 = vmax.f32 %v331, 0.0
      %v364 = vmax.f32 %v332, 0.0
      %v365 = vmax.f32 %v333, 0.0
      %v366 = vmax.f32 %v334, 0.0
      %v367 = vmax.f32 %v335, 0.0
      %v368 = vmax.f32 %v336, 0.0
      %v369 = vmax.f32 %v337, 0.0
      %v370 = vmax.f32 %v338, 0.0
      %v371 = vmax.f32 %v339, 0.0
      %v372 = vmax.f32 %v340, 0.0
      %v373 = vmax.f32 %v341, 0.0
      %v374 = vmax.f32 %v342, 0.0
      %v375 = vmax.f32 %v343, 0.0
      %v376 = vmax.f32 %v344, 0.0
      %v377 = vmax.f32 %v345, 0.0
      %v378 = vmax.f32 %v346, 0.0
      %v379 = vmax.f32 %v347, 0.0
      %v380 = vmax.f32 %v348, 0.0
      %v381 = vmax.f32 %v349, 0.0
      %v382 = vmax.f32 %v350, 0.0
      %v383 = vmax.f32 %v351, 0.0
      %v384 = vmax.f32 %v352, 0.0
      %v385 = vmax.f32 %v353, 0.0
      %v386 = vmax.f32 %v354, 0.0
      %v387 = vmax.f32 %v355, 0.0
      %v388 = vmax.f32 %v356, 0.0
      %389 = vst [vmem:[%s213] sm:$0xff] %v357
      %390 = vst [vmem:[%s213 + $0x8] sm:$0xff] %v358
      %391 = vst [vmem:[%s213 + $0x10] sm:$0xff] %v359
      %392 = vst [vmem:[%s213 + $0x18] sm:$0xff] %v360
      %393 = vst [vmem:[%s213 + $0x20] sm:$0xff] %v361
      %394 = vst [vmem:[%s213 + $0x28] sm:$0xff] %v362
      %395 = vst [vmem:[%s213 + $0x30] sm:$0xff] %v363
      %396 = vst [vmem:[%s213 + $0x38] sm:$0xff] %v364
      %397 = vst [vmem:[%s213 + $0x40] sm:$0xff] %v365
      %398 = vst [vmem:[%s213 + $0x48] sm:$0xff] %v366
      %399 = vst [vmem:[%s213 + $0x50] sm:$0xff] %v367
      %400 = vst [vmem:[%s213 + $0x58] sm:$0xff] %v368
      %401 = vst [vmem:[%s213 + $0x60] sm:$0xff] %v369
      %402 = vst [vmem:[%s213 + $0x68] sm:$0xff] %v370
      %403 = vst [vmem:[%s213 + $0x70] sm:$0xff] %v371
      %404 = vst [vmem:[%s213 + $0x78] sm:$0xff] %v372
      %405 = vst [vmem:[%s213 + $0x80] sm:$0xff] %v373
      %406 = vst [vmem:[%s213 + $0x88] sm:$0xff] %v374
      %407 = vst [vmem:[%s213 + $0x90] sm:$0xff] %v375
      %408 = vst [vmem:[%s213 + $0x98] sm:$0xff] %v376
      %409 = vst [vmem:[%s213 + $0xa0] sm:$0xff] %v377
      %410 = vst [vmem:[%s213 + $0xa8] sm:$0xff] %v378
      %411 = vst [vmem:[%s213 + $0xb0] sm:$0xff] %v379
      %412 = vst [vmem:[%s213 + $0xb8] sm:$0xff] %v380
      %413 = vst [vmem:[%s213 + $0xc0] sm:$0xff] %v381
      %414 = vst [vmem:[%s213 + $0xc8] sm:$0xff] %v382
      %415 = vst [vmem:[%s213 + $0xd0] sm:$0xff] %v383
      %416 = vst [vmem:[%s213 + $0xd8] sm:$0xff] %v384
      %417 = vst [vmem:[%s213 + $0xe0] sm:$0xff] %v385
      %418 = vst [vmem:[%s213 + $0xe8] sm:$0xff] %v386
      %419 = vst [vmem:[%s213 + $0xf0] sm:$0xff] %v387
      %420 = vst [vmem:[%s213 + $0xf8] sm:$0xff] %v388
      %s421 = smul.u32 16, %s19
      %p422 = scmp.lt.s32.totalorder %s18, 1
      %s423 = scalar_select %p422, %s18, 1
      %p424 = scmp.lt.s32.totalorder %s421, 15
      %s425 = scalar_select %p424, %s421, 15
      %s426 = smul.addr %s425, 2
      %s427 = smul.addr %s423, 32
      %s428 = sadd.s32 %s426, %s427
      %s429 = smul.addr %s428, 8
      %s430 = scalar_lea.vmem %s3, %s429
      // Predicated region
      $region33: #{conv_block_forward.5} parent=31 // pred_check
        %p431 = pneg %p116
      $region34: #{conv_block_forward.5} parent=31 // pred_check_branch
        %433 = sbr.rel (%p431) target = $region36
      $region35: #{conv_block_forward.5} parent=31 // pred_region
        %s434 = smul.u32 16, %s19
      $region36: #{conv_block_forward.5} parent=31 // pred_fallthru
        _
    $region32: #{conv_block_forward.5} parent=5 // pred_fallthru
      _
    %p435 = scmp.le.s32.totalorder 2, %s9
    // Predicated region
    $region37: #{conv_block_forward.5} parent=5 // pred_check
      %p436 = pneg %p435
    $region38: #{conv_block_forward.5} parent=5 // pred_check_branch
      %438 = sbr.rel (%p436) target = $region40
    $region39: #{conv_block_forward.5} parent=5 // pred_region
      %s439 = ssub.s32 %s9, 2
      // Predicated region
      $region41: #{conv_block_forward.5} parent=39 // pred_check
        %p440 = pneg %p122
      $region42: #{conv_block_forward.5} parent=39 // pred_check_branch
        %442 = sbr.rel (%p440) target = $region44
      $region43: #{conv_block_forward.5} parent=39 // pred_region
        %s443 = smul.u32 16, %s21
        %p444 = scmp.lt.s32.totalorder %s20, 1
        %s445 = scalar_select %p444, %s20, 1
        %p446 = scmp.lt.s32.totalorder %s443, 15
        %s447 = scalar_select %p446, %s443, 15
        %s448 = smul.addr %s447, 2
        %s449 = smul.addr %s445, 32
        %s450 = sadd.s32 %s448, %s449
        %s451 = smul.addr %s450, 8
        %s452 = scalar_lea.vmem %s3, %s451
      $region44: #{conv_block_forward.5} parent=39 // pred_fallthru
        _
    $region40: #{conv_block_forward.5} parent=5 // pred_fallthru
      _
  $region6: #{conv_block_forward.5} parent=0 // loop_footer
    %s13 = sadd.s32 1, %s9
  $region7: #{conv_block_forward.5} parent=0 // loop_footer_branch
    %8 = sbr.rel target = $region3
  $region8: #{conv_block_forward.5} parent=0 // loop_exit
    _

// kernel: conv_block_forward.4
$region0: #{conv_block_forward.4}
  #allocation0 [shape = 'u32[]', space=smem, size = 0x4, offset = 0x4, fixed_abs, tag = 'smem constant byte address 0x4 - core index']
  #allocation1 [shape = 'u32[144,128]{1,0:T(1,128)}', space=vmem, size = 0x12000, scoped, tag = 'internal scratch']
  #allocation2 [shape = 'bf16[6,18,128]{2,1,0:T(8,128)(2,1)}', space=vmem, size = 0x9000, scoped, tag = 'scratch operand']
  %s0 = inlined_call_operand.vmem [shape: bf16[2,4,4,16,128], index: 0, kind: input, shape index: {}, may-alias: {0,1,2}]
  %s1 = inlined_call_operand.vmem [shape: bf16[2,4,4,16,128], index: 1, kind: input, shape index: {}, may-alias: {0,1,2}]
  %s2 = inlined_call_operand.vmem [shape: bf16[2,4,4,16,128], index: 2, kind: input, shape index: {}, may-alias: {0,1,2}]
  %s3 = inlined_call_operand.vmem [shape: f32[1,128], index: 3, kind: input, shape index: {}]
  %s4 = inlined_call_operand.vmem [shape: f32[1,128], index: 4, kind: input, shape index: {}]
  %s5 = inlined_call_operand.vmem [shape: bf16[1152,128], index: 5, kind: input, shape index: {}]
  %s6 = inlined_call_operand.vmem [shape: bf16[2,16,16,128], index: 6, kind: output, shape index: {0}]
  %s7 = inlined_call_operand.vmem [shape: f32[2,4,2,128], index: 7, kind: output, shape index: {1}]
  %8 = xla_tuple %s6, %s7
  %s9 = sld [smem:[#allocation0]]
  $region65: #{conv_block_forward.4} parent=0
    _
  %s11 = ssub.s32 1, %s9
  %s12 = scalar_select 0, %s11, %s9
  loop: start=0, step=1, limit=10
  $region2: #{conv_block_forward.4} parent=0 // loop_pre_header
    _
  $region3: #{conv_block_forward.4} parent=0 // loop_header
    %s14 = sphi 0, %s18
    %p15 = scmp.ge.s32.totalorder %s14, 10
    %s21 = sphi 0, %s33
    %s22 = sphi 0, %s29
    %s23 = sphi 0, %s21
    %s24 = sphi 0, %s22
    %s25 = sphi 0, %s23
    %s26 = sphi 0, %s24
    %s38 = sphi 0, %s40
    %s41 = sphi 0, %s38
    %s42 = sphi 0, %s41
    %s58 = sphi 0, %s42
    %s72 = sphi 0, %s74
    %s75 = sphi 0, %s72
    %s76 = sphi 0, %s75
    %s92 = sphi 0, %s76
    %s106 = sphi 0, %s108
    %s109 = sphi 0, %s106
    %s110 = sphi 0, %s109
    %s126 = sphi 0, %s110
    %s130 = sphi 0, %s130
    %s132 = sphi 0, %s130
    %s133 = sphi 0, %s132
    %s147 = sphi 0, %s133
    %s151 = sphi 0, %s151
    %s153 = sphi 0, %s151
    %s154 = sphi 0, %s153
    %s168 = sphi 0, %s154
    %s172 = sphi 0, %s172
    %s174 = sphi 0, %s172
    %s175 = sphi 0, %s174
    %s189 = sphi 0, %s175
    %s197 = sphi 0, %s199
    %s200 = sphi 0, %s197
    %s201 = sphi 0, %s200
    %s217 = sphi 0, %s201
    %s225 = sphi 0, %s227
    %s228 = sphi 0, %s225
    %s229 = sphi 0, %s228
    %s245 = sphi 0, %s229
  $region4: #{conv_block_forward.4} parent=0 // loop_header_branch
    %17 = sbr.rel (%p15) target = $region8
  $region5: #{conv_block_forward.4} parent=0 // loop_body
    %s19 = ssub.s32 %s14, 1
    %s20 = ssub.s32 %s14, 2
    %s27 = sadd.s32 1, %s22
    %p28 = scmp.ge.s32.totalorder %s27, 4
    %s29 = scalar_select %p28, 0, %s27
    %s30 = sadd.s32 1, %s21
    %s31 = scalar_select %p28, %s30, %s21
    %p32 = scmp.ge.s32.totalorder %s31, 2
    %s33 = scalar_select %p32, 0, %s31
    %s34 = ssub.s32 %s21, %s33
    %s35 = ssub.s32 %s22, %s29
    %s36 = sor.u32 %s34, %s35
    %p37 = scmp.eq.s32.totalorder %s36, 0
    %s39 = sadd.s32 %s38, 1
    %s40 = scalar_select %p37, %s38, %s39
    %p43 = pneg %p37
    %p44 = scmp.eq.s32.totalorder %s14, 7
    %p45 = por %p43, %p44
    %p46 = scmp.ne.s32.totalorder %s38, %s41
    %p47 = scmp.eq.s32.totalorder %s14, 0
    %p48 = por %p46, %p47
    %p49 = scmp.ne.s32.totalorder %s38, %s41
    %p50 = scmp.eq.s32.totalorder %s19, 7
    %p51 = por %p49, %p50
    %p52 = scmp.ne.s32.totalorder %s41, %s42
    %p53 = scmp.eq.s32.totalorder %s19, 0
    %p54 = por %p52, %p53
    %p55 = scmp.ne.s32.totalorder %s41, %s42
    %p56 = scmp.eq.s32.totalorder %s20, 7
    %p57 = por %p55, %p56
    %p59 = scmp.ne.s32.totalorder %s42, %s58
    %p60 = scmp.eq.s32.totalorder %s20, 0
    %p61 = por %p59, %p60
    %s62 = ssub.s32 %s22, 1
    %p63 = scmp.gt.s32.totalorder %s62, 0
    %s64 = scalar_select %p63, %s62, 0
    %s65 = ssub.s32 %s29, 1
    %p66 = scmp.gt.s32.totalorder %s65, 0
    %s67 = scalar_select %p66, %s65, 0
    %s68 = ssub.s32 %s21, %s33
    %s69 = ssub.s32 %s64, %s67
    %s70 = sor.u32 %s68, %s69
    %p71 = scmp.eq.s32.totalorder %s70, 0
    %s73 = sadd.s32 %s72, 1
    %s74 = scalar_select %p71, %s72, %s73
    %p77 = pneg %p71
    %p78 = scmp.eq.s32.totalorder %s14, 7
    %p79 = por %p77, %p78
    %p80 = scmp.ne.s32.totalorder %s72, %s75
    %p81 = scmp.eq.s32.totalorder %s14, 0
    %p82 = por %p80, %p81
    %p83 = scmp.ne.s32.totalorder %s72, %s75
    %p84 = scmp.eq.s32.totalorder %s19, 7
    %p85 = por %p83, %p84
    %p86 = scmp.ne.s32.totalorder %s75, %s76
    %p87 = scmp.eq.s32.totalorder %s19, 0
    %p88 = por %p86, %p87
    %p89 = scmp.ne.s32.totalorder %s75, %s76
    %p90 = scmp.eq.s32.totalorder %s20, 7
    %p91 = por %p89, %p90
    %p93 = scmp.ne.s32.totalorder %s76, %s92
    %p94 = scmp.eq.s32.totalorder %s20, 0
    %p95 = por %p93, %p94
    %s96 = sadd.s32 %s22, 1
    %p97 = scmp.lt.s32.totalorder %s96, 3
    %s98 = scalar_select %p97, %s96, 3
    %s99 = sadd.s32 %s29, 1
    %p100 = scmp.lt.s32.totalorder %s99, 3
    %s101 = scalar_select %p100, %s99, 3
    %s102 = ssub.s32 %s21, %s33
    %s103 = ssub.s32 %s98, %s101
    %s104 = sor.u32 %s102, %s103
    %p105 = scmp.eq.s32.totalorder %s104, 0
    %s107 = sadd.s32 %s106, 1
    %s108 = scalar_select %p105, %s106, %s107
    %p111 = pneg %p105
    %p112 = scmp.eq.s32.totalorder %s14, 7
    %p113 = por %p111, %p112
    %p114 = scmp.ne.s32.totalorder %s106, %s109
    %p115 = scmp.eq.s32.totalorder %s14, 0
    %p116 = por %p114, %p115
    %p117 = scmp.ne.s32.totalorder %s106, %s109
    %p118 = scmp.eq.s32.totalorder %s19, 7
    %p119 = por %p117, %p118
    %p120 = scmp.ne.s32.totalorder %s109, %s110
    %p121 = scmp.eq.s32.totalorder %s19, 0
    %p122 = por %p120, %p121
    %p123 = scmp.ne.s32.totalorder %s109, %s110
    %p124 = scmp.eq.s32.totalorder %s20, 7
    %p125 = por %p123, %p124
    %p127 = scmp.ne.s32.totalorder %s110, %s126
    %p128 = scmp.eq.s32.totalorder %s20, 0
    %p129 = por %p127, %p128
    %s131 = sadd.s32 %s130, 1
    %p134 = scmp.eq.s32.totalorder %s14, 7
    %p135 = scmp.ne.s32.totalorder %s130, %s132
    %p136 = scmp.eq.s32.totalorder %s14, 0
    %p137 = por %p135, %p136
    %p138 = scmp.ne.s32.totalorder %s130, %s132
    %p139 = scmp.eq.s32.totalorder %s19, 7
    %p140 = por %p138, %p139
    %p141 = scmp.ne.s32.totalorder %s132, %s133
    %p142 = scmp.eq.s32.totalorder %s19, 0
    %p143 = por %p141, %p142
    %p144 = scmp.ne.s32.totalorder %s132, %s133
    %p145 = scmp.eq.s32.totalorder %s20, 7
    %p146 = por %p144, %p145
    %p148 = scmp.ne.s32.totalorder %s133, %s147
    %p149 = scmp.eq.s32.totalorder %s20, 0
    %p150 = por %p148, %p149
    %s152 = sadd.s32 %s151, 1
    %p155 = scmp.eq.s32.totalorder %s14, 7
    %p156 = scmp.ne.s32.totalorder %s151, %s153
    %p157 = scmp.eq.s32.totalorder %s14, 0
    %p158 = por %p156, %p157
    %p159 = scmp.ne.s32.totalorder %s151, %s153
    %p160 = scmp.eq.s32.totalorder %s19, 7
    %p161 = por %p159, %p160
    %p162 = scmp.ne.s32.totalorder %s153, %s154
    %p163 = scmp.eq.s32.totalorder %s19, 0
    %p164 = por %p162, %p163
    %p165 = scmp.ne.s32.totalorder %s153, %s154
    %p166 = scmp.eq.s32.totalorder %s20, 7
    %p167 = por %p165, %p166
    %p169 = scmp.ne.s32.totalorder %s154, %s168
    %p170 = scmp.eq.s32.totalorder %s20, 0
    %p171 = por %p169, %p170
    %s173 = sadd.s32 %s172, 1
    %p176 = scmp.eq.s32.totalorder %s14, 7
    %p177 = scmp.ne.s32.totalorder %s172, %s174
    %p178 = scmp.eq.s32.totalorder %s14, 0
    %p179 = por %p177, %p178
    %p180 = scmp.ne.s32.totalorder %s172, %s174
    %p181 = scmp.eq.s32.totalorder %s19, 7
    %p182 = por %p180, %p181
    %p183 = scmp.ne.s32.totalorder %s174, %s175
    %p184 = scmp.eq.s32.totalorder %s19, 0
    %p185 = por %p183, %p184
    %p186 = scmp.ne.s32.totalorder %s174, %s175
    %p187 = scmp.eq.s32.totalorder %s20, 7
    %p188 = por %p186, %p187
    %p190 = scmp.ne.s32.totalorder %s175, %s189
    %p191 = scmp.eq.s32.totalorder %s20, 0
    %p192 = por %p190, %p191
    %s193 = ssub.s32 %s21, %s33
    %s194 = ssub.s32 %s22, %s29
    %s195 = sor.u32 %s193, %s194
    %p196 = scmp.eq.s32.totalorder %s195, 0
    %s198 = sadd.s32 %s197, 1
    %s199 = scalar_select %p196, %s197, %s198
    %p202 = pneg %p196
    %p203 = scmp.eq.s32.totalorder %s14, 7
    %p204 = por %p202, %p203
    %p205 = scmp.ne.s32.totalorder %s197, %s200
    %p206 = scmp.eq.s32.totalorder %s14, 0
    %p207 = por %p205, %p206
    %p208 = scmp.ne.s32.totalorder %s197, %s200
    %p209 = scmp.eq.s32.totalorder %s19, 7
    %p210 = por %p208, %p209
    %p211 = scmp.ne.s32.totalorder %s200, %s201
    %p212 = scmp.eq.s32.totalorder %s19, 0
    %p213 = por %p211, %p212
    %p214 = scmp.ne.s32.totalorder %s200, %s201
    %p215 = scmp.eq.s32.totalorder %s20, 7
    %p216 = por %p214, %p215
    %p218 = scmp.ne.s32.totalorder %s201, %s217
    %p219 = scmp.eq.s32.totalorder %s20, 0
    %p220 = por %p218, %p219
    %s221 = ssub.s32 %s21, %s33
    %s222 = ssub.s32 %s22, %s29
    %s223 = sor.u32 %s221, %s222
    %p224 = scmp.eq.s32.totalorder %s223, 0
    %s226 = sadd.s32 %s225, 1
    %s227 = scalar_select %p224, %s225, %s226
    %p230 = pneg %p224
    %p231 = scmp.eq.s32.totalorder %s14, 7
    %p232 = por %p230, %p231
    %p233 = scmp.ne.s32.totalorder %s225, %s228
    %p234 = scmp.eq.s32.totalorder %s14, 0
    %p235 = por %p233, %p234
    %p236 = scmp.ne.s32.totalorder %s225, %s228
    %p237 = scmp.eq.s32.totalorder %s19, 7
    %p238 = por %p236, %p237
    %p239 = scmp.ne.s32.totalorder %s228, %s229
    %p240 = scmp.eq.s32.totalorder %s19, 0
    %p241 = por %p239, %p240
    %p242 = scmp.ne.s32.totalorder %s228, %s229
    %p243 = scmp.eq.s32.totalorder %s20, 7
    %p244 = por %p242, %p243
    %p246 = scmp.ne.s32.totalorder %s229, %s245
    %p247 = scmp.eq.s32.totalorder %s20, 0
    %p248 = por %p246, %p247
    %p249 = scmp.le.s32.totalorder 1, %s14
    %p250 = scmp.lt.s32.totalorder %s14, 9
    %p251 = pnand %p249, %p250
    %p252 = pneg %p251
    // Predicated region
    $region9: #{conv_block_forward.4} parent=5 // pred_check
      _
    $region10: #{conv_block_forward.4} parent=5 // pred_check_branch
      %254 = sbr.rel (%p251) target = $region12
    $region11: #{conv_block_forward.4} parent=5 // pred_region
      %s255 = ssub.s32 %s14, 1
      // Predicated region
      $region13: #{conv_block_forward.4} parent=11 // pred_check
        %p256 = pneg %p143
      $region14: #{conv_block_forward.4} parent=11 // pred_check_branch
        %258 = sbr.rel (%p256) target = $region16
      $region15: #{conv_block_forward.4} parent=11 // pred_region
        _
      $region16: #{conv_block_forward.4} parent=11 // pred_fallthru
        _
      // Predicated region
      $region17: #{conv_block_forward.4} parent=11 // pred_check
        %p259 = pneg %p164
      $region18: #{conv_block_forward.4} parent=11 // pred_check_branch
        %261 = sbr.rel (%p259) target = $region20
      $region19: #{conv_block_forward.4} parent=11 // pred_region
        _
      $region20: #{conv_block_forward.4} parent=11 // pred_fallthru
        _
      // Predicated region
      $region21: #{conv_block_forward.4} parent=11 // pred_check
        %p262 = pneg %p185
      $region22: #{conv_block_forward.4} parent=11 // pred_check_branch
        %264 = sbr.rel (%p262) target = $region24
      $region23: #{conv_block_forward.4} parent=11 // pred_region
        _
      $region24: #{conv_block_forward.4} parent=11 // pred_fallthru
        _
    $region12: #{conv_block_forward.4} parent=5 // pred_fallthru
      _
    %p265 = scmp.lt.s32.totalorder %s14, 8
    // Predicated region
    $region25: #{conv_block_forward.4} parent=5 // pred_check
      %p266 = pneg %p265
    $region26: #{conv_block_forward.4} parent=5 // pred_check_branch
      %268 = sbr.rel (%p266) target = $region28
    $region27: #{conv_block_forward.4} parent=5 // pred_region
      // Predicated region
      $region29: #{conv_block_forward.4} parent=27 // pred_check
        %p269 = pneg %p48
      $region30: #{conv_block_forward.4} parent=27 // pred_check_branch
        %271 = sbr.rel (%p269) target = $region32
      $region31: #{conv_block_forward.4} parent=27 // pred_region
        %p272 = scmp.lt.s32.totalorder %s21, 1
        %s273 = scalar_select %p272, %s21, 1
        %p274 = scmp.lt.s32.totalorder %s22, 3
        %s275 = scalar_select %p274, %s22, 3
        %s276 = smul.addr %s275, 8
        %s277 = smul.addr %s273, 32
        %s278 = sadd.s32 %s276, %s277
        %s279 = smul.addr %s278, 4
        %s280 = scalar_lea.vmem %s0, %s279
      $region32: #{conv_block_forward.4} parent=27 // pred_fallthru
        _
      // Predicated region
      $region33: #{conv_block_forward.4} parent=27 // pred_check
        %p281 = pneg %p82
      $region34: #{conv_block_forward.4} parent=27 // pred_check_branch
        %283 = sbr.rel (%p281) target = $region36
      $region35: #{conv_block_forward.4} parent=27 // pred_region
        %s284 = ssub.s32 %s22, 1
        %p285 = scmp.gt.s32.totalorder %s284, 0
        %s286 = scalar_select %p285, %s284, 0
        %p287 = scmp.lt.s32.totalorder %s21, 1
        %s288 = scalar_select %p287, %s21, 1
        %p289 = scmp.lt.s32.totalorder %s286, 3
        %s290 = scalar_select %p289, %s286, 3
        %s291 = smul.addr %s290, 8
        %s292 = sadd.s32 6, %s291
        %s293 = smul.addr %s288, 32
        %s294 = sadd.s32 %s292, %s293
        %s295 = smul.addr %s294, 4
        %s296 = scalar_lea.vmem %s1, %s295
        %s297 = ssub.s32 %s22, 1
        %p298 = scmp.gt.s32.totalorder %s297, 0
        %s299 = scalar_select %p298, %s297, 0
      $region36: #{conv_block_forward.4} parent=27 // pred_fallthru
        _
      // Predicated region
      $region37: #{conv_block_forward.4} parent=27 // pred_check
        %p300 = pneg %p116
      $region38: #{conv_block_forward.4} parent=27 // pred_check_branch
        %302 = sbr.rel (%p300) target = $region40
      $region39: #{conv_block_forward.4} parent=27 // pred_region
        %s303 = sadd.s32 %s22, 1
        %p304 = scmp.lt.s32.totalorder %s303, 3
        %s305 = scalar_select %p304, %s303, 3
        %p306 = scmp.lt.s32.totalorder %s21, 1
        %s307 = scalar_select %p306, %s21, 1
        %p308 = scmp.lt.s32.totalorder %s305, 3
        %s309 = scalar_select %p308, %s305, 3
        %s310 = smul.addr %s309, 8
        %s311 = smul.addr %s307, 32
        %s312 = sadd.s32 %s310, %s311
        %s313 = smul.addr %s312, 4
        %s314 = scalar_lea.vmem %s2, %s313
        %s315 = sadd.s32 %s22, 1
        %p316 = scmp.lt.s32.totalorder %s315, 3
        %s317 = scalar_select %p316, %s315, 3
      $region40: #{conv_block_forward.4} parent=27 // pred_fallthru
        _
    $region28: #{conv_block_forward.4} parent=5 // pred_fallthru
      _
    %p318 = scmp.le.s32.totalorder 1, %s14
    %p319 = scmp.lt.s32.totalorder %s14, 9
    %p320 = pnand %p318, %p319
    %p321 = pneg %p320
    // Predicated region
    $region41: #{conv_block_forward.4} parent=5 // pred_check
      _
    $region42: #{conv_block_forward.4} parent=5 // pred_check_branch
      %323 = sbr.rel (%p320) target = $region44
    $region43: #{conv_block_forward.4} parent=5 // pred_region
      %s324 = ssub.s32 %s14, 1
      %p325 = scmp.lt.s32.totalorder %s23, 1
      %s326 = scalar_select %p325, %s23, 1
      %p327 = scmp.lt.s32.totalorder %s24, 3
      %s328 = scalar_select %p327, %s24, 3
      %s329 = smul.addr %s328, 8
      %s330 = smul.addr %s326, 32
      %s331 = sadd.s32 %s329, %s330
      %s332 = smul.addr %s331, 4
      %s333 = scalar_lea.vmem %s0, %s332
      %p334 = pneg %p54
      %p335 = pneg %p51
      %s336 = ssub.s32 %s24, 1
      %p337 = scmp.gt.s32.totalorder %s336, 0
      %s338 = scalar_select %p337, %s336, 0
      %p339 = scmp.lt.s32.totalorder %s23, 1
      %s340 = scalar_select %p339, %s23, 1
      %p341 = scmp.lt.s32.totalorder %s338, 3
      %s342 = scalar_select %p341, %s338, 3
      %s343 = smul.addr %s342, 8
      %s344 = sadd.s32 6, %s343
      %s345 = smul.addr %s340, 32
      %s346 = sadd.s32 %s344, %s345
      %s347 = smul.addr %s346, 4
      %s348 = scalar_lea.vmem %s1, %s347
      %p349 = pneg %p88
      %p350 = pneg %p85
      %s351 = sadd.s32 %s24, 1
      %p352 = scmp.lt.s32.totalorder %s351, 3
      %s353 = scalar_select %p352, %s351, 3
      %p354 = scmp.lt.s32.totalorder %s23, 1
      %s355 = scalar_select %p354, %s23, 1
      %p356 = scmp.lt.s32.totalorder %s353, 3
      %s357 = scalar_select %p356, %s353, 3
      %s358 = smul.addr %s357, 8
      %s359 = smul.addr %s355, 32
      %s360 = sadd.s32 %s358, %s359
      %s361 = smul.addr %s360, 4
      %s362 = scalar_lea.vmem %s2, %s361
      %p363 = pneg %p122
      %p364 = pneg %p119
      %p365 = pneg %p143
      %p366 = pneg %p140
      %p367 = pneg %p164
      %p368 = pneg %p161
      %p369 = pneg %p185
      %p370 = pneg %p182
      %p371 = pneg %p213
      %p372 = pneg %p210
      %s373 = smul.u32 4, %s24
      %p374 = scmp.lt.s32.totalorder %s23, 1
      %s375 = scalar_select %p374, %s23, 1
      %p376 = scmp.lt.s32.totalorder %s373, 15
      %s377 = scalar_select %p376, %s373, 15
      %s378 = smul.addr %s377, 2
      %s379 = smul.addr %s375, 32
      %s380 = sadd.s32 %s378, %s379
      %s381 = smul.addr %s380, 4
      %s382 = scalar_lea.vmem %s6, %s381
      %p383 = pneg %p241
      %p384 = pneg %p238
      %p385 = scmp.lt.s32.totalorder %s23, 1
      %s386 = scalar_select %p385, %s23, 1
      %p387 = scmp.lt.s32.totalorder %s24, 3
      %s388 = scalar_select %p387, %s24, 3
      %s389 = smul.addr %s386, 4
      %s390 = sadd.s32 %s388, %s389
      %s391 = smul.addr %s390, 2
      %s392 = scalar_lea.vmem %s7, %s391
      %p393 = scmp.lt.s32.totalorder %s23, 1
      %s394 = scalar_select %p393, %s23, 1
      %p395 = scmp.lt.s32.totalorder %s24, 3
      %s396 = scalar_select %p395, %s24, 3
      %s397 = smul.addr %s396, 8
      %s398 = smul.addr %s394, 32
      %s399 = sadd.s32 %s397, %s398
      %s400 = smul.addr %s399, 4
      %s401 = scalar_lea.vmem %s0, %s400
      %s402 = ssub.s32 %s24, 1
      %p403 = scmp.gt.s32.totalorder %s402, 0
      %s404 = scalar_select %p403, %s402, 0
      %p405 = scmp.lt.s32.totalorder %s23, 1
      %s406 = scalar_select %p405, %s23, 1
      %p407 = scmp.lt.s32.totalorder %s404, 3
      %s408 = scalar_select %p407, %s404, 3
      %s409 = smul.addr %s408, 8
      %s410 = sadd.s32 6, %s409
      %s411 = smul.addr %s406, 32
      %s412 = sadd.s32 %s410, %s411
      %s413 = smul.addr %s412, 4
      %s414 = scalar_lea.vmem %s1, %s413
      %s415 = ssub.s32 %s24, 1
      %p416 = scmp.gt.s32.totalorder %s415, 0
      %s417 = scalar_select %p416, %s415, 0
      %s418 = sadd.s32 %s24, 1
      %p419 = scmp.lt.s32.totalorder %s418, 3
      %s420 = scalar_select %p419, %s418, 3
      %p421 = scmp.lt.s32.totalorder %s23, 1
      %s422 = scalar_select %p421, %s23, 1
      %p423 = scmp.lt.s32.totalorder %s420, 3
      %s424 = scalar_select %p423, %s420, 3
      %s425 = smul.addr %s424, 8
      %s426 = smul.addr %s422, 32
      %s427 = sadd.s32 %s425, %s426
      %s428 = smul.addr %s427, 4
      %s429 = scalar_lea.vmem %s2, %s428
      %s430 = sadd.s32 %s24, 1
      %p431 = scmp.lt.s32.totalorder %s430, 3
      %s432 = scalar_select %p431, %s430, 3
      %s433 = smul.u32 4, %s24
      %p434 = scmp.lt.s32.totalorder %s23, 1
      %s435 = scalar_select %p434, %s23, 1
      %p436 = scmp.lt.s32.totalorder %s433, 15
      %s437 = scalar_select %p436, %s433, 15
      %s438 = smul.addr %s437, 2
      %s439 = smul.addr %s435, 32
      %s440 = sadd.s32 %s438, %s439
      %s441 = smul.addr %s440, 4
      %s442 = scalar_lea.vmem %s6, %s441
      %s443 = smul.u32 4, %s24
      %p444 = scmp.lt.s32.totalorder %s23, 1
      %s445 = scalar_select %p444, %s23, 1
      %p446 = scmp.lt.s32.totalorder %s24, 3
      %s447 = scalar_select %p446, %s24, 3
      %s448 = smul.addr %s445, 4
      %s449 = sadd.s32 %s447, %s448
      %s450 = smul.addr %s449, 2
      %s451 = scalar_lea.vmem %s7, %s450
      %v453 = vld [vmem:[%s3] sm:$0x1]
      %v454 = vld [vmem:[%s4] sm:$0x1]
      %p455 = scmp.eq.s32.totalorder %s24, 0
      %p456 = scmp.eq.s32.totalorder %s24, 3
      %v457 = vld [vmem:[%s401] sm:$0xf]
      %v458 = vld [vmem:[%s401 + $0x4] sm:$0xf]
      %v459 = vld [vmem:[%s401 + $0x8] sm:$0xf]
      %v460 = vld [vmem:[%s401 + $0xc] sm:$0xf]
      %v461 = vld [vmem:[%s401 + $0x10] sm:$0xf]
      %v462 = vld [vmem:[%s401 + $0x14] sm:$0xf]
      %v463 = vld [vmem:[%s401 + $0x18] sm:$0xf]
      %v464 = vld [vmem:[%s401 + $0x1c] sm:$0xf]
      %v465 = vunpack.c.l.bf16 %v457
      %v466 = vunpack.c.l.bf16 %v458
      %v467 = vunpack.c.l.bf16 %v459
      %v468 = vunpack.c.l.bf16 %v460
      %v469 = vunpack.c.l.bf16 %v461
      %v470 = vunpack.c.l.bf16 %v462
      %v471 = vunpack.c.l.bf16 %v463
      %v472 = vunpack.c.l.bf16 %v464
      %v474 = vlaneseq
      %v475 = vshrl.u32 %v474, 7
      %v476 = vsub.s32 0, %v475
      %v477 = vrot.slane %v453, %v476
      %v479 = vmul.f32 %v465, %v477
      %v480 = vmul.f32 %v466, %v477
      %v481 = vmul.f32 %v467, %v477
      %v482 = vmul.f32 %v468, %v477
      %v483 = vmul.f32 %v469, %v477
      %v484 = vmul.f32 %v470, %v477
      %v485 = vmul.f32 %v471, %v477
      %v486 = vmul.f32 %v472, %v477
      %v488 = vlaneseq
      %v489 = vshrl.u32 %v488, 7
      %v490 = vsub.s32 0, %v489
      %v491 = vrot.slane %v454, %v490
      %v493 = vadd.f32 %v479, %v491
      %v494 = vadd.f32 %v480, %v491
      %v495 = vadd.f32 %v481, %v491
      %v496 = vadd.f32 %v482, %v491
      %v497 = vadd.f32 %v483, %v491
      %v498 = vadd.f32 %v484, %v491
      %v499 = vadd.f32 %v485, %v491
      %v500 = vadd.f32 %v486, %v491
      %v501 = vmax.f32 %v493, 0.0
      %v502 = vmax.f32 %v494, 0.0
      %v503 = vmax.f32 %v495, 0.0
      %v504 = vmax.f32 %v496, 0.0
      %v505 = vmax.f32 %v497, 0.0
      %v506 = vmax.f32 %v498, 0.0
      %v507 = vmax.f32 %v499, 0.0
      %v508 = vmax.f32 %v500, 0.0
      %v509 = vpack.c.bf16 %v502, %v501
      %v510 = vpack.c.bf16 %v504, %v503
      %v511 = vpack.c.bf16 %v506, %v505
      %v512 = vpack.c.bf16 %v508, %v507
      %v513 = vld [vmem:[%s414] sm:$0xf]
      %v514 = vld [vmem:[%s414 + $0x4] sm:$0xf]
      %v515 = vunpack.c.l.bf16 %v513
      %v516 = vunpack.c.l.bf16 %v514
      %v517 = vmul.f32 %v515, %v477
      %v518 = vmul.f32 %v516, %v477
      %v519 = vadd.f32 %v517, %v491
      %v520 = vadd.f32 %v518, %v491
      %v521 = vmax.f32 %v519, 0.0
      %v522 = vmax.f32 %v520, 0.0
      %v523 = vpack.c.bf16 %v522, %v521
      %s524 = scalar_select %p455, 1, 0
      %v525 = vstv %s524
      %vm526 = vcmp.eq.s32.totalorder %v525, 1
      %v527 = vsel %vm526, 0, %v523
      %v528 = vld [vmem:[%s429] sm:$0xf]
      %v529 = vld [vmem:[%s429 + $0x4] sm:$0xf]
      %v530 = vunpack.c.l.bf16 %v528
      %v531 = vunpack.c.l.bf16 %v529
      %v532 = vmul.f32 %v530, %v477
      %v533 = vmul.f32 %v531, %v477
      %v534 = vadd.f32 %v532, %v491
      %v535 = vadd.f32 %v533, %v491
      %v536 = vmax.f32 %v534, 0.0
      %v537 = vmax.f32 %v535, 0.0
      %v538 = vpack.c.bf16 %v537, %v536
      %s539 = scalar_select %p456, 1, 0
      %v540 = vstv %s539
      %vm541 = vcmp.eq.s32.totalorder %v540, 1
      %v542 = vsel %vm541, 0, %v538
      %543 = vst [vmem:[#allocation2] sm:$0xf] 0
      %544 = vst [vmem:[#allocation2 + $0x4] sm:$0xf] 0
      %545 = vst [vmem:[#allocation2 + $0x8] sm:$0x1] 0
      %546 = vst [vmem:[#allocation2 + $0xc] sm:$0xf] 0
      %547 = vst [vmem:[#allocation2 + $0x10] sm:$0xf] 0
      %548 = vst [vmem:[#allocation2 + $0x14] sm:$0x1] 0
      %549 = vst [vmem:[#allocation2 + $0x18] sm:$0xf] 0
      %550 = vst [vmem:[#allocation2 + $0x1c] sm:$0xf] 0
      %551 = vst [vmem:[#allocation2 + $0x20] sm:$0x1] 0
      %552 = vst [vmem:[#allocation2 + $0x24] sm:$0xf] 0
      %553 = vst [vmem:[#allocation2 + $0x28] sm:$0xf] 0
      %554 = vst [vmem:[#allocation2 + $0x2c] sm:$0x1] 0
      %555 = vst [vmem:[#allocation2 + $0x30] sm:$0xf] 0
      %556 = vst [vmem:[#allocation2 + $0x34] sm:$0xf] 0
      %557 = vst [vmem:[#allocation2 + $0x38] sm:$0x1] 0
      %558 = vst [vmem:[#allocation2 + $0x3c] sm:$0xf] 0
      %559 = vst [vmem:[#allocation2 + $0x40] sm:$0xf] 0
      %560 = vst [vmem:[#allocation2 + $0x44] sm:$0x1] 0
      %v562 = vunpack.c.l.b16 %v527
      %v563 = vunpack.c.h.b16 %v527
      %v564 = vpack.c.b16 %v562, %v562
      %v565 = vpack.c.b16 %v563, %v563
      %vm566 = vsmask.f32 256
      %vm567 = vsmask.f32 4368
      %vm568 = vmor %vm566, %vm567
      %v570 = vshrl.u32 %v564, 16
      %v572 = vrot.slane %v570, 7
      %v573 = vshll.u32 %v564, 16
      %v575 = vor.u32 %v572, %v573
      %v576 = vrot.slane %v572, 4
      %v578 = vshrl.u32 %v565, 16
      %v580 = vrot.slane %v578, 7
      %v581 = vshll.u32 %v565, 16
      %v583 = vor.u32 %v580, %v581
      %v584 = vsel %vm568, %v576, %v583
      %v585 = vrot.slane %v580, 4
      %vm589 = vcmask 1043456
      %vm590 = vsmask.f32 7938
      %vm591 = vmand %vm589, %vm590
      %v592 = vld [vmem:[#allocation2] sm:$0xf]
      %v593 = vsel %vm591, %v575, %v592
      %594 = vst [vmem:[#allocation2] sm:$0xf] %v593
      %595 = vst [vmem:[#allocation2 + $0x4] sm:$0xf] %v584
      %vm596 = vcmask 1040384
      %vm597 = vmand %vm596, %vm566
      %v598 = vld [vmem:[#allocation2 + $0x8] sm:$0x1]
      %v599 = vsel %vm597, %v585, %v598
      %600 = vst [vmem:[#allocation2 + $0x8] sm:$0x1] %v599
      %v602 = vunpack.c.l.b16 %v542
      %v603 = vunpack.c.h.b16 %v542
      %v604 = vpack.c.b16 %v602, %v602
      %v605 = vpack.c.b16 %v603, %v603
      %v607 = vshrl.u32 %v604, 16
      %v609 = vrot.slane %v607, 7
      %v610 = vshll.u32 %v604, 16
      %v612 = vor.u32 %v609, %v610
      %v613 = vrot.slane %v609, 4
      %v615 = vshrl.u32 %v605, 16
      %v617 = vrot.slane %v615, 7
      %v618 = vshll.u32 %v605, 16
      %v620 = vor.u32 %v617, %v618
      %v621 = vsel %vm568, %v613, %v620
      %v622 = vrot.slane %v617, 4
      %s626 = scalar_lea.vmem [#allocation2], 60
      %v627 = vld [vmem:[%s626] sm:$0xf]
      %v628 = vsel %vm591, %v612, %v627
      %629 = vst [vmem:[%s626] sm:$0xf] %v628
      %630 = vst [vmem:[%s626 + $0x4] sm:$0xf] %v621
      %v631 = vld [vmem:[%s626 + $0x8] sm:$0x1]
      %v632 = vsel %vm597, %v622, %v631
      %633 = vst [vmem:[%s626 + $0x8] sm:$0x1] %v632
      %v638 = vunpack.c.l.b16 %v509
      %v639 = vunpack.c.h.b16 %v509
      %v640 = vunpack.c.l.b16 %v510
      %v641 = vunpack.c.h.b16 %v510
      %v642 = vunpack.c.l.b16 %v511
      %v643 = vunpack.c.h.b16 %v511
      %v644 = vunpack.c.l.b16 %v512
      %v645 = vunpack.c.h.b16 %v512
      %v646 = vpack.c.b16 %v638, %v638
      %v647 = vpack.c.b16 %v639, %v639
      %v648 = vpack.c.b16 %v640, %v640
      %v649 = vpack.c.b16 %v641, %v641
      %v650 = vpack.c.b16 %v642, %v642
      %v651 = vpack.c.b16 %v643, %v643
      %v652 = vpack.c.b16 %v644, %v644
      %v653 = vpack.c.b16 %v645, %v645
      %v655 = vshrl.u32 %v646, 16
      %v657 = vrot.slane %v655, 7
      %v658 = vshll.u32 %v646, 16
      %v660 = vor.u32 %v657, %v658
      %v661 = vrot.slane %v657, 4
      %v663 = vshrl.u32 %v647, 16
      %v665 = vrot.slane %v663, 7
      %v666 = vshll.u32 %v647, 16
      %v668 = vor.u32 %v665, %v666
      %v669 = vsel %vm568, %v661, %v668
      %v670 = vrot.slane %v665, 4
      %v672 = vshrl.u32 %v648, 16
      %v674 = vrot.slane %v672, 7
      %v675 = vshll.u32 %v648, 16
      %v677 = vor.u32 %v674, %v675
      %v678 = vrot.slane %v674, 4
      %v680 = vshrl.u32 %v649, 16
      %v682 = vrot.slane %v680, 7
      %v683 = vshll.u32 %v649, 16
      %v685 = vor.u32 %v682, %v683
      %v686 = vsel %vm568, %v678, %v685
      %v687 = vrot.slane %v682, 4
      %v689 = vshrl.u32 %v650, 16
      %v691 = vrot.slane %v689, 7
      %v692 = vshll.u32 %v650, 16
      %v694 = vor.u32 %v691, %v692
      %v695 = vrot.slane %v691, 4
      %v697 = vshrl.u32 %v651, 16
      %v699 = vrot.slane %v697, 7
      %v700 = vshll.u32 %v651, 16
      %v702 = vor.u32 %v699, %v700
      %v703 = vsel %vm568, %v695, %v702
      %v704 = vrot.slane %v699, 4
      %v706 = vshrl.u32 %v652, 16
      %v708 = vrot.slane %v706, 7
      %v709 = vshll.u32 %v652, 16
      %v711 = vor.u32 %v708, %v709
      %v712 = vrot.slane %v708, 4
      %v714 = vshrl.u32 %v653, 16
      %v716 = vrot.slane %v714, 7
      %v717 = vshll.u32 %v653, 16
      %v719 = vor.u32 %v716, %v717
      %v720 = vsel %vm568, %v712, %v719
      %v721 = vrot.slane %v716, 4
      %s734 = scalar_lea.vmem [#allocation2], 12
      %v735 = vld [vmem:[%s734] sm:$0xf]
      %v736 = vsel %vm591, %v660, %v735
      %737 = vst [vmem:[%s734] sm:$0xf] %v736
      %738 = vst [vmem:[%s734 + $0x4] sm:$0xf] %v669
      %v739 = vld [vmem:[%s734 + $0x8] sm:$0x1]
      %v740 = vsel %vm597, %v670, %v739
      %741 = vst [vmem:[%s734 + $0x8] sm:$0x1] %v740
      %v742 = vld [vmem:[%s734 + $0xc] sm:$0xf]
      %v743 = vsel %vm591, %v677, %v742
      %744 = vst [vmem:[%s734 + $0xc] sm:$0xf] %v743
      %745 = vst [vmem:[%s734 + $0x10] sm:$0xf] %v686
      %v746 = vld [vmem:[%s734 + $0x14] sm:$0x1]
      %v747 = vsel %vm597, %v687, %v746
      %748 = vst [vmem:[%s734 + $0x14] sm:$0x1] %v747
      %v749 = vld [vmem:[%s734 + $0x18] sm:$0xf]
      %v750 = vsel %vm591, %v694, %v749
      %751 = vst [vmem:[%s734 + $0x18] sm:$0xf] %v750
      %752 = vst [vmem:[%s734 + $0x1c] sm:$0xf] %v703
      %v753 = vld [vmem:[%s734 + $0x20] sm:$0x1]
      %v754 = vsel %vm597, %v704, %v753
      %755 = vst [vmem:[%s734 + $0x20] sm:$0x1] %v754
      %v756 = vld [vmem:[%s734 + $0x24] sm:$0xf]
      %v757 = vsel %vm591, %v711, %v756
      %758 = vst [vmem:[%s734 + $0x24] sm:$0xf] %v757
      %759 = vst [vmem:[%s734 + $0x28] sm:$0xf] %v720
      %v760 = vld [vmem:[%s734 + $0x2c] sm:$0x1]
      %v761 = vsel %vm597, %v721, %v760
      %762 = vst [vmem:[%s734 + $0x2c] sm:$0x1] %v761
      %v763 = vld [vmem:[#allocation2] sm:$0xf]
      %v764 = vld [vmem:[#allocation2 + $0x4] sm:$0xf]
      %v765 = vld [vmem:[#allocation2 + $0xc] sm:$0xf]
      %v766 = vld [vmem:[#allocation2 + $0x10] sm:$0xf]
      %v767 = vld [vmem:[#allocation2 + $0x18] sm:$0xf]
      %v768 = vld [vmem:[#allocation2 + $0x1c] sm:$0xf]
      %v769 = vld [vmem:[#allocation2 + $0x24] sm:$0xf]
      %v770 = vld [vmem:[#allocation2 + $0x28] sm:$0xf]
      %v771 = vld [vmem:[#allocation2 + $0x8] sm:$0x1]
      %v772 = vld [vmem:[#allocation2 + $0x14] sm:$0x1]
      %v773 = vld [vmem:[#allocation2 + $0x20] sm:$0x1]
      %v774 = vld [vmem:[#allocation2 + $0x2c] sm:$0x1]
      %vm775 = vsmask.f32 3328
      %vm776 = vsmask.f32 7440
      %vm777 = vmor %vm775, %vm776
      %v779 = vshrl.u32 %v763, 16
      %v781 = vrot.slane %v779, 4
      %v782 = vshll.u32 %v763, 16
      %v784 = vrot.slane %v782, 5
      %v785 = vor.u32 %v781, %v784
      %v786 = vrot.slane %v785, 4
      %v788 = vshll.u32 %v764, 16
      %v790 = vrot.slane %v788, 5
      %v791 = vsel %vm777, %v786, %v790
      %v792 = vshrl.u32 %v764, 16
      %v794 = vrot.slane %v792, 4
      %v795 = vor.u32 %v794, %v790
      %v796 = vrot.slane %v795, 4
      %v798 = vshll.u32 %v771, 16
      %v800 = vrot.slane %v798, 5
      %v801 = vsel %vm777, %v796, %v800
      %v803 = vshrl.u32 %v765, 16
      %v805 = vrot.slane %v803, 4
      %v806 = vshll.u32 %v765, 16
      %v808 = vrot.slane %v806, 5
      %v809 = vor.u32 %v805, %v808
      %v810 = vrot.slane %v809, 4
      %v812 = vshll.u32 %v766, 16
      %v814 = vrot.slane %v812, 5
      %v815 = vsel %vm777, %v810, %v814
      %v816 = vshrl.u32 %v766, 16
      %v818 = vrot.slane %v816, 4
      %v819 = vor.u32 %v818, %v814
      %v820 = vrot.slane %v819, 4
      %v822 = vshll.u32 %v772, 16
      %v824 = vrot.slane %v822, 5
      %v825 = vsel %vm777, %v820, %v824
      %v827 = vshrl.u32 %v767, 16
      %v829 = vrot.slane %v827, 4
      %v830 = vshll.u32 %v767, 16
      %v832 = vrot.slane %v830, 5
      %v833 = vor.u32 %v829, %v832
      %v834 = vrot.slane %v833, 4
      %v836 = vshll.u32 %v768, 16
      %v838 = vrot.slane %v836, 5
      %v839 = vsel %vm777, %v834, %v838
      %v840 = vshrl.u32 %v768, 16
      %v842 = vrot.slane %v840, 4
      %v843 = vor.u32 %v842, %v838
      %v844 = vrot.slane %v843, 4
      %v846 = vshll.u32 %v773, 16
      %v848 = vrot.slane %v846, 5
      %v849 = vsel %vm777, %v844, %v848
      %v851 = vshrl.u32 %v769, 16
      %v853 = vrot.slane %v851, 4
      %v854 = vshll.u32 %v769, 16
      %v856 = vrot.slane %v854, 5
      %v857 = vor.u32 %v853, %v856
      %v858 = vrot.slane %v857, 4
      %v860 = vshll.u32 %v770, 16
      %v862 = vrot.slane %v860, 5
      %v863 = vsel %vm777, %v858, %v862
      %v864 = vshrl.u32 %v770, 16
      %v866 = vrot.slane %v864, 4
      %v867 = vor.u32 %v866, %v862
      %v868 = vrot.slane %v867, 4
      %v870 = vshll.u32 %v774, 16
      %v872 = vrot.slane %v870, 5
      %v873 = vsel %vm777, %v868, %v872
      %v874 = vld [vmem:[#allocation2] sm:$0xe]
      %v875 = vld [vmem:[#allocation2 + $0xc] sm:$0xe]
      %v876 = vld [vmem:[#allocation2 + $0x18] sm:$0xe]
      %v877 = vld [vmem:[#allocation2 + $0x24] sm:$0xe]
      %vm890 = vcmask 1042432
      %vm891 = vcmask 1046532
      %vm892 = vmor %vm890, %vm891
      %v893 = vrot.slane %v874, 5
      %v894 = vrot.slane %v893, 4
      %v895 = vrot.slane %v764, 5
      %v896 = vsel %vm892, %v894, %v895
      %v897 = vrot.slane %v895, 4
      %v898 = vrot.slane %v771, 5
      %v899 = vsel %vm892, %v897, %v898
      %v900 = vrot.slane %v875, 5
      %v901 = vrot.slane %v900, 4
      %v902 = vrot.slane %v766, 5
      %v903 = vsel %vm892, %v901, %v902
      %v904 = vrot.slane %v902, 4
      %v905 = vrot.slane %v772, 5
      %v906 = vsel %vm892, %v904, %v905
      %v907 = vrot.slane %v876, 5
      %v908 = vrot.slane %v907, 4
      %v909 = vrot.slane %v768, 5
      %v910 = vsel %vm892, %v908, %v909
      %v911 = vrot.slane %v909, 4
      %v912 = vrot.slane %v773, 5
      %v913 = vsel %vm892, %v911, %v912
      %v914 = vrot.slane %v877, 5
      %v915 = vrot.slane %v914, 4
      %v916 = vrot.slane %v770, 5
      %v917 = vsel %vm892, %v915, %v916
      %v918 = vrot.slane %v916, 4
      %v919 = vrot.slane %v774, 5
      %v920 = vsel %vm892, %v918, %v919
      %v921 = vld [vmem:[%s734] sm:$0xf]
      %v922 = vld [vmem:[%s734 + $0x4] sm:$0xf]
      %v923 = vld [vmem:[%s734 + $0xc] sm:$0xf]
      %v924 = vld [vmem:[%s734 + $0x10] sm:$0xf]
      %v925 = vld [vmem:[%s734 + $0x18] sm:$0xf]
      %v926 = vld [vmem:[%s734 + $0x1c] sm:$0xf]
      %v927 = vld [vmem:[%s734 + $0x24] sm:$0xf]
      %v928 = vld [vmem:[%s734 + $0x28] sm:$0xf]
      %v929 = vld [vmem:[%s734 + $0x8] sm:$0x1]
      %v930 = vld [vmem:[%s734 + $0x14] sm:$0x1]
      %v931 = vld [vmem:[%s734 + $0x20] sm:$0x1]
      %v932 = vld [vmem:[%s734 + $0x2c] sm:$0x1]
      %v934 = vshrl.u32 %v921, 16
      %v936 = vrot.slane %v934, 4
      %v937 = vshll.u32 %v921, 16
      %v939 = vrot.slane %v937, 5
      %v940 = vor.u32 %v936, %v939
      %v941 = vrot.slane %v940, 4
      %v943 = vshll.u32 %v922, 16
      %v945 = vrot.slane %v943, 5
      %v946 = vsel %vm777, %v941, %v945
      %v947 = vshrl.u32 %v922, 16
      %v949 = vrot.slane %v947, 4
      %v950 = vor.u32 %v949, %v945
      %v951 = vrot.slane %v950, 4
      %v953 = vshll.u32 %v929, 16
      %v955 = vrot.slane %v953, 5
      %v956 = vsel %vm777, %v951, %v955
      %v958 = vshrl.u32 %v923, 16
      %v960 = vrot.slane %v958, 4
      %v961 = vshll.u32 %v923, 16
      %v963 = vrot.slane %v961, 5
      %v964 = vor.u32 %v960, %v963
      %v965 = vrot.slane %v964, 4
      %v967 = vshll.u32 %v924, 16
      %v969 = vrot.slane %v967, 5
      %v970 = vsel %vm777, %v965, %v969
      %v971 = vshrl.u32 %v924, 16
      %v973 = vrot.slane %v971, 4
      %v974 = vor.u32 %v973, %v969
      %v975 = vrot.slane %v974, 4
      %v977 = vshll.u32 %v930, 16
      %v979 = vrot.slane %v977, 5
      %v980 = vsel %vm777, %v975, %v979
      %v982 = vshrl.u32 %v925, 16
      %v984 = vrot.slane %v982, 4
      %v985 = vshll.u32 %v925, 16
      %v987 = vrot.slane %v985, 5
      %v988 = vor.u32 %v984, %v987
      %v989 = vrot.slane %v988, 4
      %v991 = vshll.u32 %v926, 16
      %v993 = vrot.slane %v991, 5
      %v994 = vsel %vm777, %v989, %v993
      %v995 = vshrl.u32 %v926, 16
      %v997 = vrot.slane %v995, 4
      %v998 = vor.u32 %v997, %v993
      %v999 = vrot.slane %v998, 4
      %v1001 = vshll.u32 %v931, 16
      %v1003 = vrot.slane %v1001, 5
      %v1004 = vsel %vm777, %v999, %v1003
      %v1006 = vshrl.u32 %v927, 16
      %v1008 = vrot.slane %v1006, 4
      %v1009 = vshll.u32 %v927, 16
      %v1011 = vrot.slane %v1009, 5
      %v1012 = vor.u32 %v1008, %v1011
      %v1013 = vrot.slane %v1012, 4
      %v1015 = vshll.u32 %v928, 16
      %v1017 = vrot.slane %v1015, 5
      %v1018 = vsel %vm777, %v1013, %v1017
      %v1019 = vshrl.u32 %v928, 16
      %v1021 = vrot.slane %v1019, 4
      %v1022 = vor.u32 %v1021, %v1017
      %v1023 = vrot.slane %v1022, 4
      %v1025 = vshll.u32 %v932, 16
      %v1027 = vrot.slane %v1025, 5
      %v1028 = vsel %vm777, %v1023, %v1027
      %v1029 = vld [vmem:[%s734] sm:$0xe]
      %v1030 = vld [vmem:[%s734 + $0xc] sm:$0xe]
      %v1031 = vld [vmem:[%s734 + $0x18] sm:$0xe]
      %v1032 = vld [vmem:[%s734 + $0x24] sm:$0xe]
      %v1045 = vrot.slane %v1029, 5
      %v1046 = vrot.slane %v1045, 4
      %v1047 = vrot.slane %v922, 5
      %v1048 = vsel %vm892, %v1046, %v1047
      %v1049 = vrot.slane %v1047, 4
      %v1050 = vrot.slane %v929, 5
      %v1051 = vsel %vm892, %v1049, %v1050
      %v1052 = vrot.slane %v1030, 5
      %v1053 = vrot.slane %v1052, 4
      %v1054 = vrot.slane %v924, 5
      %v1055 = vsel %vm892, %v1053, %v1054
      %v1056 = vrot.slane %v1054, 4
      %v1057 = vrot.slane %v930, 5
      %v1058 = vsel %vm892, %v1056, %v1057
      %v1059 = vrot.slane %v1031, 5
      %v1060 = vrot.slane %v1059, 4
      %v1061 = vrot.slane %v926, 5
      %v1062 = vsel %vm892, %v1060, %v1061
      %v1063 = vrot.slane %v1061, 4
      %v1064 = vrot.slane %v931, 5
      %v1065 = vsel %vm892, %v1063, %v1064
      %v1066 = vrot.slane %v1032, 5
      %v1067 = vrot.slane %v1066, 4
      %v1068 = vrot.slane %v928, 5
      %v1069 = vsel %vm892, %v1067, %v1068
      %v1070 = vrot.slane %v1068, 4
      %v1071 = vrot.slane %v932, 5
      %v1072 = vsel %vm892, %v1070, %v1071
      %s1073 = scalar_lea.vmem [#allocation2], 24
      %v1074 = vld [vmem:[%s1073] sm:$0xf]
      %v1075 = vld [vmem:[%s1073 + $0x4] sm:$0xf]
      %v1076 = vld [vmem:[%s1073 + $0xc] sm:$0xf]
      %v1077 = vld [vmem:[%s1073 + $0x10] sm:$0xf]
      %v1078 = vld [vmem:[%s1073 + $0x18] sm:$0xf]
      %v1079 = vld [vmem:[%s1073 + $0x1c] sm:$0xf]
      %v1080 = vld [vmem:[%s1073 + $0x24] sm:$0xf]
      %v1081 = vld [vmem:[%s1073 + $0x28] sm:$0xf]
      %v1082 = vld [vmem:[%s1073 + $0x8] sm:$0x1]
      %v1083 = vld [vmem:[%s1073 + $0x14] sm:$0x1]
      %v1084 = vld [vmem:[%s1073 + $0x20] sm:$0x1]
      %v1085 = vld [vmem:[%s1073 + $0x2c] sm:$0x1]
      %v1087 = vshrl.u32 %v1074, 16
      %v1089 = vrot.slane %v1087, 4
      %v1090 = vshll.u32 %v1074, 16
      %v1092 = vrot.slane %v1090, 5
      %v1093 = vor.u32 %v1089, %v1092
      %v1094 = vrot.slane %v1093, 4
      %v1096 = vshll.u32 %v1075, 16
      %v1098 = vrot.slane %v1096, 5
      %v1099 = vsel %vm777, %v1094, %v1098
      %v1100 = vshrl.u32 %v1075, 16
      %v1102 = vrot.slane %v1100, 4
      %v1103 = vor.u32 %v1102, %v1098
      %v1104 = vrot.slane %v1103, 4
      %v1106 = vshll.u32 %v1082, 16
      %v1108 = vrot.slane %v1106, 5
      %v1109 = vsel %vm777, %v1104, %v1108
      %v1111 = vshrl.u32 %v1076, 16
      %v1113 = vrot.slane %v1111, 4
      %v1114 = vshll.u32 %v1076, 16
      %v1116 = vrot.slane %v1114, 5
      %v1117 = vor.u32 %v1113, %v1116
      %v1118 = vrot.slane %v1117, 4
      %v1120 = vshll.u32 %v1077, 16
      %v1122 = vrot.slane %v1120, 5
      %v1123 = vsel %vm777, %v1118, %v1122
      %v1124 = vshrl.u32 %v1077, 16
      %v1126 = vrot.slane %v1124, 4
      %v1127 = vor.u32 %v1126, %v1122
      %v1128 = vrot.slane %v1127, 4
      %v1130 = vshll.u32 %v1083, 16
      %v1132 = vrot.slane %v1130, 5
      %v1133 = vsel %vm777, %v1128, %v1132
      %v1135 = vshrl.u32 %v1078, 16
      %v1137 = vrot.slane %v1135, 4
      %v1138 = vshll.u32 %v1078, 16
      %v1140 = vrot.slane %v1138, 5
      %v1141 = vor.u32 %v1137, %v1140
      %v1142 = vrot.slane %v1141, 4
      %v1144 = vshll.u32 %v1079, 16
      %v1146 = vrot.slane %v1144, 5
      %v1147 = vsel %vm777, %v1142, %v1146
      %v1148 = vshrl.u32 %v1079, 16
      %v1150 = vrot.slane %v1148, 4
      %v1151 = vor.u32 %v1150, %v1146
      %v1152 = vrot.slane %v1151, 4
      %v1154 = vshll.u32 %v1084, 16
      %v1156 = vrot.slane %v1154, 5
      %v1157 = vsel %vm777, %v1152, %v1156
      %v1159 = vshrl.u32 %v1080, 16
      %v1161 = vrot.slane %v1159, 4
      %v1162 = vshll.u32 %v1080, 16
      %v1164 = vrot.slane %v1162, 5
      %v1165 = vor.u32 %v1161, %v1164
      %v1166 = vrot.slane %v1165, 4
      %v1168 = vshll.u32 %v1081, 16
      %v1170 = vrot.slane %v1168, 5
      %v1171 = vsel %vm777, %v1166, %v1170
      %v1172 = vshrl.u32 %v1081, 16
      %v1174 = vrot.slane %v1172, 4
      %v1175 = vor.u32 %v1174, %v1170
      %v1176 = vrot.slane %v1175, 4
      %v1178 = vshll.u32 %v1085, 16
      %v1180 = vrot.slane %v1178, 5
      %v1181 = vsel %vm777, %v1176, %v1180
      %v1182 = vld [vmem:[%s1073] sm:$0xe]
      %v1183 = vld [vmem:[%s1073 + $0xc] sm:$0xe]
      %v1184 = vld [vmem:[%s1073 + $0x18] sm:$0xe]
      %v1185 = vld [vmem:[%s1073 + $0x24] sm:$0xe]
      %v1198 = vrot.slane %v1182, 5
      %v1199 = vrot.slane %v1198, 4
      %v1200 = vrot.slane %v1075, 5
      %v1201 = vsel %vm892, %v1199, %v1200
      %v1202 = vrot.slane %v1200, 4
      %v1203 = vrot.slane %v1082, 5
      %v1204 = vsel %vm892, %v1202, %v1203
      %v1205 = vrot.slane %v1183, 5
      %v1206 = vrot.slane %v1205, 4
      %v1207 = vrot.slane %v1077, 5
      %v1208 = vsel %vm892, %v1206, %v1207
      %v1209 = vrot.slane %v1207, 4
      %v1210 = vrot.slane %v1083, 5
      %v1211 = vsel %vm892, %v1209, %v1210
      %v1212 = vrot.slane %v1184, 5
      %v1213 = vrot.slane %v1212, 4
      %v1214 = vrot.slane %v1079, 5
      %v1215 = vsel %vm892, %v1213, %v1214
      %v1216 = vrot.slane %v1214, 4
      %v1217 = vrot.slane %v1084, 5
      %v1218 = vsel %vm892, %v1216, %v1217
      %v1219 = vrot.slane %v1185, 5
      %v1220 = vrot.slane %v1219, 4
      %v1221 = vrot.slane %v1081, 5
      %v1222 = vsel %vm892, %v1220, %v1221
      %v1223 = vrot.slane %v1221, 4
      %v1224 = vrot.slane %v1085, 5
      %v1225 = vsel %vm892, %v1223, %v1224
      %v1230 = vunpack.c.l.b16 %v763
      %v1231 = vunpack.c.l.b16 %v764
      %v1232 = vunpack.c.l.b16 %v765
      %v1233 = vunpack.c.l.b16 %v766
      %v1234 = vunpack.c.l.b16 %v767
      %v1235 = vunpack.c.l.b16 %v768
      %v1236 = vunpack.c.l.b16 %v769
      %v1237 = vunpack.c.l.b16 %v770
      %v1238 = vpack.c.b16 %v1231, %v1230
      %v1239 = vpack.c.b16 %v1233, %v1232
      %v1240 = vpack.c.b16 %v1235, %v1234
      %v1241 = vpack.c.b16 %v1237, %v1236
      %v1246 = vunpack.c.l.b16 %v791
      %v1247 = vunpack.c.l.b16 %v801
      %v1248 = vunpack.c.l.b16 %v815
      %v1249 = vunpack.c.l.b16 %v825
      %v1250 = vunpack.c.l.b16 %v839
      %v1251 = vunpack.c.l.b16 %v849
      %v1252 = vunpack.c.l.b16 %v863
      %v1253 = vunpack.c.l.b16 %v873
      %v1254 = vpack.c.b16 %v1247, %v1246
      %v1255 = vpack.c.b16 %v1249, %v1248
      %v1256 = vpack.c.b16 %v1251, %v1250
      %v1257 = vpack.c.b16 %v1253, %v1252
      %v1262 = vunpack.c.l.b16 %v896
      %v1263 = vunpack.c.l.b16 %v899
      %v1264 = vunpack.c.l.b16 %v903
      %v1265 = vunpack.c.l.b16 %v906
      %v1266 = vunpack.c.l.b16 %v910
      %v1267 = vunpack.c.l.b16 %v913
      %v1268 = vunpack.c.l.b16 %v917
      %v1269 = vunpack.c.l.b16 %v920
      %v1270 = vpack.c.b16 %v1263, %v1262
      %v1271 = vpack.c.b16 %v1265, %v1264
      %v1272 = vpack.c.b16 %v1267, %v1266
      %v1273 = vpack.c.b16 %v1269, %v1268
      %v1282 = vunpack.c.l.b16 %v921
      %v1283 = vunpack.c.l.b16 %v922
      %v1284 = vunpack.c.l.b16 %v923
      %v1285 = vunpack.c.l.b16 %v924
      %v1286 = vunpack.c.l.b16 %v925
      %v1287 = vunpack.c.l.b16 %v926
      %v1288 = vunpack.c.l.b16 %v927
      %v1289 = vunpack.c.l.b16 %v928
      %v1290 = vpack.c.b16 %v1283, %v1282
      %v1291 = vpack.c.b16 %v1285, %v1284
      %v1292 = vpack.c.b16 %v1287, %v1286
      %v1293 = vpack.c.b16 %v1289, %v1288
      %v1298 = vunpack.c.l.b16 %v946
      %v1299 = vunpack.c.l.b16 %v956
      %v1300 = vunpack.c.l.b16 %v970
      %v1301 = vunpack.c.l.b16 %v980
      %v1302 = vunpack.c.l.b16 %v994
      %v1303 = vunpack.c.l.b16 %v1004
      %v1304 = vunpack.c.l.b16 %v1018
      %v1305 = vunpack.c.l.b16 %v1028
      %v1306 = vpack.c.b16 %v1299, %v1298
      %v1307 = vpack.c.b16 %v1301, %v1300
      %v1308 = vpack.c.b16 %v1303, %v1302
      %v1309 = vpack.c.b16 %v1305, %v1304
      %v1314 = vunpack.c.l.b16 %v1048
      %v1315 = vunpack.c.l.b16 %v1051
      %v1316 = vunpack.c.l.b16 %v1055
      %v1317 = vunpack.c.l.b16 %v1058
      %v1318 = vunpack.c.l.b16 %v1062
      %v1319 = vunpack.c.l.b16 %v1065
      %v1320 = vunpack.c.l.b16 %v1069
      %v1321 = vunpack.c.l.b16 %v1072
      %v1322 = vpack.c.b16 %v1315, %v1314
      %v1323 = vpack.c.b16 %v1317, %v1316
      %v1324 = vpack.c.b16 %v1319, %v1318
      %v1325 = vpack.c.b16 %v1321, %v1320
      %v1334 = vunpack.c.l.b16 %v1074
      %v1335 = vunpack.c.l.b16 %v1075
      %v1336 = vunpack.c.l.b16 %v1076
      %v1337 = vunpack.c.l.b16 %v1077
      %v1338 = vunpack.c.l.b16 %v1078
      %v1339 = vunpack.c.l.b16 %v1079
      %v1340 = vunpack.c.l.b16 %v1080
      %v1341 = vunpack.c.l.b16 %v1081
      %v1342 = vpack.c.b16 %v1335, %v1334
      %v1343 = vpack.c.b16 %v1337, %v1336
      %v1344 = vpack.c.b16 %v1339, %v1338
      %v1345 = vpack.c.b16 %v1341, %v1340
      %v1350 = vunpack.c.l.b16 %v1099
      %v1351 = vunpack.c.l.b16 %v1109
      %v1352 = vunpack.c.l.b16 %v1123
      %v1353 = vunpack.c.l.b16 %v1133
      %v1354 = vunpack.c.l.b16 %v1147
      %v1355 = vunpack.c.l.b16 %v1157
      %v1356 = vunpack.c.l.b16 %v1171
      %v1357 = vunpack.c.l.b16 %v1181
      %v1358 = vpack.c.b16 %v1351, %v1350
      %v1359 = vpack.c.b16 %v1353, %v1352
      %v1360 = vpack.c.b16 %v1355, %v1354
      %v1361 = vpack.c.b16 %v1357, %v1356
      %v1366 = vunpack.c.l.b16 %v1201
      %v1367 = vunpack.c.l.b16 %v1204
      %v1368 = vunpack.c.l.b16 %v1208
      %v1369 = vunpack.c.l.b16 %v1211
      %v1370 = vunpack.c.l.b16 %v1215
      %v1371 = vunpack.c.l.b16 %v1218
      %v1372 = vunpack.c.l.b16 %v1222
      %v1373 = vunpack.c.l.b16 %v1225
      %v1374 = vpack.c.b16 %v1367, %v1366
      %v1375 = vpack.c.b16 %v1369, %v1368
      %v1376 = vpack.c.b16 %v1371, %v1370
      %v1377 = vpack.c.b16 %v1373, %v1372
      %v1382 = vld [vmem:[%s5] sm:$0xf]
      %v1383 = vld [vmem:[%s5 + $0x4] sm:$0xf]
      %v1384 = vld [vmem:[%s5 + $0x8] sm:$0xf]
      %v1385 = vld [vmem:[%s5 + $0xc] sm:$0xf]
      %v1386 = vld [vmem:[%s5 + $0x10] sm:$0xf]
      %v1387 = vld [vmem:[%s5 + $0x14] sm:$0xf]
      %v1388 = vld [vmem:[%s5 + $0x18] sm:$0xf]
      %v1389 = vld [vmem:[%s5 + $0x1c] sm:$0xf]
      %v1390 = vld [vmem:[%s5 + $0x20] sm:$0xf]
      %v1391 = vld [vmem:[%s5 + $0x24] sm:$0xf]
      %v1392 = vld [vmem:[%s5 + $0x28] sm:$0xf]
      %v1393 = vld [vmem:[%s5 + $0x2c] sm:$0xf]
      %v1394 = vld [vmem:[%s5 + $0x30] sm:$0xf]
      %v1395 = vld [vmem:[%s5 + $0x34] sm:$0xf]
      %v1396 = vld [vmem:[%s5 + $0x38] sm:$0xf]
      %v1397 = vld [vmem:[%s5 + $0x3c] sm:$0xf]
      %v1398 = vld [vmem:[%s5 + $0x40] sm:$0xf]
      %v1399 = vld [vmem:[%s5 + $0x44] sm:$0xf]
      %v1400 = vld [vmem:[%s5 + $0x48] sm:$0xf]
      %v1401 = vld [vmem:[%s5 + $0x4c] sm:$0xf]
      %v1402 = vld [vmem:[%s5 + $0x50] sm:$0xf]
      %v1403 = vld [vmem:[%s5 + $0x54] sm:$0xf]
      %v1404 = vld [vmem:[%s5 + $0x58] sm:$0xf]
      %v1405 = vld [vmem:[%s5 + $0x5c] sm:$0xf]
      %v1406 = vld [vmem:[%s5 + $0x60] sm:$0xf]
      %v1407 = vld [vmem:[%s5 + $0x64] sm:$0xf]
      %v1408 = vld [vmem:[%s5 + $0x68] sm:$0xf]
      %v1409 = vld [vmem:[%s5 + $0x6c] sm:$0xf]
      %v1410 = vld [vmem:[%s5 + $0x70] sm:$0xf]
      %v1411 = vld [vmem:[%s5 + $0x74] sm:$0xf]
      %v1412 = vld [vmem:[%s5 + $0x78] sm:$0xf]
      %v1413 = vld [vmem:[%s5 + $0x7c] sm:$0xf]
      %v1414 = vld [vmem:[%s5 + $0x80] sm:$0xf]
      %v1415 = vld [vmem:[%s5 + $0x84] sm:$0xf]
      %v1416 = vld [vmem:[%s5 + $0x88] sm:$0xf]
      %v1417 = vld [vmem:[%s5 + $0x8c] sm:$0xf]
      %v1418 = vld [vmem:[%s5 + $0x90] sm:$0xf]
      %v1419 = vld [vmem:[%s5 + $0x94] sm:$0xf]
      %v1420 = vld [vmem:[%s5 + $0x98] sm:$0xf]
      %v1421 = vld [vmem:[%s5 + $0x9c] sm:$0xf]
      %v1422 = vld [vmem:[%s5 + $0xa0] sm:$0xf]
      %v1423 = vld [vmem:[%s5 + $0xa4] sm:$0xf]
      %v1424 = vld [vmem:[%s5 + $0xa8] sm:$0xf]
      %v1425 = vld [vmem:[%s5 + $0xac] sm:$0xf]
      %v1426 = vld [vmem:[%s5 + $0xb0] sm:$0xf]
      %v1427 = vld [vmem:[%s5 + $0xb4] sm:$0xf]
      %v1428 = vld [vmem:[%s5 + $0xb8] sm:$0xf]
      %v1429 = vld [vmem:[%s5 + $0xbc] sm:$0xf]
      %v1430 = vld [vmem:[%s5 + $0xc0] sm:$0xf]
      %v1431 = vld [vmem:[%s5 + $0xc4] sm:$0xf]
      %v1432 = vld [vmem:[%s5 + $0xc8] sm:$0xf]
      %v1433 = vld [vmem:[%s5 + $0xcc] sm:$0xf]
      %v1434 = vld [vmem:[%s5 + $0xd0] sm:$0xf]
      %v1435 = vld [vmem:[%s5 + $0xd4] sm:$0xf]
      %v1436 = vld [vmem:[%s5 + $0xd8] sm:$0xf]
      %v1437 = vld [vmem:[%s5 + $0xdc] sm:$0xf]
      %v1438 = vld [vmem:[%s5 + $0xe0] sm:$0xf]
      %v1439 = vld [vmem:[%s5 + $0xe4] sm:$0xf]
      %v1440 = vld [vmem:[%s5 + $0xe8] sm:$0xf]
      %v1441 = vld [vmem:[%s5 + $0xec] sm:$0xf]
      %v1442 = vld [vmem:[%s5 + $0xf0] sm:$0xf]
      %v1443 = vld [vmem:[%s5 + $0xf4] sm:$0xf]
      %v1444 = vld [vmem:[%s5 + $0xf8] sm:$0xf]
      %v1445 = vld [vmem:[%s5 + $0xfc] sm:$0xf]
      %v1446 = vld [vmem:[%s5 + $0x100] sm:$0xf]
      %v1447 = vld [vmem:[%s5 + $0x104] sm:$0xf]
      %v1448 = vld [vmem:[%s5 + $0x108] sm:$0xf]
      %v1449 = vld [vmem:[%s5 + $0x10c] sm:$0xf]
      %v1450 = vld [vmem:[%s5 + $0x110] sm:$0xf]
      %v1451 = vld [vmem:[%s5 + $0x114] sm:$0xf]
      %v1452 = vld [vmem:[%s5 + $0x118] sm:$0xf]
      %v1453 = vld [vmem:[%s5 + $0x11c] sm:$0xf]
      %v1454 = vld [vmem:[%s5 + $0x120] sm:$0xf]
      %v1455 = vld [vmem:[%s5 + $0x124] sm:$0xf]
      %v1456 = vld [vmem:[%s5 + $0x128] sm:$0xf]
      %v1457 = vld [vmem:[%s5 + $0x12c] sm:$0xf]
      %v1458 = vld [vmem:[%s5 + $0x130] sm:$0xf]
      %v1459 = vld [vmem:[%s5 + $0x134] sm:$0xf]
      %v1460 = vld [vmem:[%s5 + $0x138] sm:$0xf]
      %v1461 = vld [vmem:[%s5 + $0x13c] sm:$0xf]
      %v1462 = vld [vmem:[%s5 + $0x140] sm:$0xf]
      %v1463 = vld [vmem:[%s5 + $0x144] sm:$0xf]
      %v1464 = vld [vmem:[%s5 + $0x148] sm:$0xf]
      %v1465 = vld [vmem:[%s5 + $0x14c] sm:$0xf]
      %v1466 = vld [vmem:[%s5 + $0x150] sm:$0xf]
      %v1467 = vld [vmem:[%s5 + $0x154] sm:$0xf]
      %v1468 = vld [vmem:[%s5 + $0x158] sm:$0xf]
      %v1469 = vld [vmem:[%s5 + $0x15c] sm:$0xf]
      %v1470 = vld [vmem:[%s5 + $0x160] sm:$0xf]
      %v1471 = vld [vmem:[%s5 + $0x164] sm:$0xf]
      %v1472 = vld [vmem:[%s5 + $0x168] sm:$0xf]
      %v1473 = vld [vmem:[%s5 + $0x16c] sm:$0xf]
      %v1474 = vld [vmem:[%s5 + $0x170] sm:$0xf]
      %v1475 = vld [vmem:[%s5 + $0x174] sm:$0xf]
      %v1476 = vld [vmem:[%s5 + $0x178] sm:$0xf]
      %v1477 = vld [vmem:[%s5 + $0x17c] sm:$0xf]
      %v1478 = vld [vmem:[%s5 + $0x180] sm:$0xf]
      %v1479 = vld [vmem:[%s5 + $0x184] sm:$0xf]
      %v1480 = vld [vmem:[%s5 + $0x188] sm:$0xf]
      %v1481 = vld [vmem:[%s5 + $0x18c] sm:$0xf]
      %v1482 = vld [vmem:[%s5 + $0x190] sm:$0xf]
      %v1483 = vld [vmem:[%s5 + $0x194] sm:$0xf]
      %v1484 = vld [vmem:[%s5 + $0x198] sm:$0xf]
      %v1485 = vld [vmem:[%s5 + $0x19c] sm:$0xf]
      %v1486 = vld [vmem:[%s5 + $0x1a0] sm:$0xf]
      %v1487 = vld [vmem:[%s5 + $0x1a4] sm:$0xf]
      %v1488 = vld [vmem:[%s5 + $0x1a8] sm:$0xf]
      %v1489 = vld [vmem:[%s5 + $0x1ac] sm:$0xf]
      %v1490 = vld [vmem:[%s5 + $0x1b0] sm:$0xf]
      %v1491 = vld [vmem:[%s5 + $0x1b4] sm:$0xf]
      %v1492 = vld [vmem:[%s5 + $0x1b8] sm:$0xf]
      %v1493 = vld [vmem:[%s5 + $0x1bc] sm:$0xf]
      %v1494 = vld [vmem:[%s5 + $0x1c0] sm:$0xf]
      %v1495 = vld [vmem:[%s5 + $0x1c4] sm:$0xf]
      %v1496 = vld [vmem:[%s5 + $0x1c8] sm:$0xf]
      %v1497 = vld [vmem:[%s5 + $0x1cc] sm:$0xf]
      %v1498 = vld [vmem:[%s5 + $0x1d0] sm:$0xf]
      %v1499 = vld [vmem:[%s5 + $0x1d4] sm:$0xf]
      %v1500 = vld [vmem:[%s5 + $0x1d8] sm:$0xf]
      %v1501 = vld [vmem:[%s5 + $0x1dc] sm:$0xf]
      %v1502 = vld [vmem:[%s5 + $0x1e0] sm:$0xf]
      %v1503 = vld [vmem:[%s5 + $0x1e4] sm:$0xf]
      %v1504 = vld [vmem:[%s5 + $0x1e8] sm:$0xf]
      %v1505 = vld [vmem:[%s5 + $0x1ec] sm:$0xf]
      %v1506 = vld [vmem:[%s5 + $0x1f0] sm:$0xf]
      %v1507 = vld [vmem:[%s5 + $0x1f4] sm:$0xf]
      %v1508 = vld [vmem:[%s5 + $0x1f8] sm:$0xf]
      %v1509 = vld [vmem:[%s5 + $0x1fc] sm:$0xf]
      %v1510 = vld [vmem:[%s5 + $0x200] sm:$0xf]
      %v1511 = vld [vmem:[%s5 + $0x204] sm:$0xf]
      %v1512 = vld [vmem:[%s5 + $0x208] sm:$0xf]
      %v1513 = vld [vmem:[%s5 + $0x20c] sm:$0xf]
      %v1514 = vld [vmem:[%s5 + $0x210] sm:$0xf]
      %v1515 = vld [vmem:[%s5 + $0x214] sm:$0xf]
      %v1516 = vld [vmem:[%s5 + $0x218] sm:$0xf]
      %v1517 = vld [vmem:[%s5 + $0x21c] sm:$0xf]
      %v1518 = vld [vmem:[%s5 + $0x220] sm:$0xf]
      %v1519 = vld [vmem:[%s5 + $0x224] sm:$0xf]
      %v1520 = vld [vmem:[%s5 + $0x228] sm:$0xf]
      %v1521 = vld [vmem:[%s5 + $0x22c] sm:$0xf]
      %v1522 = vld [vmem:[%s5 + $0x230] sm:$0xf]
      %v1523 = vld [vmem:[%s5 + $0x234] sm:$0xf]
      %v1524 = vld [vmem:[%s5 + $0x238] sm:$0xf]
      %v1525 = vld [vmem:[%s5 + $0x23c] sm:$0xf]
      %v1670 = vunpack.c.l.b16 %v1382
      %v1671 = vunpack.c.l.b16 %v1383
      %v1672 = vunpack.c.l.b16 %v1384
      %v1673 = vunpack.c.l.b16 %v1385
      %v1674 = vunpack.c.l.b16 %v1386
      %v1675 = vunpack.c.l.b16 %v1387
      %v1676 = vunpack.c.l.b16 %v1388
      %v1677 = vunpack.c.l.b16 %v1389
      %v1678 = vunpack.c.l.b16 %v1390
      %v1679 = vunpack.c.l.b16 %v1391
      %v1680 = vunpack.c.l.b16 %v1392
      %v1681 = vunpack.c.l.b16 %v1393
      %v1682 = vunpack.c.l.b16 %v1394
      %v1683 = vunpack.c.l.b16 %v1395
      %v1684 = vunpack.c.l.b16 %v1396
      %v1685 = vunpack.c.l.b16 %v1397
      %v1686 = vunpack.c.l.b16 %v1398
      %v1687 = vunpack.c.l.b16 %v1399
      %v1688 = vunpack.c.l.b16 %v1400
      %v1689 = vunpack.c.l.b16 %v1401
      %v1690 = vunpack.c.l.b16 %v1402
      %v1691 = vunpack.c.l.b16 %v1403
      %v1692 = vunpack.c.l.b16 %v1404
      %v1693 = vunpack.c.l.b16 %v1405
      %v1694 = vunpack.c.l.b16 %v1406
      %v1695 = vunpack.c.l.b16 %v1407
      %v1696 = vunpack.c.l.b16 %v1408
      %v1697 = vunpack.c.l.b16 %v1409
      %v1698 = vunpack.c.l.b16 %v1410
      %v1699 = vunpack.c.l.b16 %v1411
      %v1700 = vunpack.c.l.b16 %v1412
      %v1701 = vunpack.c.l.b16 %v1413
      %v1702 = vunpack.c.l.b16 %v1414
      %v1703 = vunpack.c.l.b16 %v1415
      %v1704 = vunpack.c.l.b16 %v1416
      %v1705 = vunpack.c.l.b16 %v1417
      %v1706 = vunpack.c.l.b16 %v1418
      %v1707 = vunpack.c.l.b16 %v1419
      %v1708 = vunpack.c.l.b16 %v1420
      %v1709 = vunpack.c.l.b16 %v1421
      %v1710 = vunpack.c.l.b16 %v1422
      %v1711 = vunpack.c.l.b16 %v1423
      %v1712 = vunpack.c.l.b16 %v1424
      %v1713 = vunpack.c.l.b16 %v1425
      %v1714 = vunpack.c.l.b16 %v1426
      %v1715 = vunpack.c.l.b16 %v1427
      %v1716 = vunpack.c.l.b16 %v1428
      %v1717 = vunpack.c.l.b16 %v1429
      %v1718 = vunpack.c.l.b16 %v1430
      %v1719 = vunpack.c.l.b16 %v1431
      %v1720 = vunpack.c.l.b16 %v1432
      %v1721 = vunpack.c.l.b16 %v1433
      %v1722 = vunpack.c.l.b16 %v1434
      %v1723 = vunpack.c.l.b16 %v1435
      %v1724 = vunpack.c.l.b16 %v1436
      %v1725 = vunpack.c.l.b16 %v1437
      %v1726 = vunpack.c.l.b16 %v1438
      %v1727 = vunpack.c.l.b16 %v1439
      %v1728 = vunpack.c.l.b16 %v1440
      %v1729 = vunpack.c.l.b16 %v1441
      %v1730 = vunpack.c.l.b16 %v1442
      %v1731 = vunpack.c.l.b16 %v1443
      %v1732 = vunpack.c.l.b16 %v1444
      %v1733 = vunpack.c.l.b16 %v1445
      %v1734 = vunpack.c.l.b16 %v1446
      %v1735 = vunpack.c.l.b16 %v1447
      %v1736 = vunpack.c.l.b16 %v1448
      %v1737 = vunpack.c.l.b16 %v1449
      %v1738 = vunpack.c.l.b16 %v1450
      %v1739 = vunpack.c.l.b16 %v1451
      %v1740 = vunpack.c.l.b16 %v1452
      %v1741 = vunpack.c.l.b16 %v1453
      %v1742 = vunpack.c.l.b16 %v1454
      %v1743 = vunpack.c.l.b16 %v1455
      %v1744 = vunpack.c.l.b16 %v1456
      %v1745 = vunpack.c.l.b16 %v1457
      %v1746 = vunpack.c.l.b16 %v1458
      %v1747 = vunpack.c.l.b16 %v1459
      %v1748 = vunpack.c.l.b16 %v1460
      %v1749 = vunpack.c.l.b16 %v1461
      %v1750 = vunpack.c.l.b16 %v1462
      %v1751 = vunpack.c.l.b16 %v1463
      %v1752 = vunpack.c.l.b16 %v1464
      %v1753 = vunpack.c.l.b16 %v1465
      %v1754 = vunpack.c.l.b16 %v1466
      %v1755 = vunpack.c.l.b16 %v1467
      %v1756 = vunpack.c.l.b16 %v1468
      %v1757 = vunpack.c.l.b16 %v1469
      %v1758 = vunpack.c.l.b16 %v1470
      %v1759 = vunpack.c.l.b16 %v1471
      %v1760 = vunpack.c.l.b16 %v1472
      %v1761 = vunpack.c.l.b16 %v1473
      %v1762 = vunpack.c.l.b16 %v1474
      %v1763 = vunpack.c.l.b16 %v1475
      %v1764 = vunpack.c.l.b16 %v1476
      %v1765 = vunpack.c.l.b16 %v1477
      %v1766 = vunpack.c.l.b16 %v1478
      %v1767 = vunpack.c.l.b16 %v1479
      %v1768 = vunpack.c.l.b16 %v1480
      %v1769 = vunpack.c.l.b16 %v1481
      %v1770 = vunpack.c.l.b16 %v1482
      %v1771 = vunpack.c.l.b16 %v1483
      %v1772 = vunpack.c.l.b16 %v1484
      %v1773 = vunpack.c.l.b16 %v1485
      %v1774 = vunpack.c.l.b16 %v1486
      %v1775 = vunpack.c.l.b16 %v1487
      %v1776 = vunpack.c.l.b16 %v1488
      %v1777 = vunpack.c.l.b16 %v1489
      %v1778 = vunpack.c.l.b16 %v1490
      %v1779 = vunpack.c.l.b16 %v1491
      %v1780 = vunpack.c.l.b16 %v1492
      %v1781 = vunpack.c.l.b16 %v1493
      %v1782 = vunpack.c.l.b16 %v1494
      %v1783 = vunpack.c.l.b16 %v1495
      %v1784 = vunpack.c.l.b16 %v1496
      %v1785 = vunpack.c.l.b16 %v1497
      %v1786 = vunpack.c.l.b16 %v1498
      %v1787 = vunpack.c.l.b16 %v1499
      %v1788 = vunpack.c.l.b16 %v1500
      %v1789 = vunpack.c.l.b16 %v1501
      %v1790 = vunpack.c.l.b16 %v1502
      %v1791 = vunpack.c.l.b16 %v1503
      %v1792 = vunpack.c.l.b16 %v1504
      %v1793 = vunpack.c.l.b16 %v1505
      %v1794 = vunpack.c.l.b16 %v1506
      %v1795 = vunpack.c.l.b16 %v1507
      %v1796 = vunpack.c.l.b16 %v1508
      %v1797 = vunpack.c.l.b16 %v1509
      %v1798 = vunpack.c.l.b16 %v1510
      %v1799 = vunpack.c.l.b16 %v1511
      %v1800 = vunpack.c.l.b16 %v1512
      %v1801 = vunpack.c.l.b16 %v1513
      %v1802 = vunpack.c.l.b16 %v1514
      %v1803 = vunpack.c.l.b16 %v1515
      %v1804 = vunpack.c.l.b16 %v1516
      %v1805 = vunpack.c.l.b16 %v1517
      %v1806 = vunpack.c.l.b16 %v1518
      %v1807 = vunpack.c.l.b16 %v1519
      %v1808 = vunpack.c.l.b16 %v1520
      %v1809 = vunpack.c.l.b16 %v1521
      %v1810 = vunpack.c.l.b16 %v1522
      %v1811 = vunpack.c.l.b16 %v1523
      %v1812 = vunpack.c.l.b16 %v1524
      %v1813 = vunpack.c.l.b16 %v1525
      %v1814 = vpack.c.b16 %v1671, %v1670
      %v1815 = vpack.c.b16 %v1673, %v1672
      %v1816 = vpack.c.b16 %v1675, %v1674
      %v1817 = vpack.c.b16 %v1677, %v1676
      %v1818 = vpack.c.b16 %v1679, %v1678
      %v1819 = vpack.c.b16 %v1681, %v1680
      %v1820 = vpack.c.b16 %v1683, %v1682
      %v1821 = vpack.c.b16 %v1685, %v1684
      %v1822 = vpack.c.b16 %v1687, %v1686
      %v1823 = vpack.c.b16 %v1689, %v1688
      %v1824 = vpack.c.b16 %v1691, %v1690
      %v1825 = vpack.c.b16 %v1693, %v1692
      %v1826 = vpack.c.b16 %v1695, %v1694
      %v1827 = vpack.c.b16 %v1697, %v1696
      %v1828 = vpack.c.b16 %v1699, %v1698
      %v1829 = vpack.c.b16 %v1701, %v1700
      %v1830 = vpack.c.b16 %v1703, %v1702
      %v1831 = vpack.c.b16 %v1705, %v1704
      %v1832 = vpack.c.b16 %v1707, %v1706
      %v1833 = vpack.c.b16 %v1709, %v1708
      %v1834 = vpack.c.b16 %v1711, %v1710
      %v1835 = vpack.c.b16 %v1713, %v1712
      %v1836 = vpack.c.b16 %v1715, %v1714
      %v1837 = vpack.c.b16 %v1717, %v1716
      %v1838 = vpack.c.b16 %v1719, %v1718
      %v1839 = vpack.c.b16 %v1721, %v1720
      %v1840 = vpack.c.b16 %v1723, %v1722
      %v1841 = vpack.c.b16 %v1725, %v1724
      %v1842 = vpack.c.b16 %v1727, %v1726
      %v1843 = vpack.c.b16 %v1729, %v1728
      %v1844 = vpack.c.b16 %v1731, %v1730
      %v1845 = vpack.c.b16 %v1733, %v1732
      %v1846 = vpack.c.b16 %v1735, %v1734
      %v1847 = vpack.c.b16 %v1737, %v1736
      %v1848 = vpack.c.b16 %v1739, %v1738
      %v1849 = vpack.c.b16 %v1741, %v1740
      %v1850 = vpack.c.b16 %v1743, %v1742
      %v1851 = vpack.c.b16 %v1745, %v1744
      %v1852 = vpack.c.b16 %v1747, %v1746
      %v1853 = vpack.c.b16 %v1749, %v1748
      %v1854 = vpack.c.b16 %v1751, %v1750
      %v1855 = vpack.c.b16 %v1753, %v1752
      %v1856 = vpack.c.b16 %v1755, %v1754
      %v1857 = vpack.c.b16 %v1757, %v1756
      %v1858 = vpack.c.b16 %v1759, %v1758
      %v1859 = vpack.c.b16 %v1761, %v1760
      %v1860 = vpack.c.b16 %v1763, %v1762
      %v1861 = vpack.c.b16 %v1765, %v1764
      %v1862 = vpack.c.b16 %v1767, %v1766
      %v1863 = vpack.c.b16 %v1769, %v1768
      %v1864 = vpack.c.b16 %v1771, %v1770
      %v1865 = vpack.c.b16 %v1773, %v1772
      %v1866 = vpack.c.b16 %v1775, %v1774
      %v1867 = vpack.c.b16 %v1777, %v1776
      %v1868 = vpack.c.b16 %v1779, %v1778
      %v1869 = vpack.c.b16 %v1781, %v1780
      %v1870 = vpack.c.b16 %v1783, %v1782
      %v1871 = vpack.c.b16 %v1785, %v1784
      %v1872 = vpack.c.b16 %v1787, %v1786
      %v1873 = vpack.c.b16 %v1789, %v1788
      %v1874 = vpack.c.b16 %v1791, %v1790
      %v1875 = vpack.c.b16 %v1793, %v1792
      %v1876 = vpack.c.b16 %v1795, %v1794
      %v1877 = vpack.c.b16 %v1797, %v1796
      %v1878 = vpack.c.b16 %v1799, %v1798
      %v1879 = vpack.c.b16 %v1801, %v1800
      %v1880 = vpack.c.b16 %v1803, %v1802
      %v1881 = vpack.c.b16 %v1805, %v1804
      %v1882 = vpack.c.b16 %v1807, %v1806
      %v1883 = vpack.c.b16 %v1809, %v1808
      %v1884 = vpack.c.b16 %v1811, %v1810
      %v1885 = vpack.c.b16 %v1813, %v1812
      %1958 = vmatprep.subr.bf16.mxu0 0
      %1959 = vmatpush1.bf16.msra.mxu0 %v1814
      %1960 = vmatprep.subr.bf16.mxu0 0
      %1961 = vmatpush1.bf16.msra.mxu0 %v1815
      %1962 = vmatprep.subr.bf16.mxu0 0
      %1963 = vmatpush1.bf16.msra.mxu0 %v1816
      %1964 = vmatprep.subr.bf16.mxu0 0
      %1965 = vmatpush1.bf16.msra.mxu0 %v1817
      %1966 = vmatprep.subr.bf16.mxu0 0
      %1967 = vmatpush1.bf16.msra.mxu0 %v1818
      %1968 = vmatprep.subr.bf16.mxu0 0
      %1969 = vmatpush1.bf16.msra.mxu0 %v1819
      %1970 = vmatprep.subr.bf16.mxu0 0
      %1971 = vmatpush1.bf16.msra.mxu0 %v1820
      %1972 = vmatprep.subr.bf16.mxu0 0
      %1973 = vmatpush1.bf16.msra.mxu0 %v1821
      %1974 = vmatprep.subr.bf16.mxu0 0
      %1975 = vmatpush1.bf16.msra.mxu0 %v1822
      %1976 = vmatprep.subr.bf16.mxu0 0
      %1977 = vmatpush1.bf16.msra.mxu0 %v1823
      %1978 = vmatprep.subr.bf16.mxu0 0
      %1979 = vmatpush1.bf16.msra.mxu0 %v1824
      %1980 = vmatprep.subr.bf16.mxu0 0
      %1981 = vmatpush1.bf16.msra.mxu0 %v1825
      %1982 = vmatprep.subr.bf16.mxu0 0
      %1983 = vmatpush1.bf16.msra.mxu0 %v1826
      %1984 = vmatprep.subr.bf16.mxu0 0
      %1985 = vmatpush1.bf16.msra.mxu0 %v1827
      %1986 = vmatprep.subr.bf16.mxu0 0
      %1987 = vmatpush1.bf16.msra.mxu0 %v1828
      %1988 = vmatprep.subr.bf16.mxu0 0
      %1989 = vmatpush1.bf16.msra.mxu0 %v1829
      %1990 = vmatprep.mubr.bf16.mxu0 %v1254
      %1991 = vmatmul.mubr.bf16.gmra.mrb[0].mxu0 %v1238
      %v1992 = vpop.f32.mrb[0].mxu0
      %v1993 = vadd.f32 0.0, %v1992
      %v1994 = vpop.f32.mrb[0].mxu0
      %v1995 = vpop.f32.mrb[0].mxu0
      %v1996 = vadd.f32 0.0, %v1995
      %v1997 = vpop.f32.mrb[0].mxu0
      %1998 = vmatprep.mubr.bf16.mxu0 %v1255
      %1999 = vmatmul.mubr.bf16.gmra.mrb[0].mxu0 %v1239
      %v2000 = vpop.f32.mrb[0].mxu0
      %v2001 = vadd.f32 0.0, %v2000
      %v2002 = vpop.f32.mrb[0].mxu0
      %v2003 = vpop.f32.mrb[0].mxu0
      %v2004 = vadd.f32 0.0, %v2003
      %v2005 = vpop.f32.mrb[0].mxu0
      %2006 = vmatprep.mubr.bf16.mxu0 %v1256
      %2007 = vmatmul.mubr.bf16.gmra.mrb[0].mxu0 %v1240
      %v2008 = vpop.f32.mrb[0].mxu0
      %v2009 = vadd.f32 0.0, %v2008
      %v2010 = vpop.f32.mrb[0].mxu0
      %v2011 = vpop.f32.mrb[0].mxu0
      %v2012 = vadd.f32 0.0, %v2011
      %v2013 = vpop.f32.mrb[0].mxu0
      %2014 = vmatprep.mubr.bf16.mxu0 %v1257
      %2015 = vmatmul.mubr.bf16.gmra.mrb[0].mxu0 %v1241
      %v2016 = vpop.f32.mrb[0].mxu0
      %v2017 = vadd.f32 0.0, %v2016
      %v2018 = vpop.f32.mrb[0].mxu0
      %v2019 = vpop.f32.mrb[0].mxu0
      %v2020 = vadd.f32 0.0, %v2019
      %v2021 = vpop.f32.mrb[0].mxu0
      %2022 = vdwg.mxu0
      %2023 = vmatprep.subr.bf16.mxu0 0
      %2024 = vmatpush1.bf16.msra.mxu0 %v1830
      %2025 = vmatprep.subr.bf16.mxu0 0
      %2026 = vmatpush1.bf16.msra.mxu0 %v1831
      %2027 = vmatprep.subr.bf16.mxu0 0
      %2028 = vmatpush1.bf16.msra.mxu0 %v1832
      %2029 = vmatprep.subr.bf16.mxu0 0
      %2030 = vmatpush1.bf16.msra.mxu0 %v1833
      %2031 = vmatprep.subr.bf16.mxu0 0
      %2032 = vmatpush1.bf16.msra.mxu0 %v1834
      %2033 = vmatprep.subr.bf16.mxu0 0
      %2034 = vmatpush1.bf16.msra.mxu0 %v1835
      %2035 = vmatprep.subr.bf16.mxu0 0
      %2036 = vmatpush1.bf16.msra.mxu0 %v1836
      %2037 = vmatprep.subr.bf16.mxu0 0
      %2038 = vmatpush1.bf16.msra.mxu0 %v1837
      %2039 = vmatprep.subr.bf16.mxu0 0
      %2040 = vmatpush1.bf16.msra.mxu0 %v1838
      %2041 = vmatprep.subr.bf16.mxu0 0
      %2042 = vmatpush1.bf16.msra.mxu0 %v1839
      %2043 = vmatprep.subr.bf16.mxu0 0
      %2044 = vmatpush1.bf16.msra.mxu0 %v1840
      %2045 = vmatprep.subr.bf16.mxu0 0
      %2046 = vmatpush1.bf16.msra.mxu0 %v1841
      %2047 = vmatprep.subr.bf16.mxu0 0
      %2048 = vmatpush1.bf16.msra.mxu0 %v1842
      %2049 = vmatprep.subr.bf16.mxu0 0
      %2050 = vmatpush1.bf16.msra.mxu0 %v1843
      %2051 = vmatprep.subr.bf16.mxu0 0
      %2052 = vmatpush1.bf16.msra.mxu0 %v1844
      %2053 = vmatprep.subr.bf16.mxu0 0
      %2054 = vmatpush1.bf16.msra.mxu0 %v1845
      %2055 = vmatprep.mubr.bf16.mxu0 %v1290
      %2056 = vmatmul.mubr.bf16.gmra.mrb[0].mxu0 %v1270
      %v2057 = vpop.f32.mrb[0].mxu0
      %v2058 = vadd.f32 %v1993, %v2057
      %v2059 = vpop.f32.mrb[0].mxu0
      %v2060 = vpop.f32.mrb[0].mxu0
      %v2061 = vadd.f32 %v1996, %v2060
      %v2062 = vpop.f32.mrb[0].mxu0
      %2063 = vmatprep.mubr.bf16.mxu0 %v1291
      %2064 = vmatmul.mubr.bf16.gmra.mrb[0].mxu0 %v1271
      %v2065 = vpop.f32.mrb[0].mxu0
      %v2066 = vadd.f32 %v2001, %v2065
      %v2067 = vpop.f32.mrb[0].mxu0
      %v2068 = vpop.f32.mrb[0].mxu0
      %v2069 = vadd.f32 %v2004, %v2068
      %v2070 = vpop.f32.mrb[0].mxu0
      %2071 = vmatprep.mubr.bf16.mxu0 %v1292
      %2072 = vmatmul.mubr.bf16.gmra.mrb[0].mxu0 %v1272
      %v2073 = vpop.f32.mrb[0].mxu0
      %v2074 = vadd.f32 %v2009, %v2073
      %v2075 = vpop.f32.mrb[0].mxu0
      %v2076 = vpop.f32.mrb[0].mxu0
      %v2077 = vadd.f32 %v2012, %v2076
      %v2078 = vpop.f32.mrb[0].mxu0
      %2079 = vmatprep.mubr.bf16.mxu0 %v1293
      %2080 = vmatmul.mubr.bf16.gmra.mrb[0].mxu0 %v1273
      %v2081 = vpop.f32.mrb[0].mxu0
      %v2082 = vadd.f32 %v2017, %v2081
      %v2083 = vpop.f32.mrb[0].mxu0
      %v2084 = vpop.f32.mrb[0].mxu0
      %v2085 = vadd.f32 %v2020, %v2084
      %v2086 = vpop.f32.mrb[0].mxu0
      %2087 = vdwg.mxu0
      %2088 = vmatprep.subr.bf16.mxu0 0
      %2089 = vmatpush1.bf16.msra.mxu0 %v1846
      %2090 = vmatprep.subr.bf16.mxu0 0
      %2091 = vmatpush1.bf16.msra.mxu0 %v1847
      %2092 = vmatprep.subr.bf16.mxu0 0
      %2093 = vmatpush1.bf16.msra.mxu0 %v1848
      %2094 = vmatprep.subr.bf16.mxu0 0
      %2095 = vmatpush1.bf16.msra.mxu0 %v1849
      %2096 = vmatprep.subr.bf16.mxu0 0
      %2097 = vmatpush1.bf16.msra.mxu0 %v1850
      %2098 = vmatprep.subr.bf16.mxu0 0
      %2099 = vmatpush1.bf16.msra.mxu0 %v1851
      %2100 = vmatprep.subr.bf16.mxu0 0
      %2101 = vmatpush1.bf16.msra.mxu0 %v1852
      %2102 = vmatprep.subr.bf16.mxu0 0
      %2103 = vmatpush1.bf16.msra.mxu0 %v1853
      %2104 = vmatprep.subr.bf16.mxu0 0
      %2105 = vmatpush1.bf16.msra.mxu0 %v1854
      %2106 = vmatprep.subr.bf16.mxu0 0
      %2107 = vmatpush1.bf16.msra.mxu0 %v1855
      %2108 = vmatprep.subr.bf16.mxu0 0
      %2109 = vmatpush1.bf16.msra.mxu0 %v1856
      %2110 = vmatprep.subr.bf16.mxu0 0
      %2111 = vmatpush1.bf16.msra.mxu0 %v1857
      %2112 = vmatprep.subr.bf16.mxu0 0
      %2113 = vmatpush1.bf16.msra.mxu0 %v1858
      %2114 = vmatprep.subr.bf16.mxu0 0
      %2115 = vmatpush1.bf16.msra.mxu0 %v1859
      %2116 = vmatprep.subr.bf16.mxu0 0
      %2117 = vmatpush1.bf16.msra.mxu0 %v1860
      %2118 = vmatprep.subr.bf16.mxu0 0
      %2119 = vmatpush1.bf16.msra.mxu0 %v1861
      %2120 = vmatprep.mubr.bf16.mxu0 %v1322
      %2121 = vmatmul.mubr.bf16.gmra.mrb[0].mxu0 %v1306
      %v2122 = vpop.f32.mrb[0].mxu0
      %v2123 = vadd.f32 %v2058, %v2122
      %v2124 = vpop.f32.mrb[0].mxu0
      %v2125 = vpop.f32.mrb[0].mxu0
      %v2126 = vadd.f32 %v2061, %v2125
      %v2127 = vpop.f32.mrb[0].mxu0
      %2128 = vmatprep.mubr.bf16.mxu0 %v1323
      %2129 = vmatmul.mubr.bf16.gmra.mrb[0].mxu0 %v1307
      %v2130 = vpop.f32.mrb[0].mxu0
      %v2131 = vadd.f32 %v2066, %v2130
      %v2132 = vpop.f32.mrb[0].mxu0
      %v2133 = vpop.f32.mrb[0].mxu0
      %v2134 = vadd.f32 %v2069, %v2133
      %v2135 = vpop.f32.mrb[0].mxu0
      %2136 = vmatprep.mubr.bf16.mxu0 %v1324
      %2137 = vmatmul.mubr.bf16.gmra.mrb[0].mxu0 %v1308
      %v2138 = vpop.f32.mrb[0].mxu0
      %v2139 = vadd.f32 %v2074, %v2138
      %v2140 = vpop.f32.mrb[0].mxu0
      %v2141 = vpop.f32.mrb[0].mxu0
      %v2142 = vadd.f32 %v2077, %v2141
      %v2143 = vpop.f32.mrb[0].mxu0
      %2144 = vmatprep.mubr.bf16.mxu0 %v1325
      %2145 = vmatmul.mubr.bf16.gmra.mrb[0].mxu0 %v1309
      %v2146 = vpop.f32.mrb[0].mxu0
      %v2147 = vadd.f32 %v2082, %v2146
      %v2148 = vpop.f32.mrb[0].mxu0
      %v2149 = vpop.f32.mrb[0].mxu0
      %v2150 = vadd.f32 %v2085, %v2149
      %v2151 = vpop.f32.mrb[0].mxu0
      %2152 = vdwg.mxu0
      %2153 = vmatprep.subr.bf16.mxu0 0
      %2154 = vmatpush1.bf16.msra.mxu0 %v1862
      %2155 = vmatprep.subr.bf16.mxu0 0
      %2156 = vmatpush1.bf16.msra.mxu0 %v1863
      %2157 = vmatprep.subr.bf16.mxu0 0
      %2158 = vmatpush1.bf16.msra.mxu0 %v1864
      %2159 = vmatprep.subr.bf16.mxu0 0
      %2160 = vmatpush1.bf16.msra.mxu0 %v1865
      %2161 = vmatprep.subr.bf16.mxu0 0
      %2162 = vmatpush1.bf16.msra.mxu0 %v1866
      %2163 = vmatprep.subr.bf16.mxu0 0
      %2164 = vmatpush1.bf16.msra.mxu0 %v1867
      %2165 = vmatprep.subr.bf16.mxu0 0
      %2166 = vmatpush1.bf16.msra.mxu0 %v1868
      %2167 = vmatprep.subr.bf16.mxu0 0
      %2168 = vmatpush1.bf16.msra.mxu0 %v1869
      %2169 = vmatprep.subr.bf16.mxu0 0
      %2170 = vmatpush1.bf16.msra.mxu0 %v1870
      %2171 = vmatprep.subr.bf16.mxu0 0
      %2172 = vmatpush1.bf16.msra.mxu0 %v1871
      %2173 = vmatprep.subr.bf16.mxu0 0
      %2174 = vmatpush1.bf16.msra.mxu0 %v1872
      %2175 = vmatprep.subr.bf16.mxu0 0
      %2176 = vmatpush1.bf16.msra.mxu0 %v1873
      %2177 = vmatprep.subr.bf16.mxu0 0
      %2178 = vmatpush1.bf16.msra.mxu0 %v1874
      %2179 = vmatprep.subr.bf16.mxu0 0
      %2180 = vmatpush1.bf16.msra.mxu0 %v1875
      %2181 = vmatprep.subr.bf16.mxu0 0
      %2182 = vmatpush1.bf16.msra.mxu0 %v1876
      %2183 = vmatprep.subr.bf16.mxu0 0
      %2184 = vmatpush1.bf16.msra.mxu0 %v1877
      %2185 = vmatprep.mubr.bf16.mxu0 %v1358
      %2186 = vmatmul.mubr.bf16.gmra.mrb[0].mxu0 %v1342
      %v2187 = vpop.f32.mrb[0].mxu0
      %v2188 = vadd.f32 %v2123, %v2187
      %v2189 = vpop.f32.mrb[0].mxu0
      %v2190 = vpop.f32.mrb[0].mxu0
      %v2191 = vadd.f32 %v2126, %v2190
      %v2192 = vpop.f32.mrb[0].mxu0
      %2193 = vmatprep.mubr.bf16.mxu0 %v1359
      %2194 = vmatmul.mubr.bf16.gmra.mrb[0].mxu0 %v1343
      %v2195 = vpop.f32.mrb[0].mxu0
      %v2196 = vadd.f32 %v2131, %v2195
      %v2197 = vpop.f32.mrb[0].mxu0
      %v2198 = vpop.f32.mrb[0].mxu0
      %v2199 = vadd.f32 %v2134, %v2198
      %v2200 = vpop.f32.mrb[0].mxu0
      %2201 = vmatprep.mubr.bf16.mxu0 %v1360
      %2202 = vmatmul.mubr.bf16.gmra.mrb[0].mxu0 %v1344
      %v2203 = vpop.f32.mrb[0].mxu0
      %v2204 = vadd.f32 %v2139, %v2203
      %v2205 = vpop.f32.mrb[0].mxu0
      %v2206 = vpop.f32.mrb[0].mxu0
      %v2207 = vadd.f32 %v2142, %v2206
      %v2208 = vpop.f32.mrb[0].mxu0
      %2209 = vmatprep.mubr.bf16.mxu0 %v1361
      %2210 = vmatmul.mubr.bf16.gmra.mrb[0].mxu0 %v1345
      %v2211 = vpop.f32.mrb[0].mxu0
      %v2212 = vadd.f32 %v2147, %v2211
      %v2213 = vpop.f32.mrb[0].mxu0
      %v2214 = vpop.f32.mrb[0].mxu0
      %v2215 = vadd.f32 %v2150, %v2214
      %v2216 = vpop.f32.mrb[0].mxu0
      %2217 = vdwg.mxu0
      %2218 = vmatprep.subr.bf16.mxu0 0
      %2219 = vmatpush1.bf16.msra.mxu0 %v1878
      %2220 = vmatprep.subr.bf16.mxu0 0
      %2221 = vmatpush1.bf16.msra.mxu0 %v1879
      %2222 = vmatprep.subr.bf16.mxu0 0
      %2223 = vmatpush1.bf16.msra.mxu0 %v1880
      %2224 = vmatprep.subr.bf16.mxu0 0
      %2225 = vmatpush1.bf16.msra.mxu0 %v1881
      %2226 = vmatprep.subr.bf16.mxu0 0
      %2227 = vmatpush1.bf16.msra.mxu0 %v1882
      %2228 = vmatprep.subr.bf16.mxu0 0
      %2229 = vmatpush1.bf16.msra.mxu0 %v1883
      %2230 = vmatprep.subr.bf16.mxu0 0
      %2231 = vmatpush1.bf16.msra.mxu0 %v1884
      %2232 = vmatprep.subr.bf16.mxu0 0
      %2233 = vmatpush1.bf16.msra.mxu0 %v1885
      %2234 = vmatprep.subr.bf16.mxu0 0
      %2235 = vmatpush1.bf16.msra.mxu0 0
      %2236 = vmatprep.subr.bf16.mxu0 0
      %2237 = vmatpush1.bf16.msra.mxu0 0
      %2238 = vmatprep.subr.bf16.mxu0 0
      %2239 = vmatpush1.bf16.msra.mxu0 0
      %2240 = vmatprep.subr.bf16.mxu0 0
      %2241 = vmatpush1.bf16.msra.mxu0 0
      %2242 = vmatprep.subr.bf16.mxu0 0
      %2243 = vmatpush1.bf16.msra.mxu0 0
      %2244 = vmatprep.subr.bf16.mxu0 0
      %2245 = vmatpush1.bf16.msra.mxu0 0
      %2246 = vmatprep.subr.bf16.mxu0 0
      %2247 = vmatpush1.bf16.msra.mxu0 0
      %2248 = vmatprep.subr.bf16.mxu0 0
      %2249 = vmatpush1.bf16.msra.mxu0 0
      %2250 = vmatprep.mubr.bf16.mxu0 0
      %2251 = vmatmul.mubr.bf16.gmra.mrb[0].mxu0 %v1374
      %v2252 = vpop.f32.mrb[0].mxu0
      %v2253 = vadd.f32 %v2188, %v2252
      %v2254 = vpop.f32.mrb[0].mxu0
      %v2255 = vpop.f32.mrb[0].mxu0
      %v2256 = vadd.f32 %v2191, %v2255
      %v2257 = vpop.f32.mrb[0].mxu0
      %2258 = vmatprep.mubr.bf16.mxu0 0
      %2259 = vmatmul.mubr.bf16.gmra.mrb[0].mxu0 %v1375
      %v2260 = vpop.f32.mrb[0].mxu0
      %v2261 = vadd.f32 %v2196, %v2260
      %v2262 = vpop.f32.mrb[0].mxu0
      %v2263 = vpop.f32.mrb[0].mxu0
      %v2264 = vadd.f32 %v2199, %v2263
      %v2265 = vpop.f32.mrb[0].mxu0
      %2266 = vmatprep.mubr.bf16.mxu0 0
      %2267 = vmatmul.mubr.bf16.gmra.mrb[0].mxu0 %v1376
      %v2268 = vpop.f32.mrb[0].mxu0
      %v2269 = vadd.f32 %v2204, %v2268
      %v2270 = vpop.f32.mrb[0].mxu0
      %v2271 = vpop.f32.mrb[0].mxu0
      %v2272 = vadd.f32 %v2207, %v2271
      %v2273 = vpop.f32.mrb[0].mxu0
      %2274 = vmatprep.mubr.bf16.mxu0 0
      %2275 = vmatmul.mubr.bf16.gmra.mrb[0].mxu0 %v1377
      %v2276 = vpop.f32.mrb[0].mxu0
      %v2277 = vadd.f32 %v2212, %v2276
      %v2278 = vpop.f32.mrb[0].mxu0
      %v2279 = vpop.f32.mrb[0].mxu0
      %v2280 = vadd.f32 %v2215, %v2279
      %v2281 = vpop.f32.mrb[0].mxu0
      %2282 = vdwg.mxu0
      %v2283 = vpack.c.bf16 %v2256, %v2253
      %v2284 = vpack.c.bf16 %v2264, %v2261
      %v2285 = vpack.c.bf16 %v2272, %v2269
      %v2286 = vpack.c.bf16 %v2280, %v2277
      %v2291 = vunpack.c.l.b16 %v2283
      %v2292 = vunpack.c.h.b16 %v2283
      %v2293 = vunpack.c.l.b16 %v2284
      %v2294 = vunpack.c.h.b16 %v2284
      %v2295 = vunpack.c.l.b16 %v2285
      %v2296 = vunpack.c.h.b16 %v2285
      %v2297 = vunpack.c.l.b16 %v2286
      %v2298 = vunpack.c.h.b16 %v2286
      %v2299 = vpack.c.b16 %v2291, %v2291
      %v2300 = vpack.c.b16 %v2292, %v2292
      %v2301 = vpack.c.b16 %v2293, %v2293
      %v2302 = vpack.c.b16 %v2294, %v2294
      %v2303 = vpack.c.b16 %v2295, %v2295
      %v2304 = vpack.c.b16 %v2296, %v2296
      %v2305 = vpack.c.b16 %v2297, %v2297
      %v2306 = vpack.c.b16 %v2298, %v2298
      %2315 = vst [vmem:[%s442] sm:$0xf] %v2299
      %2316 = vst [vmem:[%s442 + $0x4] sm:$0xf] %v2300
      %2317 = vst [vmem:[%s442 + $0x8] sm:$0xf] %v2301
      %2318 = vst [vmem:[%s442 + $0xc] sm:$0xf] %v2302
      %2319 = vst [vmem:[%s442 + $0x10] sm:$0xf] %v2303
      %2320 = vst [vmem:[%s442 + $0x14] sm:$0xf] %v2304
      %2321 = vst [vmem:[%s442 + $0x18] sm:$0xf] %v2305
      %2322 = vst [vmem:[%s442 + $0x1c] sm:$0xf] %v2306
      %v2323 = vadd.f32 %v2253, %v2256
      %v2324 = vadd.f32 %v2323, %v2261
      %v2325 = vadd.f32 %v2324, %v2264
      %v2326 = vadd.f32 %v2325, %v2269
      %v2327 = vadd.f32 %v2326, %v2272
      %v2328 = vadd.f32 %v2327, %v2277
      %v2329 = vadd.f32 %v2328, %v2280
      %v2330 = vrot.slane %v2329, 4
      %v2331 = vadd.f32 %v2329, %v2330
      %v2332 = vrot.slane %v2331, 2
      %v2333 = vadd.f32 %v2331, %v2332
      %v2334 = vrot.slane %v2333, 1
      %v2335 = vadd.f32 %v2333, %v2334
      %v2336 = vmul.f32 %v2253, %v2253
      %v2337 = vmul.f32 %v2256, %v2256
      %v2338 = vmul.f32 %v2261, %v2261
      %v2339 = vmul.f32 %v2264, %v2264
      %v2340 = vmul.f32 %v2269, %v2269
      %v2341 = vmul.f32 %v2272, %v2272
      %v2342 = vmul.f32 %v2277, %v2277
      %v2343 = vmul.f32 %v2280, %v2280
      %v2344 = vadd.f32 %v2336, %v2337
      %v2345 = vadd.f32 %v2344, %v2338
      %v2346 = vadd.f32 %v2345, %v2339
      %v2347 = vadd.f32 %v2346, %v2340
      %v2348 = vadd.f32 %v2347, %v2341
      %v2349 = vadd.f32 %v2348, %v2342
      %v2350 = vadd.f32 %v2349, %v2343
      %v2351 = vrot.slane %v2350, 4
      %v2352 = vadd.f32 %v2350, %v2351
      %v2353 = vrot.slane %v2352, 2
      %v2354 = vadd.f32 %v2352, %v2353
      %v2355 = vrot.slane %v2354, 1
      %v2356 = vadd.f32 %v2354, %v2355
      %vm2357 = vcmask 1040384
      %v2358 = vsel %vm2357, %v2335, %v2356
      %2359 = vst [vmem:[%s451] sm:$0x3] %v2358
      %s2360 = smul.u32 4, %s24
      %p2361 = scmp.lt.s32.totalorder %s23, 1
      %s2362 = scalar_select %p2361, %s23, 1
      %p2363 = scmp.lt.s32.totalorder %s2360, 15
      %s2364 = scalar_select %p2363, %s2360, 15
      %s2365 = smul.addr %s2364, 2
      %s2366 = smul.addr %s2362, 32
      %s2367 = sadd.s32 %s2365, %s2366
      %s2368 = smul.addr %s2367, 4
      %s2369 = scalar_lea.vmem %s6, %s2368
      %p2370 = scmp.lt.s32.totalorder %s23, 1
      %s2371 = scalar_select %p2370, %s23, 1
      %p2372 = scmp.lt.s32.totalorder %s24, 3
      %s2373 = scalar_select %p2372, %s24, 3
      %s2374 = smul.addr %s2371, 4
      %s2375 = sadd.s32 %s2373, %s2374
      %s2376 = smul.addr %s2375, 2
      %s2377 = scalar_lea.vmem %s7, %s2376
      // Predicated region
      $region45: #{conv_block_forward.4} parent=43 // pred_check
        %p2378 = pneg %p210
      $region46: #{conv_block_forward.4} parent=43 // pred_check_branch
        %2380 = sbr.rel (%p2378) target = $region48
      $region47: #{conv_block_forward.4} parent=43 // pred_region
        %s2381 = smul.u32 4, %s24
      $region48: #{conv_block_forward.4} parent=43 // pred_fallthru
        _
      // Predicated region
      $region49: #{conv_block_forward.4} parent=43 // pred_check
        %p2382 = pneg %p238
      $region50: #{conv_block_forward.4} parent=43 // pred_check_branch
        %2384 = sbr.rel (%p2382) target = $region52
      $region51: #{conv_block_forward.4} parent=43 // pred_region
        _
      $region52: #{conv_block_forward.4} parent=43 // pred_fallthru
        _
    $region44: #{conv_block_forward.4} parent=5 // pred_fallthru
      _
    %p2385 = scmp.le.s32.totalorder 2, %s14
    // Predicated region
    $region53: #{conv_block_forward.4} parent=5 // pred_check
      %p2386 = pneg %p2385
    $region54: #{conv_block_forward.4} parent=5 // pred_check_branch
      %2388 = sbr.rel (%p2386) target = $region56
    $region55: #{conv_block_forward.4} parent=5 // pred_region
      %s2389 = ssub.s32 %s14, 2
      // Predicated region
      $region57: #{conv_block_forward.4} parent=55 // pred_check
        %p2390 = pneg %p216
      $region58: #{conv_block_forward.4} parent=55 // pred_check_branch
        %2392 = sbr.rel (%p2390) target = $region60
      $region59: #{conv_block_forward.4} parent=55 // pred_region
        %s2393 = smul.u32 4, %s26
        %p2394 = scmp.lt.s32.totalorder %s25, 1
        %s2395 = scalar_select %p2394, %s25, 1
        %p2396 = scmp.lt.s32.totalorder %s2393, 15
        %s2397 = scalar_select %p2396, %s2393, 15
        %s2398 = smul.addr %s2397, 2
        %s2399 = smul.addr %s2395, 32
        %s2400 = sadd.s32 %s2398, %s2399
        %s2401 = smul.addr %s2400, 4
        %s2402 = scalar_lea.vmem %s6, %s2401
      $region60: #{conv_block_forward.4} parent=55 // pred_fallthru
        _
      // Predicated region
      $region61: #{conv_block_forward.4} parent=55 // pred_check
        %p2403 = pneg %p244
      $region62: #{conv_block_forward.4} parent=55 // pred_check_branch
        %2405 = sbr.rel (%p2403) target = $region64
      $region63: #{conv_block_forward.4} parent=55 // pred_region
        %p2406 = scmp.lt.s32.totalorder %s25, 1
        %s2407 = scalar_select %p2406, %s25, 1
        %p2408 = scmp.lt.s32.totalorder %s26, 3
        %s2409 = scalar_select %p2408, %s26, 3
        %s2410 = smul.addr %s2407, 4
        %s2411 = sadd.s32 %s2409, %s2410
        %s2412 = smul.addr %s2411, 2
        %s2413 = scalar_lea.vmem %s7, %s2412
      $region64: #{conv_block_forward.4} parent=55 // pred_fallthru
        _
    $region56: #{conv_block_forward.4} parent=5 // pred_fallthru
      _
  $region6: #{conv_block_forward.4} parent=0 // loop_footer
    %s18 = sadd.s32 1, %s14
  $region7: #{conv_block_forward.4} parent=0 // loop_footer_branch
    %13 = sbr.rel target = $region3
  $region8: #{conv_block_forward.4} parent=0 // loop_exit
    _

</llo_original>
